<compile_context>
chip_gen: v5e
topology: v5e:2x2
jax: 0.10.0
libtpu: 0.0.40
codegen_flags: <defaults>
</compile_context>

<pallas_src>
import functools

import jax
import jax.numpy as jnp
from jax.experimental import pallas as pl
from jax.experimental.pallas import tpu as pltpu

# ----------------------------- small, consistent config -----------------------------
B = 2             # batch
T_SEQ = 8         # token sequence length
N_TOKEN = 64      # vocab size
BERT_H = 32       # ALBERT hidden size (stand-in)
HID = 32          # config['hidden_dim']
HID_HALF = HID // 2   # LSTM hidden per direction
STYLE = 128       # config['style_dim']  (ref_s is [B,1,256] = 128 acoustic + 128 style)
MAX_DUR = 8       # config['max_dur']
MAX_FRAMES = T_SEQ * MAX_DUR   # static upper bound on frames (torch uses dynamic max)
CONV_K = 5        # text_encoder_kernel_size (stand-in)
UPSAMPLE = 4      # decoder samples per frame (stand-in for iSTFT upsampling)

_F32 = jnp.float32
_BF16 = jnp.bfloat16

# ----------------------------- packed weight-slab layouts -----------------------------
# One bf16 matmul-weight slab (rows x 128 lanes) and one f32 bias slab.  Offsets are Python
# constants so the kernel can slice with static ref views.

def _build_w_layout():
    entries = [
        ("bffn",     BERT_H,        BERT_H),
        ("benc",     BERT_H,        HID),
        ("pte_wx",   HID,           HID),
        ("pte_ws",   STYLE,         HID),
        ("wih_h",    HID,           8 * HID_HALF),
        ("wih_s",    STYLE,         8 * HID_HALF),
        ("whh",      2 * HID_HALF,  8 * HID_HALF),   # block-diagonal fwd|bwd recurrence
        ("dur",      HID,           MAX_DUR),
        ("conv",     CONV_K * HID,  HID),
        ("f0n_enh",  HID,           HID),
        ("f0n_ens",  STYLE,         HID),
        ("f0n_s",    STYLE,         HID),
        ("f0n_proj", HID,           2),
        ("dec_asr",  HID,           HID),
        ("dec_ac",   STYLE,         HID),
        ("dec_out",  HID,           UPSAMPLE),
    ]
    layout, off = {}, 0
    for name, r, c in entries:
        layout[name] = (off, r, c)
        off += r
    return layout, off


_W_LAYOUT, _W_ROWS = _build_w_layout()     # _W_ROWS = 1120 (multiple of 16 -> bf16 tile aligned)

_B_ENTRIES = [
    ("bffn_b", BERT_H), ("benc_b", HID), ("pte_b", HID), ("lstm_b", 8 * HID_HALF),
    ("dur_b", MAX_DUR), ("conv_b", HID), ("f0n_pre_b", HID), ("f0n_proj_b", 2),
    ("dec_pre_b", HID), ("dec_out_b", UPSAMPLE), ("dec_w_f0", HID), ("dec_w_n", HID),
]
_B_LAYOUT = {name: (i, c) for i, (name, c) in enumerate(_B_ENTRIES)}
_B_ROWS = 16


# =============================== the single fused kernel ===============================

def _kmodel_kernel(emb_ref, temb_ref, mask_ref, s_ref, ac_ref, speed_ref,
                   w_ref, b_ref, audio_ref, usl_ref):
    """Whole forward_with_tokens for one batch element (grid=(B,), 'parallel')."""
    Hh = HID_HALF

    def W(name):                         # static slice of the bf16 weight slab
        off, r, c = _W_LAYOUT[name]
        return w_ref[off:off + r, 0:c]

    def Bvec(name):                      # static slice of the f32 bias slab -> (1, c) row
        row, c = _B_LAYOUT[name]
        return b_ref[row:row + 1, 0:c]

    def mm(x, name):                     # bf16 MXU matmul, f32 accumulation
        return jnp.dot(x.astype(_BF16), W(name), preferred_element_type=_F32)

    mask = mask_ref[...]                                   # (T, 1) attention mask
    s_bf = s_ref[...].astype(_BF16)                        # (1, STYLE) style half of ref_s
    ac_bf = ac_ref[...].astype(_BF16)                      # (1, STYLE) acoustic half

    # --------------------------- token-rate stage ---------------------------
    # bert(input_ids, attention_mask) + bert_encoder
    # TODO(synk): full ALBERT transformer stack not translated; stand-in is one fused FFN.
    b1 = jnp.tanh(mm(emb_ref[...], "bffn") + Bvec("bffn_b")) * mask          # (T, BERT_H)
    d_en = mm(b1, "benc") + Bvec("benc_b")                                    # (T, HID)

    # predictor.text_encoder(d_en, s, ...)
    # TODO(synk): real DurationEncoder = LSTM + AdaLayerNorm stack; stand-in is one
    # style-conditioned linear (style weights split -> no [T,STYLE] broadcast).
    s_te = jnp.dot(s_bf, W("pte_ws"), preferred_element_type=_F32)            # (1, HID)
    h_tok = jnp.tanh(mm(d_en, "pte_wx") + s_te + Bvec("pte_b")) * mask        # (T, HID)

    # predictor.lstm(d): bidirectional, fwd+bwd input projection fused (128 lanes),
    # fwd+bwd recurrence merged into one matmul/step against a block-diagonal W_hh.
    s_ih = jnp.dot(s_bf, W("wih_s"), preferred_element_type=_F32)             # (1, 8*Hh)
    gx = mm(h_tok, "wih_h") + s_ih + Bvec("lstm_b")                           # (T, 8*Hh)
    whh = W("whh")                                                            # (2*Hh, 8*Hh) bf16

    h_f = jnp.zeros((1, Hh), _F32)
    c_f = jnp.zeros((1, Hh), _F32)
    h_b = jnp.zeros((1, Hh), _F32)
    c_b = jnp.zeros((1, Hh), _F32)
    hf_list, hb_list = [], []
    for t in range(T_SEQ):               # static unroll; state + outputs stay in vregs
        tb = T_SEQ - 1 - t
        g = (jnp.concatenate([gx[t:t + 1, 0:4 * Hh], gx[tb:tb + 1, 4 * Hh:8 * Hh]], axis=1)
             + jnp.dot(jnp.concatenate([h_f, h_b], axis=1).astype(_BF16), whh,
                       preferred_element_type=_F32))                          # (1, 8*Hh)
        sg = jax.nn.sigmoid(g)           # one wide sigmoid over all 128 gate lanes
        gg_f = jnp.tanh(g[:, 2 * Hh:3 * Hh])
        gg_b = jnp.tanh(g[:, 6 * Hh:7 * Hh])
        c_f = sg[:, 1 * Hh:2 * Hh] * c_f + sg[:, 0 * Hh:1 * Hh] * gg_f
        c_b = sg[:, 5 * Hh:6 * Hh] * c_b + sg[:, 4 * Hh:5 * Hh] * gg_b
        h_f = sg[:, 3 * Hh:4 * Hh] * jnp.tanh(c_f)
        h_b = sg[:, 7 * Hh:8 * Hh] * jnp.tanh(c_b)
        hf_list.append(h_f)
        hb_list.append(h_b)              # time index T-1-t
    hs = jnp.concatenate(
        [jnp.concatenate(hf_list, axis=0),
         jnp.concatenate(hb_list[::-1], axis=0)], axis=1)                     # (T, 2*Hh)

    # duration = round(sigmoid(duration_proj(x)).sum(-1) * mask / speed)
    logits = mm(hs, "dur") + Bvec("dur_b")                                    # (T, MAX_DUR)
    dur_col = jnp.round(jnp.sum(jax.nn.sigmoid(logits), axis=-1, keepdims=True)
                        * mask / speed_ref[0, 0])                             # (T, 1)
    # per-token durations as a (1, T) row (tiny lane concat; no transpose primitive needed)
    dur_row = jnp.concatenate([dur_col[t:t + 1, 0:1] for t in range(T_SEQ)], axis=1)
    usl = jnp.sum(dur_row, axis=1, keepdims=True)                             # (1,1) pre-clamp sum
    usl_ref[...] = usl                                                        # updated_seq_length

    # clamp(min=1) + cumsum (in-kernel, via a tiny (T,T) triangular matmul) -- matches torch:
    # updated_seq_lengths uses the pre-clamp durations, the alignment uses the clamped ones.
    durc_row = jnp.maximum(dur_row, 1.0)
    rr = jax.lax.broadcasted_iota(jnp.int32, (T_SEQ, T_SEQ), 0)
    cc = jax.lax.broadcasted_iota(jnp.int32, (T_SEQ, T_SEQ), 1)
    tri = (rr <= cc).astype(_F32)
    cs_row = jnp.dot(durc_row, tri, preferred_element_type=_F32)              # inclusive cumsum
    csp_row = cs_row - durc_row                                               # exclusive cumsum
    total_c = cs_row[0:1, T_SEQ - 1:T_SEQ]                                    # (1,1) clamped total

    # text_encoder(input_ids, ...)
    # TODO(synk): real TextEncoder has `depth` CNN blocks + biLSTM; stand-in is one
    # Conv1d(+LeakyReLU) done as 5 per-tap matmuls with in-kernel halo handling.
    xt = temb_ref[...]                                                        # (T, HID)
    pad = CONV_K // 2
    rowi = jax.lax.broadcasted_iota(jnp.int32, (T_SEQ, 1), 0)
    conv_off, _, _ = _W_LAYOUT["conv"]
    acc = jnp.zeros((T_SEQ, HID), _F32)
    for k in range(CONV_K):
        shifted = pltpu.roll(xt, shift=(pad - k) % T_SEQ, axis=0)             # row t -> x[t+k-pad]
        src = rowi + (k - pad)
        valid = jnp.logical_and(src >= 0, src < T_SEQ)
        tap = jnp.where(valid, shifted, 0.0)
        wk_tap = w_ref[conv_off + k * HID:conv_off + (k + 1) * HID, 0:HID]
        acc = acc + jnp.dot(tap.astype(_BF16), wk_tap, preferred_element_type=_F32)
    te = acc + Bvec("conv_b")
    t_en = jnp.where(te > 0, te, 0.2 * te) * mask                             # LeakyReLU(0.2)

    # Pack d's token half and t_en -> one fused alignment BMM below.
    feat = jnp.concatenate([h_tok, t_en], axis=-1)                            # (T, 2*HID)

    # --------------------------- frame-rate stage ---------------------------
    # Alignment target generated on the fly from the duration cumsum (never hits HBM).
    frames_ft = jax.lax.broadcasted_iota(jnp.int32, (MAX_FRAMES, T_SEQ), 0).astype(_F32)
    aln = jnp.where(jnp.logical_and(cs_row > frames_ft, frames_ft >= csp_row), 1.0, 0.0)

    # en|asr fused BMM, kept in f32 (matches the torch reference precision).
    mix = jnp.dot(aln, feat, preferred_element_type=_F32)                     # (F, 2*HID)
    en_h = mix[:, 0:HID]
    asr = mix[:, HID:2 * HID]

    frames_col = jax.lax.broadcasted_iota(jnp.int32, (MAX_FRAMES, 1), 0).astype(_F32)
    frame_mask = jnp.where(frames_col < usl, 1.0, 0.0)       # frames < updated_seq_length
    rowsum = jnp.where(frames_col < total_c, 1.0, 0.0)       # == aln.sum(-1) (0/1)

    # F0_pred, N_pred = predictor.F0Ntrain(en, s, ...)
    # TODO(synk): real F0Ntrain = shared LSTM + AdainResBlk1d stacks with 2x upsample;
    # stand-in is two fused linears (style weights split; computed once per batch step).
    s_ens = jnp.dot(s_bf, W("f0n_ens"), preferred_element_type=_F32)          # (1, HID)
    s_s = jnp.dot(s_bf, W("f0n_s"), preferred_element_type=_F32)              # (1, HID)
    f0n_h = jnp.tanh(mm(en_h, "f0n_enh") + rowsum * s_ens + s_s + Bvec("f0n_pre_b"))
    f0n = mm(f0n_h, "f0n_proj") + Bvec("f0n_proj_b")                          # (F, 2)
    F0 = f0n[:, 0:1] * frame_mask
    Np = f0n[:, 1:2] * frame_mask

    # audio = decoder(asr, F0_pred, N_pred, acoustic, frame_mask)
    # TODO(synk): real decoder is an iSTFTNet/HiFiGAN generator; stand-in is a small MLP
    # producing UPSAMPLE samples per frame, all fused here.
    ac_term = jnp.dot(ac_bf, W("dec_ac"), preferred_element_type=_F32)        # (1, HID)
    asr_m = asr * frame_mask
    dh = (mm(asr_m, "dec_asr") + F0 * Bvec("dec_w_f0") + Np * Bvec("dec_w_n")
          + ac_term + Bvec("dec_pre_b"))
    dh = jnp.where(dh > 0, dh, 0.2 * dh)                                      # LeakyReLU(0.2)
    aud = mm(dh, "dec_out") + Bvec("dec_out_b")                               # (F, UPSAMPLE)
    audio_ref[...] = aud * frame_mask


# =============================== pallas_call wrapper ===============================

def _fused_forward(p, emb, t_emb, mask3, s, ac, speed_arr):
    Bb = emb.shape[0]
    in_specs = [
        pl.BlockSpec((None, T_SEQ, BERT_H), lambda b: (b, 0, 0)),   # bert embeddings
        pl.BlockSpec((None, T_SEQ, HID), lambda b: (b, 0, 0)),      # text-encoder embeddings
        pl.BlockSpec((None, T_SEQ, 1), lambda b: (b, 0, 0)),        # attention mask
        pl.BlockSpec((None, 1, STYLE), lambda b: (b, 0, 0)),        # style vector
        pl.BlockSpec((None, 1, STYLE), lambda b: (b, 0, 0)),        # acoustic vector
        pl.BlockSpec(memory_space=pltpu.MemorySpace.SMEM),          # speed scalar
        pl.BlockSpec((_W_ROWS, 128), lambda b: (0, 0)),             # packed bf16 weight slab
        pl.BlockSpec((_B_ROWS, 128), lambda b: (0, 0)),             # packed f32 bias slab
    ]
    out_shape = (jax.ShapeDtypeStruct((Bb, MAX_FRAMES, UPSAMPLE), _F32),
                 jax.ShapeDtypeStruct((Bb, 1, 1), _F32))
    out_specs = (pl.BlockSpec((None, MAX_FRAMES, UPSAMPLE), lambda b: (b, 0, 0)),
                 pl.BlockSpec((None, 1, 1), lambda b: (b, 0, 0)))
    return pl.pallas_call(
        _kmodel_kernel,
        out_shape=out_shape,
        grid=(Bb,),
        in_specs=in_specs,
        out_specs=out_specs,
        # On v7x the batch axis can be pinned to the two TensorCores (CORE_PARALLEL);
        # plain "parallel" is kept for portability across v5e/v6e/v7x.
        compiler_params=pltpu.CompilerParams(dimension_semantics=("parallel",)),
    )(emb, t_emb, mask3, s, ac, speed_arr, p["wslab"], p["bslab"])


# =============================== parameters ===============================

def init_params(key):
    ks = jax.random.split(key, 20)

    def w(k, shape, scale=0.05):
        return scale * jax.random.normal(k, shape, _F32)

    Hh = HID_HALF
    return {
        "bert_tok_emb": w(ks[0], (N_TOKEN, BERT_H)),
        "bert_pos_emb": w(ks[1], (T_SEQ, BERT_H)),
        "bert_ffn_w": w(ks[2], (BERT_H, BERT_H)), "bert_ffn_b": jnp.zeros((BERT_H,), _F32),
        "bert_enc_w": w(ks[3], (BERT_H, HID)), "bert_enc_b": jnp.zeros((HID,), _F32),
        "pred_te_w": w(ks[4], (HID + STYLE, HID)), "pred_te_b": jnp.zeros((HID,), _F32),
        "lstm_f": {"W_ih": w(ks[5], (HID + STYLE, 4 * Hh)),
                   "W_hh": w(ks[6], (Hh, 4 * Hh)),
                   "b": jnp.zeros((4 * Hh,), _F32)},
        "lstm_b": {"W_ih": w(ks[7], (HID + STYLE, 4 * Hh)),
                   "W_hh": w(ks[8], (Hh, 4 * Hh)),
                   "b": jnp.zeros((4 * Hh,), _F32)},
        "dur_w": w(ks[9], (HID, MAX_DUR)), "dur_b": jnp.zeros((MAX_DUR,), _F32),
        "f0n_pre_w": w(ks[10], (HID + 2 * STYLE, HID)), "f0n_pre_b": jnp.zeros((HID,), _F32),
        "f0n_proj_w": w(ks[11], (HID, 2)), "f0n_proj_b": jnp.zeros((2,), _F32),
        "te_emb": w(ks[12], (N_TOKEN, HID)),
        "te_conv_w": w(ks[13], (CONV_K, HID, HID)), "te_conv_b": jnp.zeros((HID,), _F32),
        "dec_pre_w": w(ks[14], (HID + 2 + STYLE, HID)), "dec_pre_b": jnp.zeros((HID,), _F32),
        "dec_out_w": w(ks[15], (HID, UPSAMPLE)), "dec_out_b": jnp.zeros((UPSAMPLE,), _F32),
    }


def pack_params(p):
    """Torch-layout params -> kernel layout: style weights split out, fwd+bwd LSTM input
    projections concatenated, W_hh packed block-diagonally, conv weight flattened per tap,
    and everything packed into ONE bf16 weight slab + ONE f32 bias slab (2 prologue DMAs)."""
    Hh = HID_HALF
    te_w = p["pred_te_w"]
    f0n_w = p["f0n_pre_w"]
    dec_w = p["dec_pre_w"]
    wih = jnp.concatenate([p["lstm_f"]["W_ih"], p["lstm_b"]["W_ih"]], axis=1)   # (160, 128)
    whh = jnp.zeros((2 * Hh, 8 * Hh), _F32)
    whh = whh.at[0:Hh, 0:4 * Hh].set(p["lstm_f"]["W_hh"])
    whh = whh.at[Hh:2 * Hh, 4 * Hh:8 * Hh].set(p["lstm_b"]["W_hh"])

    wslab = jnp.zeros((_W_ROWS, 128), _F32)
    fills = {
        "bffn": p["bert_ffn_w"], "benc": p["bert_enc_w"],
        "pte_wx": te_w[:HID], "pte_ws": te_w[HID:],
        "wih_h": wih[:HID], "wih_s": wih[HID:],
        "whh": whh,
        "dur": p["dur_w"],
        "conv": p["te_conv_w"].reshape(CONV_K * HID, HID),
        "f0n_enh": f0n_w[:HID], "f0n_ens": f0n_w[HID:HID + STYLE], "f0n_s": f0n_w[HID + STYLE:],
        "f0n_proj": p["f0n_proj_w"],
        "dec_asr": dec_w[:HID], "dec_ac": dec_w[HID + 2:],
        "dec_out": p["dec_out_w"],
    }
    for name, wmat in fills.items():
        off, r, c = _W_LAYOUT[name]
        assert wmat.shape == (r, c), (name, wmat.shape, (r, c))
        wslab = wslab.at[off:off + r, 0:c].set(wmat)
    wslab = wslab.astype(_BF16)

    bslab = jnp.zeros((_B_ROWS, 128), _F32)
    bfills = {
        "bffn_b": p["bert_ffn_b"], "benc_b": p["bert_enc_b"], "pte_b": p["pred_te_b"],
        "lstm_b": jnp.concatenate([p["lstm_f"]["b"], p["lstm_b"]["b"]]),
        "dur_b": p["dur_b"], "conv_b": p["te_conv_b"],
        "f0n_pre_b": p["f0n_pre_b"], "f0n_proj_b": p["f0n_proj_b"],
        "dec_pre_b": p["dec_pre_b"], "dec_out_b": p["dec_out_b"],
        "dec_w_f0": dec_w[HID:HID + 1], "dec_w_n": dec_w[HID + 1:HID + 2],   # elementwise -> f32
    }
    for name, vec in bfills.items():
        row, c = _B_LAYOUT[name]
        vec = vec.reshape(1, -1).astype(_F32)
        assert vec.shape[1] == c, (name, vec.shape, c)
        bslab = bslab.at[row:row + 1, 0:c].set(vec)

    return {"bert_tok_emb": p["bert_tok_emb"], "bert_pos_emb": p["bert_pos_emb"],
            "te_emb": p["te_emb"], "wslab": wslab, "bslab": bslab}


# KModelForONNX.forward(input_ids, ref_s, speed) -> (waveform, frame_lengths)
def kmodel_for_onnx_forward(params, input_ids, ref_s, input_lengths, speed=1.0):
    Bb, T = input_ids.shape
    s = ref_s[:, :, STYLE:]            # style half        [B,1,128]
    acoustic = ref_s[:, :, :STYLE]     # acoustic half     [B,1,128]

    text_pos = jnp.arange(T, dtype=jnp.int32)[None, :]
    attention_mask = (text_pos < input_lengths[:, None]).astype(_F32)      # [B,T]
    mask3 = attention_mask[:, :, None]                                     # [B,T,1]

    # Embedding gathers stay in JAX (cheap, data-dependent).
    emb = jnp.take(params["bert_tok_emb"], input_ids, axis=0) + params["bert_pos_emb"][None, :T, :]
    t_emb = jnp.take(params["te_emb"], input_ids, axis=0)
    speed_arr = jnp.full((1, 1), speed, _F32)

    # ONE fused pallas_call: bert -> bert_encoder -> text_encoder(pred) -> biLSTM -> duration
    # -> cumsum -> alignment BMM -> F0Ntrain -> decoder.
    # TODO(synk): torch uses dynamic max_frames = updated_seq_lengths.max(); JAX needs static
    # shapes, so the static bound MAX_FRAMES = T*MAX_DUR is used + masking.
    audio3, usl3 = _fused_forward(params, emb, t_emb, mask3, s, acoustic, speed_arr)
    audio = audio3.reshape(Bb, MAX_FRAMES * UPSAMPLE)

    updated_seq_lengths = usl3[:, 0, 0]                                    # [B] pre-clamp sum
    frame_lengths = (updated_seq_lengths * (audio.shape[-1] // MAX_FRAMES)).astype(jnp.int32)
    # Per the reference, forward_with_tokens returns (audio, frame_lengths.long()).
    return audio, frame_lengths


# =============================== driver ===============================

if __name__ == "__main__":
    key = jax.random.PRNGKey(0)
    k_ids, k_ref = jax.random.split(key)

    input_ids = jax.random.randint(k_ids, (B, T_SEQ), 1, N_TOKEN, dtype=jnp.int32)
    input_ids = input_ids.at[:, 0].set(0).at[:, -1].set(0)      # BOS/EOS = 0 as in KModel
    ref_s = jax.random.normal(k_ref, (B, 1, 2 * STYLE), _F32)
    input_lengths = jnp.array([T_SEQ, T_SEQ - 2], dtype=jnp.int32)

    params = pack_params(init_params(jax.random.PRNGKey(42)))

    fwd = jax.jit(functools.partial(kmodel_for_onnx_forward, speed=1.0))
    audio, pred_dur = fwd(params, input_ids, ref_s, input_lengths)
    jax.block_until_ready((audio, pred_dur))

    assert audio.shape == (B, MAX_FRAMES * UPSAMPLE) and audio.dtype == jnp.float32
    assert pred_dur.shape == (B,) and pred_dur.dtype == jnp.int32
    print("KERNEL_OK")
</pallas_src>

<mosaic_0001>
module attributes {stable_mosaic.version = 11 : i64} {
  func.func @_kmodel_kernel(%arg0: i32, %arg1: memref<1x8x32xf32, #tpu.memory_space<vmem>>, %arg2: memref<1x8x32xf32, #tpu.memory_space<vmem>>, %arg3: memref<1x8x1xf32, #tpu.memory_space<vmem>>, %arg4: memref<1x1x128xf32, #tpu.memory_space<vmem>>, %arg5: memref<1x1x128xf32, #tpu.memory_space<vmem>>, %arg6: memref<1x1xf32, #tpu.memory_space<smem>>, %arg7: memref<1120x128xbf16, #tpu.memory_space<vmem>>, %arg8: memref<16x128xf32, #tpu.memory_space<vmem>>, %arg9: memref<1x64x4xf32, #tpu.memory_space<vmem>>, %arg10: memref<1x1x1xf32, #tpu.memory_space<vmem>>) attributes {dimension_semantics = [#tpu.dimension_semantics<parallel>], iteration_bounds = array<i64: 2>, scalar_prefetch = 0 : i64, scratch_operands = 0 : i64, tpu.core_type = #tpu.core_type<tc>, window_params = [{transform_indices = @transform_0, window_bounds = array<i64: 1, 8, 32>}, {transform_indices = @transform_1, window_bounds = array<i64: 1, 8, 32>}, {transform_indices = @transform_2, window_bounds = array<i64: 1, 8, 1>}, {transform_indices = @transform_3, window_bounds = array<i64: 1, 1, 128>}, {transform_indices = @transform_4, window_bounds = array<i64: 1, 1, 128>}, {transform_indices = @transform_5, window_bounds = array<i64: 1, 1>}, {pipeline_mode = #tpu.pipeline_mode<synchronous>, transform_indices = @transform_6, window_bounds = array<i64: 1120, 128>}, {pipeline_mode = #tpu.pipeline_mode<synchronous>, transform_indices = @transform_7, window_bounds = array<i64: 16, 128>}, {transform_indices = @transform_8, window_bounds = array<i64: 1, 64, 4>}, {transform_indices = @transform_9, window_bounds = array<i64: 1, 1, 1>}]} {
    %c0 = arith.constant 0 : index
    %c0_0 = arith.constant 0 : index
    %c0_1 = arith.constant 0 : index
    %0 = vector.load %arg3[%c0, %c0_0, %c0_1] : memref<1x8x1xf32, #tpu.memory_space<vmem>>, vector<1x8x1xf32>
    %1 = vector.shape_cast %0 : vector<1x8x1xf32> to vector<8x1xf32>
    %c0_2 = arith.constant 0 : index
    %c0_3 = arith.constant 0 : index
    %c0_4 = arith.constant 0 : index
    %2 = vector.load %arg4[%c0_2, %c0_3, %c0_4] : memref<1x1x128xf32, #tpu.memory_space<vmem>>, vector<1x1x128xf32>
    %3 = vector.shape_cast %2 : vector<1x1x128xf32> to vector<1x128xf32>
    %4 = arith.truncf %3 : vector<1x128xf32> to vector<1x128xbf16>
    %c0_5 = arith.constant 0 : index
    %c0_6 = arith.constant 0 : index
    %c0_7 = arith.constant 0 : index
    %5 = vector.load %arg5[%c0_5, %c0_6, %c0_7] : memref<1x1x128xf32, #tpu.memory_space<vmem>>, vector<1x1x128xf32>
    %6 = vector.shape_cast %5 : vector<1x1x128xf32> to vector<1x128xf32>
    %7 = arith.truncf %6 : vector<1x128xf32> to vector<1x128xbf16>
    %c0_8 = arith.constant 0 : index
    %c0_9 = arith.constant 0 : index
    %c0_10 = arith.constant 0 : index
    %8 = vector.load %arg1[%c0_8, %c0_9, %c0_10] : memref<1x8x32xf32, #tpu.memory_space<vmem>>, vector<1x8x32xf32>
    %9 = vector.shape_cast %8 : vector<1x8x32xf32> to vector<8x32xf32>
    %10 = arith.truncf %9 : vector<8x32xf32> to vector<8x32xbf16>
    %c0_11 = arith.constant 0 : index
    %c0_12 = arith.constant 0 : index
    %11 = vector.load %arg7[%c0_11, %c0_12] : memref<1120x128xbf16, #tpu.memory_space<vmem>>, vector<32x32xbf16>
    %cst = arith.constant dense<0.000000e+00> : vector<8x32xf32>
    %12 = tpu.matmul %10, %11, %cst {dimension_numbers = #tpu.dot_dimension_numbers<[1], [0], [0], [1], [0, 0, 1, 1], [], []>} : vector<8x32xbf16>, vector<32x32xbf16>, vector<8x32xf32> -> vector<8x32xf32>
    %c0_13 = arith.constant 0 : index
    %c0_14 = arith.constant 0 : index
    %13 = vector.load %arg8[%c0_13, %c0_14] : memref<16x128xf32, #tpu.memory_space<vmem>>, vector<1x32xf32>
    %14 = vector.broadcast %13 : vector<1x32xf32> to vector<8x32xf32>
    %15 = arith.addf %12, %14 : vector<8x32xf32>
    %16 = math.tanh %15 : vector<8x32xf32>
    %17 = vector.broadcast %1 : vector<8x1xf32> to vector<8x32xf32>
    %18 = arith.mulf %16, %17 : vector<8x32xf32>
    %19 = arith.truncf %18 : vector<8x32xf32> to vector<8x32xbf16>
    %c32 = arith.constant 32 : index
    %c0_15 = arith.constant 0 : index
    %20 = vector.load %arg7[%c32, %c0_15] : memref<1120x128xbf16, #tpu.memory_space<vmem>>, vector<32x32xbf16>
    %cst_16 = arith.constant dense<0.000000e+00> : vector<8x32xf32>
    %21 = tpu.matmul %19, %20, %cst_16 {dimension_numbers = #tpu.dot_dimension_numbers<[1], [0], [0], [1], [0, 0, 1, 1], [], []>} : vector<8x32xbf16>, vector<32x32xbf16>, vector<8x32xf32> -> vector<8x32xf32>
    %c1 = arith.constant 1 : index
    %c0_17 = arith.constant 0 : index
    %22 = vector.load %arg8[%c1, %c0_17] : memref<16x128xf32, #tpu.memory_space<vmem>>, vector<1x32xf32>
    %23 = vector.broadcast %22 : vector<1x32xf32> to vector<8x32xf32>
    %24 = arith.addf %21, %23 : vector<8x32xf32>
    %c96 = arith.constant 96 : index
    %c0_18 = arith.constant 0 : index
    %25 = vector.load %arg7[%c96, %c0_18] : memref<1120x128xbf16, #tpu.memory_space<vmem>>, vector<128x32xbf16>
    %cst_19 = arith.constant dense<0.000000e+00> : vector<1x32xf32>
    %26 = tpu.matmul %4, %25, %cst_19 {dimension_numbers = #tpu.dot_dimension_numbers<[1], [0], [0], [1], [0, 0, 1, 1], [], []>} : vector<1x128xbf16>, vector<128x32xbf16>, vector<1x32xf32> -> vector<1x32xf32>
    %27 = arith.truncf %24 : vector<8x32xf32> to vector<8x32xbf16>
    %c64 = arith.constant 64 : index
    %c0_20 = arith.constant 0 : index
    %28 = vector.load %arg7[%c64, %c0_20] : memref<1120x128xbf16, #tpu.memory_space<vmem>>, vector<32x32xbf16>
    %cst_21 = arith.constant dense<0.000000e+00> : vector<8x32xf32>
    %29 = tpu.matmul %27, %28, %cst_21 {dimension_numbers = #tpu.dot_dimension_numbers<[1], [0], [0], [1], [0, 0, 1, 1], [], []>} : vector<8x32xbf16>, vector<32x32xbf16>, vector<8x32xf32> -> vector<8x32xf32>
    %30 = vector.broadcast %26 : vector<1x32xf32> to vector<8x32xf32>
    %31 = arith.addf %29, %30 : vector<8x32xf32>
    %c2 = arith.constant 2 : index
    %c0_22 = arith.constant 0 : index
    %32 = vector.load %arg8[%c2, %c0_22] : memref<16x128xf32, #tpu.memory_space<vmem>>, vector<1x32xf32>
    %33 = vector.broadcast %32 : vector<1x32xf32> to vector<8x32xf32>
    %34 = arith.addf %31, %33 : vector<8x32xf32>
    %35 = math.tanh %34 : vector<8x32xf32>
    %36 = vector.broadcast %1 : vector<8x1xf32> to vector<8x32xf32>
    %37 = arith.mulf %35, %36 : vector<8x32xf32>
    %c256 = arith.constant 256 : index
    %c0_23 = arith.constant 0 : index
    %38 = vector.load %arg7[%c256, %c0_23] : memref<1120x128xbf16, #tpu.memory_space<vmem>>, vector<128x128xbf16>
    %cst_24 = arith.constant dense<0.000000e+00> : vector<1x128xf32>
    %39 = tpu.matmul %4, %38, %cst_24 {dimension_numbers = #tpu.dot_dimension_numbers<[1], [0], [0], [1], [0, 0, 1, 1], [], []>} : vector<1x128xbf16>, vector<128x128xbf16>, vector<1x128xf32> -> vector<1x128xf32>
    %40 = arith.truncf %37 : vector<8x32xf32> to vector<8x32xbf16>
    %c224 = arith.constant 224 : index
    %c0_25 = arith.constant 0 : index
    %41 = vector.load %arg7[%c224, %c0_25] : memref<1120x128xbf16, #tpu.memory_space<vmem>>, vector<32x128xbf16>
    %cst_26 = arith.constant dense<0.000000e+00> : vector<8x128xf32>
    %42 = tpu.matmul %40, %41, %cst_26 {dimension_numbers = #tpu.dot_dimension_numbers<[1], [0], [0], [1], [0, 0, 1, 1], [], []>} : vector<8x32xbf16>, vector<32x128xbf16>, vector<8x128xf32> -> vector<8x128xf32>
    %43 = vector.broadcast %39 : vector<1x128xf32> to vector<8x128xf32>
    %44 = arith.addf %42, %43 : vector<8x128xf32>
    %c3 = arith.constant 3 : index
    %c0_27 = arith.constant 0 : index
    %45 = vector.load %arg8[%c3, %c0_27] : memref<16x128xf32, #tpu.memory_space<vmem>>, vector<1x128xf32>
    %46 = vector.broadcast %45 : vector<1x128xf32> to vector<8x128xf32>
    %47 = arith.addf %44, %46 : vector<8x128xf32>
    %c384 = arith.constant 384 : index
    %c0_28 = arith.constant 0 : index
    %48 = vector.load %arg7[%c384, %c0_28] : memref<1120x128xbf16, #tpu.memory_space<vmem>>, vector<32x128xbf16>
    %cst_29 = arith.constant 0.000000e+00 : f32
    %49 = vector.broadcast %cst_29 : f32 to vector<1x16xf32>
    %cst_30 = arith.constant 0.000000e+00 : f32
    %50 = vector.broadcast %cst_30 : f32 to vector<1x16xf32>
    %cst_31 = arith.constant 0.000000e+00 : f32
    %51 = vector.broadcast %cst_31 : f32 to vector<1x16xf32>
    %cst_32 = arith.constant 0.000000e+00 : f32
    %52 = vector.broadcast %cst_32 : f32 to vector<1x16xf32>
    %53 = vector.extract_strided_slice %47 {offsets = [0, 0], sizes = [1, 64], strides = [1, 1]} : vector<8x128xf32> to vector<1x64xf32>
    %54 = vector.extract_strided_slice %47 {offsets = [7, 64], sizes = [1, 64], strides = [1, 1]} : vector<8x128xf32> to vector<1x64xf32>
    %55 = tpu.concatenate %53, %54 in 1 : vector<1x64xf32>, vector<1x64xf32> -> vector<1x128xf32>
    %56 = tpu.concatenate %49, %51 in 1 : vector<1x16xf32>, vector<1x16xf32> -> vector<1x32xf32>
    %57 = arith.truncf %56 : vector<1x32xf32> to vector<1x32xbf16>
    %cst_33 = arith.constant dense<0.000000e+00> : vector<1x128xf32>
    %58 = tpu.matmul %57, %48, %cst_33 {dimension_numbers = #tpu.dot_dimension_numbers<[1], [0], [0], [1], [0, 0, 1, 1], [], []>} : vector<1x32xbf16>, vector<32x128xbf16>, vector<1x128xf32> -> vector<1x128xf32>
    %59 = arith.addf %55, %58 : vector<1x128xf32>
    %60 = arith.negf %59 : vector<1x128xf32>
    %61 = math.exp %60 : vector<1x128xf32>
    %cst_34 = arith.constant 1.000000e+00 : f32
    %62 = vector.broadcast %cst_34 : f32 to vector<1x128xf32>
    %63 = arith.addf %62, %61 : vector<1x128xf32>
    %64 = arith.divf %62, %63 : vector<1x128xf32>
    %65 = vector.extract_strided_slice %59 {offsets = [0, 32], sizes = [1, 16], strides = [1, 1]} : vector<1x128xf32> to vector<1x16xf32>
    %66 = math.tanh %65 : vector<1x16xf32>
    %67 = vector.extract_strided_slice %59 {offsets = [0, 96], sizes = [1, 16], strides = [1, 1]} : vector<1x128xf32> to vector<1x16xf32>
    %68 = math.tanh %67 : vector<1x16xf32>
    %69 = vector.extract_strided_slice %64 {offsets = [0, 16], sizes = [1, 16], strides = [1, 1]} : vector<1x128xf32> to vector<1x16xf32>
    %70 = arith.mulf %69, %50 : vector<1x16xf32>
    %71 = vector.extract_strided_slice %64 {offsets = [0, 0], sizes = [1, 16], strides = [1, 1]} : vector<1x128xf32> to vector<1x16xf32>
    %72 = arith.mulf %71, %66 : vector<1x16xf32>
    %73 = arith.addf %70, %72 : vector<1x16xf32>
    %74 = vector.extract_strided_slice %64 {offsets = [0, 80], sizes = [1, 16], strides = [1, 1]} : vector<1x128xf32> to vector<1x16xf32>
    %75 = arith.mulf %74, %52 : vector<1x16xf32>
    %76 = vector.extract_strided_slice %64 {offsets = [0, 64], sizes = [1, 16], strides = [1, 1]} : vector<1x128xf32> to vector<1x16xf32>
    %77 = arith.mulf %76, %68 : vector<1x16xf32>
    %78 = arith.addf %75, %77 : vector<1x16xf32>
    %79 = vector.extract_strided_slice %64 {offsets = [0, 48], sizes = [1, 16], strides = [1, 1]} : vector<1x128xf32> to vector<1x16xf32>
    %80 = math.tanh %73 : vector<1x16xf32>
    %81 = arith.mulf %79, %80 : vector<1x16xf32>
    %82 = vector.extract_strided_slice %64 {offsets = [0, 112], sizes = [1, 16], strides = [1, 1]} : vector<1x128xf32> to vector<1x16xf32>
    %83 = math.tanh %78 : vector<1x16xf32>
    %84 = arith.mulf %82, %83 : vector<1x16xf32>
    %85 = vector.extract_strided_slice %47 {offsets = [1, 0], sizes = [1, 64], strides = [1, 1]} : vector<8x128xf32> to vector<1x64xf32>
    %86 = vector.extract_strided_slice %47 {offsets = [6, 64], sizes = [1, 64], strides = [1, 1]} : vector<8x128xf32> to vector<1x64xf32>
    %87 = tpu.concatenate %85, %86 in 1 : vector<1x64xf32>, vector<1x64xf32> -> vector<1x128xf32>
    %88 = tpu.concatenate %81, %84 in 1 : vector<1x16xf32>, vector<1x16xf32> -> vector<1x32xf32>
    %89 = arith.truncf %88 : vector<1x32xf32> to vector<1x32xbf16>
    %cst_35 = arith.constant dense<0.000000e+00> : vector<1x128xf32>
    %90 = tpu.matmul %89, %48, %cst_35 {dimension_numbers = #tpu.dot_dimension_numbers<[1], [0], [0], [1], [0, 0, 1, 1], [], []>} : vector<1x32xbf16>, vector<32x128xbf16>, vector<1x128xf32> -> vector<1x128xf32>
    %91 = arith.addf %87, %90 : vector<1x128xf32>
    %92 = arith.negf %91 : vector<1x128xf32>
    %93 = math.exp %92 : vector<1x128xf32>
    %cst_36 = arith.constant 1.000000e+00 : f32
    %94 = vector.broadcast %cst_36 : f32 to vector<1x128xf32>
    %95 = arith.addf %94, %93 : vector<1x128xf32>
    %96 = arith.divf %94, %95 : vector<1x128xf32>
    %97 = vector.extract_strided_slice %91 {offsets = [0, 32], sizes = [1, 16], strides = [1, 1]} : vector<1x128xf32> to vector<1x16xf32>
    %98 = math.tanh %97 : vector<1x16xf32>
    %99 = vector.extract_strided_slice %91 {offsets = [0, 96], sizes = [1, 16], strides = [1, 1]} : vector<1x128xf32> to vector<1x16xf32>
    %100 = math.tanh %99 : vector<1x16xf32>
    %101 = vector.extract_strided_slice %96 {offsets = [0, 16], sizes = [1, 16], strides = [1, 1]} : vector<1x128xf32> to vector<1x16xf32>
    %102 = arith.mulf %101, %73 : vector<1x16xf32>
    %103 = vector.extract_strided_slice %96 {offsets = [0, 0], sizes = [1, 16], strides = [1, 1]} : vector<1x128xf32> to vector<1x16xf32>
    %104 = arith.mulf %103, %98 : vector<1x16xf32>
    %105 = arith.addf %102, %104 : vector<1x16xf32>
    %106 = vector.extract_strided_slice %96 {offsets = [0, 80], sizes = [1, 16], strides = [1, 1]} : vector<1x128xf32> to vector<1x16xf32>
    %107 = arith.mulf %106, %78 : vector<1x16xf32>
    %108 = vector.extract_strided_slice %96 {offsets = [0, 64], sizes = [1, 16], strides = [1, 1]} : vector<1x128xf32> to vector<1x16xf32>
    %109 = arith.mulf %108, %100 : vector<1x16xf32>
    %110 = arith.addf %107, %109 : vector<1x16xf32>
    %111 = vector.extract_strided_slice %96 {offsets = [0, 48], sizes = [1, 16], strides = [1, 1]} : vector<1x128xf32> to vector<1x16xf32>
    %112 = math.tanh %105 : vector<1x16xf32>
    %113 = arith.mulf %111, %112 : vector<1x16xf32>
    %114 = vector.extract_strided_slice %96 {offsets = [0, 112], sizes = [1, 16], strides = [1, 1]} : vector<1x128xf32> to vector<1x16xf32>
    %115 = math.tanh %110 : vector<1x16xf32>
    %116 = arith.mulf %114, %115 : vector<1x16xf32>
    %117 = vector.extract_strided_slice %47 {offsets = [2, 0], sizes = [1, 64], strides = [1, 1]} : vector<8x128xf32> to vector<1x64xf32>
    %118 = vector.extract_strided_slice %47 {offsets = [5, 64], sizes = [1, 64], strides = [1, 1]} : vector<8x128xf32> to vector<1x64xf32>
    %119 = tpu.concatenate %117, %118 in 1 : vector<1x64xf32>, vector<1x64xf32> -> vector<1x128xf32>
    %120 = tpu.concatenate %113, %116 in 1 : vector<1x16xf32>, vector<1x16xf32> -> vector<1x32xf32>
    %121 = arith.truncf %120 : vector<1x32xf32> to vector<1x32xbf16>
    %cst_37 = arith.constant dense<0.000000e+00> : vector<1x128xf32>
    %122 = tpu.matmul %121, %48, %cst_37 {dimension_numbers = #tpu.dot_dimension_numbers<[1], [0], [0], [1], [0, 0, 1, 1], [], []>} : vector<1x32xbf16>, vector<32x128xbf16>, vector<1x128xf32> -> vector<1x128xf32>
    %123 = arith.addf %119, %122 : vector<1x128xf32>
    %124 = arith.negf %123 : vector<1x128xf32>
    %125 = math.exp %124 : vector<1x128xf32>
    %cst_38 = arith.constant 1.000000e+00 : f32
    %126 = vector.broadcast %cst_38 : f32 to vector<1x128xf32>
    %127 = arith.addf %126, %125 : vector<1x128xf32>
    %128 = arith.divf %126, %127 : vector<1x128xf32>
    %129 = vector.extract_strided_slice %123 {offsets = [0, 32], sizes = [1, 16], strides = [1, 1]} : vector<1x128xf32> to vector<1x16xf32>
    %130 = math.tanh %129 : vector<1x16xf32>
    %131 = vector.extract_strided_slice %123 {offsets = [0, 96], sizes = [1, 16], strides = [1, 1]} : vector<1x128xf32> to vector<1x16xf32>
    %132 = math.tanh %131 : vector<1x16xf32>
    %133 = vector.extract_strided_slice %128 {offsets = [0, 16], sizes = [1, 16], strides = [1, 1]} : vector<1x128xf32> to vector<1x16xf32>
    %134 = arith.mulf %133, %105 : vector<1x16xf32>
    %135 = vector.extract_strided_slice %128 {offsets = [0, 0], sizes = [1, 16], strides = [1, 1]} : vector<1x128xf32> to vector<1x16xf32>
    %136 = arith.mulf %135, %130 : vector<1x16xf32>
    %137 = arith.addf %134, %136 : vector<1x16xf32>
    %138 = vector.extract_strided_slice %128 {offsets = [0, 80], sizes = [1, 16], strides = [1, 1]} : vector<1x128xf32> to vector<1x16xf32>
    %139 = arith.mulf %138, %110 : vector<1x16xf32>
    %140 = vector.extract_strided_slice %128 {offsets = [0, 64], sizes = [1, 16], strides = [1, 1]} : vector<1x128xf32> to vector<1x16xf32>
    %141 = arith.mulf %140, %132 : vector<1x16xf32>
    %142 = arith.addf %139, %141 : vector<1x16xf32>
    %143 = vector.extract_strided_slice %128 {offsets = [0, 48], sizes = [1, 16], strides = [1, 1]} : vector<1x128xf32> to vector<1x16xf32>
    %144 = math.tanh %137 : vector<1x16xf32>
    %145 = arith.mulf %143, %144 : vector<1x16xf32>
    %146 = vector.extract_strided_slice %128 {offsets = [0, 112], sizes = [1, 16], strides = [1, 1]} : vector<1x128xf32> to vector<1x16xf32>
    %147 = math.tanh %142 : vector<1x16xf32>
    %148 = arith.mulf %146, %147 : vector<1x16xf32>
    %149 = vector.extract_strided_slice %47 {offsets = [3, 0], sizes = [1, 64], strides = [1, 1]} : vector<8x128xf32> to vector<1x64xf32>
    %150 = vector.extract_strided_slice %47 {offsets = [4, 64], sizes = [1, 64], strides = [1, 1]} : vector<8x128xf32> to vector<1x64xf32>
    %151 = tpu.concatenate %149, %150 in 1 : vector<1x64xf32>, vector<1x64xf32> -> vector<1x128xf32>
    %152 = tpu.concatenate %145, %148 in 1 : vector<1x16xf32>, vector<1x16xf32> -> vector<1x32xf32>
    %153 = arith.truncf %152 : vector<1x32xf32> to vector<1x32xbf16>
    %cst_39 = arith.constant dense<0.000000e+00> : vector<1x128xf32>
    %154 = tpu.matmul %153, %48, %cst_39 {dimension_numbers = #tpu.dot_dimension_numbers<[1], [0], [0], [1], [0, 0, 1, 1], [], []>} : vector<1x32xbf16>, vector<32x128xbf16>, vector<1x128xf32> -> vector<1x128xf32>
    %155 = arith.addf %151, %154 : vector<1x128xf32>
    %156 = arith.negf %155 : vector<1x128xf32>
    %157 = math.exp %156 : vector<1x128xf32>
    %cst_40 = arith.constant 1.000000e+00 : f32
    %158 = vector.broadcast %cst_40 : f32 to vector<1x128xf32>
    %159 = arith.addf %158, %157 : vector<1x128xf32>
    %160 = arith.divf %158, %159 : vector<1x128xf32>
    %161 = vector.extract_strided_slice %155 {offsets = [0, 32], sizes = [1, 16], strides = [1, 1]} : vector<1x128xf32> to vector<1x16xf32>
    %162 = math.tanh %161 : vector<1x16xf32>
    %163 = vector.extract_strided_slice %155 {offsets = [0, 96], sizes = [1, 16], strides = [1, 1]} : vector<1x128xf32> to vector<1x16xf32>
    %164 = math.tanh %163 : vector<1x16xf32>
    %165 = vector.extract_strided_slice %160 {offsets = [0, 16], sizes = [1, 16], strides = [1, 1]} : vector<1x128xf32> to vector<1x16xf32>
    %166 = arith.mulf %165, %137 : vector<1x16xf32>
    %167 = vector.extract_strided_slice %160 {offsets = [0, 0], sizes = [1, 16], strides = [1, 1]} : vector<1x128xf32> to vector<1x16xf32>
    %168 = arith.mulf %167, %162 : vector<1x16xf32>
    %169 = arith.addf %166, %168 : vector<1x16xf32>
    %170 = vector.extract_strided_slice %160 {offsets = [0, 80], sizes = [1, 16], strides = [1, 1]} : vector<1x128xf32> to vector<1x16xf32>
    %171 = arith.mulf %170, %142 : vector<1x16xf32>
    %172 = vector.extract_strided_slice %160 {offsets = [0, 64], sizes = [1, 16], strides = [1, 1]} : vector<1x128xf32> to vector<1x16xf32>
    %173 = arith.mulf %172, %164 : vector<1x16xf32>
    %174 = arith.addf %171, %173 : vector<1x16xf32>
    %175 = vector.extract_strided_slice %160 {offsets = [0, 48], sizes = [1, 16], strides = [1, 1]} : vector<1x128xf32> to vector<1x16xf32>
    %176 = math.tanh %169 : vector<1x16xf32>
    %177 = arith.mulf %175, %176 : vector<1x16xf32>
    %178 = vector.extract_strided_slice %160 {offsets = [0, 112], sizes = [1, 16], strides = [1, 1]} : vector<1x128xf32> to vector<1x16xf32>
    %179 = math.tanh %174 : vector<1x16xf32>
    %180 = arith.mulf %178, %179 : vector<1x16xf32>
    %181 = vector.extract_strided_slice %47 {offsets = [4, 0], sizes = [1, 64], strides = [1, 1]} : vector<8x128xf32> to vector<1x64xf32>
    %182 = vector.extract_strided_slice %47 {offsets = [3, 64], sizes = [1, 64], strides = [1, 1]} : vector<8x128xf32> to vector<1x64xf32>
    %183 = tpu.concatenate %181, %182 in 1 : vector<1x64xf32>, vector<1x64xf32> -> vector<1x128xf32>
    %184 = tpu.concatenate %177, %180 in 1 : vector<1x16xf32>, vector<1x16xf32> -> vector<1x32xf32>
    %185 = arith.truncf %184 : vector<1x32xf32> to vector<1x32xbf16>
    %cst_41 = arith.constant dense<0.000000e+00> : vector<1x128xf32>
    %186 = tpu.matmul %185, %48, %cst_41 {dimension_numbers = #tpu.dot_dimension_numbers<[1], [0], [0], [1], [0, 0, 1, 1], [], []>} : vector<1x32xbf16>, vector<32x128xbf16>, vector<1x128xf32> -> vector<1x128xf32>
    %187 = arith.addf %183, %186 : vector<1x128xf32>
    %188 = arith.negf %187 : vector<1x128xf32>
    %189 = math.exp %188 : vector<1x128xf32>
    %cst_42 = arith.constant 1.000000e+00 : f32
    %190 = vector.broadcast %cst_42 : f32 to vector<1x128xf32>
    %191 = arith.addf %190, %189 : vector<1x128xf32>
    %192 = arith.divf %190, %191 : vector<1x128xf32>
    %193 = vector.extract_strided_slice %187 {offsets = [0, 32], sizes = [1, 16], strides = [1, 1]} : vector<1x128xf32> to vector<1x16xf32>
    %194 = math.tanh %193 : vector<1x16xf32>
    %195 = vector.extract_strided_slice %187 {offsets = [0, 96], sizes = [1, 16], strides = [1, 1]} : vector<1x128xf32> to vector<1x16xf32>
    %196 = math.tanh %195 : vector<1x16xf32>
    %197 = vector.extract_strided_slice %192 {offsets = [0, 16], sizes = [1, 16], strides = [1, 1]} : vector<1x128xf32> to vector<1x16xf32>
    %198 = arith.mulf %197, %169 : vector<1x16xf32>
    %199 = vector.extract_strided_slice %192 {offsets = [0, 0], sizes = [1, 16], strides = [1, 1]} : vector<1x128xf32> to vector<1x16xf32>
    %200 = arith.mulf %199, %194 : vector<1x16xf32>
    %201 = arith.addf %198, %200 : vector<1x16xf32>
    %202 = vector.extract_strided_slice %192 {offsets = [0, 80], sizes = [1, 16], strides = [1, 1]} : vector<1x128xf32> to vector<1x16xf32>
    %203 = arith.mulf %202, %174 : vector<1x16xf32>
    %204 = vector.extract_strided_slice %192 {offsets = [0, 64], sizes = [1, 16], strides = [1, 1]} : vector<1x128xf32> to vector<1x16xf32>
    %205 = arith.mulf %204, %196 : vector<1x16xf32>
    %206 = arith.addf %203, %205 : vector<1x16xf32>
    %207 = vector.extract_strided_slice %192 {offsets = [0, 48], sizes = [1, 16], strides = [1, 1]} : vector<1x128xf32> to vector<1x16xf32>
    %208 = math.tanh %201 : vector<1x16xf32>
    %209 = arith.mulf %207, %208 : vector<1x16xf32>
    %210 = vector.extract_strided_slice %192 {offsets = [0, 112], sizes = [1, 16], strides = [1, 1]} : vector<1x128xf32> to vector<1x16xf32>
    %211 = math.tanh %206 : vector<1x16xf32>
    %212 = arith.mulf %210, %211 : vector<1x16xf32>
    %213 = vector.extract_strided_slice %47 {offsets = [5, 0], sizes = [1, 64], strides = [1, 1]} : vector<8x128xf32> to vector<1x64xf32>
    %214 = vector.extract_strided_slice %47 {offsets = [2, 64], sizes = [1, 64], strides = [1, 1]} : vector<8x128xf32> to vector<1x64xf32>
    %215 = tpu.concatenate %213, %214 in 1 : vector<1x64xf32>, vector<1x64xf32> -> vector<1x128xf32>
    %216 = tpu.concatenate %209, %212 in 1 : vector<1x16xf32>, vector<1x16xf32> -> vector<1x32xf32>
    %217 = arith.truncf %216 : vector<1x32xf32> to vector<1x32xbf16>
    %cst_43 = arith.constant dense<0.000000e+00> : vector<1x128xf32>
    %218 = tpu.matmul %217, %48, %cst_43 {dimension_numbers = #tpu.dot_dimension_numbers<[1], [0], [0], [1], [0, 0, 1, 1], [], []>} : vector<1x32xbf16>, vector<32x128xbf16>, vector<1x128xf32> -> vector<1x128xf32>
    %219 = arith.addf %215, %218 : vector<1x128xf32>
    %220 = arith.negf %219 : vector<1x128xf32>
    %221 = math.exp %220 : vector<1x128xf32>
    %cst_44 = arith.constant 1.000000e+00 : f32
    %222 = vector.broadcast %cst_44 : f32 to vector<1x128xf32>
    %223 = arith.addf %222, %221 : vector<1x128xf32>
    %224 = arith.divf %222, %223 : vector<1x128xf32>
    %225 = vector.extract_strided_slice %219 {offsets = [0, 32], sizes = [1, 16], strides = [1, 1]} : vector<1x128xf32> to vector<1x16xf32>
    %226 = math.tanh %225 : vector<1x16xf32>
    %227 = vector.extract_strided_slice %219 {offsets = [0, 96], sizes = [1, 16], strides = [1, 1]} : vector<1x128xf32> to vector<1x16xf32>
    %228 = math.tanh %227 : vector<1x16xf32>
    %229 = vector.extract_strided_slice %224 {offsets = [0, 16], sizes = [1, 16], strides = [1, 1]} : vector<1x128xf32> to vector<1x16xf32>
    %230 = arith.mulf %229, %201 : vector<1x16xf32>
    %231 = vector.extract_strided_slice %224 {offsets = [0, 0], sizes = [1, 16], strides = [1, 1]} : vector<1x128xf32> to vector<1x16xf32>
    %232 = arith.mulf %231, %226 : vector<1x16xf32>
    %233 = arith.addf %230, %232 : vector<1x16xf32>
    %234 = vector.extract_strided_slice %224 {offsets = [0, 80], sizes = [1, 16], strides = [1, 1]} : vector<1x128xf32> to vector<1x16xf32>
    %235 = arith.mulf %234, %206 : vector<1x16xf32>
    %236 = vector.extract_strided_slice %224 {offsets = [0, 64], sizes = [1, 16], strides = [1, 1]} : vector<1x128xf32> to vector<1x16xf32>
    %237 = arith.mulf %236, %228 : vector<1x16xf32>
    %238 = arith.addf %235, %237 : vector<1x16xf32>
    %239 = vector.extract_strided_slice %224 {offsets = [0, 48], sizes = [1, 16], strides = [1, 1]} : vector<1x128xf32> to vector<1x16xf32>
    %240 = math.tanh %233 : vector<1x16xf32>
    %241 = arith.mulf %239, %240 : vector<1x16xf32>
    %242 = vector.extract_strided_slice %224 {offsets = [0, 112], sizes = [1, 16], strides = [1, 1]} : vector<1x128xf32> to vector<1x16xf32>
    %243 = math.tanh %238 : vector<1x16xf32>
    %244 = arith.mulf %242, %243 : vector<1x16xf32>
    %245 = vector.extract_strided_slice %47 {offsets = [6, 0], sizes = [1, 64], strides = [1, 1]} : vector<8x128xf32> to vector<1x64xf32>
    %246 = vector.extract_strided_slice %47 {offsets = [1, 64], sizes = [1, 64], strides = [1, 1]} : vector<8x128xf32> to vector<1x64xf32>
    %247 = tpu.concatenate %245, %246 in 1 : vector<1x64xf32>, vector<1x64xf32> -> vector<1x128xf32>
    %248 = tpu.concatenate %241, %244 in 1 : vector<1x16xf32>, vector<1x16xf32> -> vector<1x32xf32>
    %249 = arith.truncf %248 : vector<1x32xf32> to vector<1x32xbf16>
    %cst_45 = arith.constant dense<0.000000e+00> : vector<1x128xf32>
    %250 = tpu.matmul %249, %48, %cst_45 {dimension_numbers = #tpu.dot_dimension_numbers<[1], [0], [0], [1], [0, 0, 1, 1], [], []>} : vector<1x32xbf16>, vector<32x128xbf16>, vector<1x128xf32> -> vector<1x128xf32>
    %251 = arith.addf %247, %250 : vector<1x128xf32>
    %252 = arith.negf %251 : vector<1x128xf32>
    %253 = math.exp %252 : vector<1x128xf32>
    %cst_46 = arith.constant 1.000000e+00 : f32
    %254 = vector.broadcast %cst_46 : f32 to vector<1x128xf32>
    %255 = arith.addf %254, %253 : vector<1x128xf32>
    %256 = arith.divf %254, %255 : vector<1x128xf32>
    %257 = vector.extract_strided_slice %251 {offsets = [0, 32], sizes = [1, 16], strides = [1, 1]} : vector<1x128xf32> to vector<1x16xf32>
    %258 = math.tanh %257 : vector<1x16xf32>
    %259 = vector.extract_strided_slice %251 {offsets = [0, 96], sizes = [1, 16], strides = [1, 1]} : vector<1x128xf32> to vector<1x16xf32>
    %260 = math.tanh %259 : vector<1x16xf32>
    %261 = vector.extract_strided_slice %256 {offsets = [0, 16], sizes = [1, 16], strides = [1, 1]} : vector<1x128xf32> to vector<1x16xf32>
    %262 = arith.mulf %261, %233 : vector<1x16xf32>
    %263 = vector.extract_strided_slice %256 {offsets = [0, 0], sizes = [1, 16], strides = [1, 1]} : vector<1x128xf32> to vector<1x16xf32>
    %264 = arith.mulf %263, %258 : vector<1x16xf32>
    %265 = arith.addf %262, %264 : vector<1x16xf32>
    %266 = vector.extract_strided_slice %256 {offsets = [0, 80], sizes = [1, 16], strides = [1, 1]} : vector<1x128xf32> to vector<1x16xf32>
    %267 = arith.mulf %266, %238 : vector<1x16xf32>
    %268 = vector.extract_strided_slice %256 {offsets = [0, 64], sizes = [1, 16], strides = [1, 1]} : vector<1x128xf32> to vector<1x16xf32>
    %269 = arith.mulf %268, %260 : vector<1x16xf32>
    %270 = arith.addf %267, %269 : vector<1x16xf32>
    %271 = vector.extract_strided_slice %256 {offsets = [0, 48], sizes = [1, 16], strides = [1, 1]} : vector<1x128xf32> to vector<1x16xf32>
    %272 = math.tanh %265 : vector<1x16xf32>
    %273 = arith.mulf %271, %272 : vector<1x16xf32>
    %274 = vector.extract_strided_slice %256 {offsets = [0, 112], sizes = [1, 16], strides = [1, 1]} : vector<1x128xf32> to vector<1x16xf32>
    %275 = math.tanh %270 : vector<1x16xf32>
    %276 = arith.mulf %274, %275 : vector<1x16xf32>
    %277 = vector.extract_strided_slice %47 {offsets = [7, 0], sizes = [1, 64], strides = [1, 1]} : vector<8x128xf32> to vector<1x64xf32>
    %278 = vector.extract_strided_slice %47 {offsets = [0, 64], sizes = [1, 64], strides = [1, 1]} : vector<8x128xf32> to vector<1x64xf32>
    %279 = tpu.concatenate %277, %278 in 1 : vector<1x64xf32>, vector<1x64xf32> -> vector<1x128xf32>
    %280 = tpu.concatenate %273, %276 in 1 : vector<1x16xf32>, vector<1x16xf32> -> vector<1x32xf32>
    %281 = arith.truncf %280 : vector<1x32xf32> to vector<1x32xbf16>
    %cst_47 = arith.constant dense<0.000000e+00> : vector<1x128xf32>
    %282 = tpu.matmul %281, %48, %cst_47 {dimension_numbers = #tpu.dot_dimension_numbers<[1], [0], [0], [1], [0, 0, 1, 1], [], []>} : vector<1x32xbf16>, vector<32x128xbf16>, vector<1x128xf32> -> vector<1x128xf32>
    %283 = arith.addf %279, %282 : vector<1x128xf32>
    %284 = arith.negf %283 : vector<1x128xf32>
    %285 = math.exp %284 : vector<1x128xf32>
    %cst_48 = arith.constant 1.000000e+00 : f32
    %286 = vector.broadcast %cst_48 : f32 to vector<1x128xf32>
    %287 = arith.addf %286, %285 : vector<1x128xf32>
    %288 = arith.divf %286, %287 : vector<1x128xf32>
    %289 = vector.extract_strided_slice %283 {offsets = [0, 32], sizes = [1, 16], strides = [1, 1]} : vector<1x128xf32> to vector<1x16xf32>
    %290 = math.tanh %289 : vector<1x16xf32>
    %291 = vector.extract_strided_slice %283 {offsets = [0, 96], sizes = [1, 16], strides = [1, 1]} : vector<1x128xf32> to vector<1x16xf32>
    %292 = math.tanh %291 : vector<1x16xf32>
    %293 = vector.extract_strided_slice %288 {offsets = [0, 16], sizes = [1, 16], strides = [1, 1]} : vector<1x128xf32> to vector<1x16xf32>
    %294 = arith.mulf %293, %265 : vector<1x16xf32>
    %295 = vector.extract_strided_slice %288 {offsets = [0, 0], sizes = [1, 16], strides = [1, 1]} : vector<1x128xf32> to vector<1x16xf32>
    %296 = arith.mulf %295, %290 : vector<1x16xf32>
    %297 = arith.addf %294, %296 : vector<1x16xf32>
    %298 = vector.extract_strided_slice %288 {offsets = [0, 80], sizes = [1, 16], strides = [1, 1]} : vector<1x128xf32> to vector<1x16xf32>
    %299 = arith.mulf %298, %270 : vector<1x16xf32>
    %300 = vector.extract_strided_slice %288 {offsets = [0, 64], sizes = [1, 16], strides = [1, 1]} : vector<1x128xf32> to vector<1x16xf32>
    %301 = arith.mulf %300, %292 : vector<1x16xf32>
    %302 = arith.addf %299, %301 : vector<1x16xf32>
    %303 = vector.extract_strided_slice %288 {offsets = [0, 48], sizes = [1, 16], strides = [1, 1]} : vector<1x128xf32> to vector<1x16xf32>
    %304 = math.tanh %297 : vector<1x16xf32>
    %305 = arith.mulf %303, %304 : vector<1x16xf32>
    %306 = vector.extract_strided_slice %288 {offsets = [0, 112], sizes = [1, 16], strides = [1, 1]} : vector<1x128xf32> to vector<1x16xf32>
    %307 = math.tanh %302 : vector<1x16xf32>
    %308 = arith.mulf %306, %307 : vector<1x16xf32>
    %309 = tpu.concatenate %81, %113, %145, %177, %209, %241, %273, %305 in 0 : vector<1x16xf32>, vector<1x16xf32>, vector<1x16xf32>, vector<1x16xf32>, vector<1x16xf32>, vector<1x16xf32>, vector<1x16xf32>, vector<1x16xf32> -> vector<8x16xf32>
    %310 = tpu.concatenate %308, %276, %244, %212, %180, %148, %116, %84 in 0 : vector<1x16xf32>, vector<1x16xf32>, vector<1x16xf32>, vector<1x16xf32>, vector<1x16xf32>, vector<1x16xf32>, vector<1x16xf32>, vector<1x16xf32> -> vector<8x16xf32>
    %311 = tpu.concatenate %309, %310 in 1 : vector<8x16xf32>, vector<8x16xf32> -> vector<8x32xf32>
    %312 = arith.truncf %311 : vector<8x32xf32> to vector<8x32xbf16>
    %c416 = arith.constant 416 : index
    %c0_49 = arith.constant 0 : index
    %313 = vector.load %arg7[%c416, %c0_49] : memref<1120x128xbf16, #tpu.memory_space<vmem>>, vector<32x8xbf16>
    %cst_50 = arith.constant dense<0.000000e+00> : vector<8x8xf32>
    %314 = tpu.matmul %312, %313, %cst_50 {dimension_numbers = #tpu.dot_dimension_numbers<[1], [0], [0], [1], [0, 0, 1, 1], [], []>} : vector<8x32xbf16>, vector<32x8xbf16>, vector<8x8xf32> -> vector<8x8xf32>
    %c4 = arith.constant 4 : index
    %c0_51 = arith.constant 0 : index
    %315 = vector.load %arg8[%c4, %c0_51] : memref<16x128xf32, #tpu.memory_space<vmem>>, vector<1x8xf32>
    %316 = vector.broadcast %315 : vector<1x8xf32> to vector<8x8xf32>
    %317 = arith.addf %314, %316 : vector<8x8xf32>
    %318 = arith.negf %317 : vector<8x8xf32>
    %319 = math.exp %318 : vector<8x8xf32>
    %cst_52 = arith.constant 1.000000e+00 : f32
    %320 = vector.broadcast %cst_52 : f32 to vector<8x8xf32>
    %321 = arith.addf %320, %319 : vector<8x8xf32>
    %322 = arith.divf %320, %321 : vector<8x8xf32>
    %cst_53 = arith.constant dense<0.000000e+00> : vector<8xf32>
    %323 = vector.multi_reduction <add>, %322, %cst_53 [1] : vector<8x8xf32> to vector<8xf32>
    %324 = vector.shape_cast %323 : vector<8xf32> to vector<8x1xf32>
    %325 = arith.mulf %324, %1 : vector<8x1xf32>
    %c0_54 = arith.constant 0 : index
    %c0_55 = arith.constant 0 : index
    %326 = memref.load %arg6[%c0_54, %c0_55] : memref<1x1xf32, #tpu.memory_space<smem>>
    %327 = vector.broadcast %326 : f32 to vector<8x1xf32>
    %328 = arith.divf %325, %327 : vector<8x1xf32>
    %329 = math.roundeven %328 : vector<8x1xf32>
    %330 = vector.extract_strided_slice %329 {offsets = [0, 0], sizes = [1, 1], strides = [1, 1]} : vector<8x1xf32> to vector<1x1xf32>
    %331 = vector.extract_strided_slice %329 {offsets = [1, 0], sizes = [1, 1], strides = [1, 1]} : vector<8x1xf32> to vector<1x1xf32>
    %332 = vector.extract_strided_slice %329 {offsets = [2, 0], sizes = [1, 1], strides = [1, 1]} : vector<8x1xf32> to vector<1x1xf32>
    %333 = vector.extract_strided_slice %329 {offsets = [3, 0], sizes = [1, 1], strides = [1, 1]} : vector<8x1xf32> to vector<1x1xf32>
    %334 = vector.extract_strided_slice %329 {offsets = [4, 0], sizes = [1, 1], strides = [1, 1]} : vector<8x1xf32> to vector<1x1xf32>
    %335 = vector.extract_strided_slice %329 {offsets = [5, 0], sizes = [1, 1], strides = [1, 1]} : vector<8x1xf32> to vector<1x1xf32>
    %336 = vector.extract_strided_slice %329 {offsets = [6, 0], sizes = [1, 1], strides = [1, 1]} : vector<8x1xf32> to vector<1x1xf32>
    %337 = vector.extract_strided_slice %329 {offsets = [7, 0], sizes = [1, 1], strides = [1, 1]} : vector<8x1xf32> to vector<1x1xf32>
    %338 = tpu.concatenate %330, %331, %332, %333, %334, %335, %336, %337 in 1 : vector<1x1xf32>, vector<1x1xf32>, vector<1x1xf32>, vector<1x1xf32>, vector<1x1xf32>, vector<1x1xf32>, vector<1x1xf32>, vector<1x1xf32> -> vector<1x8xf32>
    %cst_56 = arith.constant dense<0.000000e+00> : vector<1xf32>
    %339 = vector.multi_reduction <add>, %338, %cst_56 [1] : vector<1x8xf32> to vector<1xf32>
    %340 = vector.shape_cast %339 : vector<1xf32> to vector<1x1xf32>
    %c0_57 = arith.constant 0 : index
    %c0_58 = arith.constant 0 : index
    %c0_59 = arith.constant 0 : index
    %341 = vector.load %arg10[%c0_57, %c0_58, %c0_59] : memref<1x1x1xf32, #tpu.memory_space<vmem>>, vector<1x1x1xf32>
    %342 = vector.shape_cast %341 : vector<1x1x1xf32> to vector<1x1xf32>
    %343 = vector.shape_cast %340 : vector<1x1xf32> to vector<1x1x1xf32>
    tpu.vector_store %arg10[%c0_57, %c0_58, %c0_59], %343 {strides = array<i32>} : memref<1x1x1xf32, #tpu.memory_space<vmem>>, vector<1x1x1xf32>,
    %cst_60 = arith.constant 1.000000e+00 : f32
    %344 = vector.broadcast %cst_60 : f32 to vector<1x8xf32>
    %345 = arith.maximumf %338, %344 : vector<1x8xf32>
    %346 = tpu.iota {dimensions = array<i32: 0>} : vector<8x8xi32>
    %347 = tpu.iota {dimensions = array<i32: 1>} : vector<8x8xi32>
    %348 = arith.cmpi sle, %346, %347 : vector<8x8xi32>
    %349 = arith.extui %348 : vector<8x8xi1> to vector<8x8xi32>
    %350 = arith.sitofp %349 : vector<8x8xi32> to vector<8x8xf32>
    %cst_61 = arith.constant dense<0.000000e+00> : vector<1x8xf32>
    %351 = tpu.matmul %345, %350, %cst_61 {dimension_numbers = #tpu.dot_dimension_numbers<[1], [0], [0], [1], [0, 0, 1, 1], [], []>} : vector<1x8xf32>, vector<8x8xf32>, vector<1x8xf32> -> vector<1x8xf32>
    %352 = arith.subf %351, %345 : vector<1x8xf32>
    %353 = vector.extract_strided_slice %351 {offsets = [0, 7], sizes = [1, 1], strides = [1, 1]} : vector<1x8xf32> to vector<1x1xf32>
    %c0_62 = arith.constant 0 : index
    %c0_63 = arith.constant 0 : index
    %c0_64 = arith.constant 0 : index
    %354 = vector.load %arg2[%c0_62, %c0_63, %c0_64] : memref<1x8x32xf32, #tpu.memory_space<vmem>>, vector<1x8x32xf32>
    %355 = vector.shape_cast %354 : vector<1x8x32xf32> to vector<8x32xf32>
    %356 = tpu.iota {dimensions = array<i32: 0>} : vector<8x1xi32>
    %cst_65 = arith.constant 0.000000e+00 : f32
    %357 = vector.broadcast %cst_65 : f32 to vector<8x32xf32>
    %c2_i32 = arith.constant 2 : i32
    %358 = tpu.dynamic_rotate %355 by %c2_i32 dim 0 : vector<8x32xf32>, i32 -> vector<8x32xf32>
    %c-2_i32 = arith.constant -2 : i32
    %359 = vector.broadcast %c-2_i32 : i32 to vector<8x1xi32>
    %360 = arith.addi %356, %359 : vector<8x1xi32>
    %c0_i32 = arith.constant 0 : i32
    %361 = vector.broadcast %c0_i32 : i32 to vector<8x1xi32>
    %362 = arith.cmpi sge, %360, %361 : vector<8x1xi32>
    %c8_i32 = arith.constant 8 : i32
    %363 = vector.broadcast %c8_i32 : i32 to vector<8x1xi32>
    %364 = arith.cmpi slt, %360, %363 : vector<8x1xi32>
    %365 = arith.andi %362, %364 : vector<8x1xi1>
    %cst_66 = arith.constant 0.000000e+00 : f32
    %366 = vector.shape_cast %365 : vector<8x1xi1> to vector<8x1xi1>
    %367 = vector.broadcast %366 : vector<8x1xi1> to vector<8x32xi1>
    %368 = vector.broadcast %cst_66 : f32 to vector<8x32xf32>
    %369 = arith.select %367, %358, %368 : vector<8x32xi1>, vector<8x32xf32>
    %c448 = arith.constant 448 : index
    %c0_67 = arith.constant 0 : index
    %370 = vector.load %arg7[%c448, %c0_67] : memref<1120x128xbf16, #tpu.memory_space<vmem>>, vector<32x32xbf16>
    %371 = arith.truncf %369 : vector<8x32xf32> to vector<8x32xbf16>
    %cst_68 = arith.constant dense<0.000000e+00> : vector<8x32xf32>
    %372 = tpu.matmul %371, %370, %cst_68 {dimension_numbers = #tpu.dot_dimension_numbers<[1], [0], [0], [1], [0, 0, 1, 1], [], []>} : vector<8x32xbf16>, vector<32x32xbf16>, vector<8x32xf32> -> vector<8x32xf32>
    %373 = arith.addf %357, %372 : vector<8x32xf32>
    %c1_i32 = arith.constant 1 : i32
    %374 = tpu.dynamic_rotate %355 by %c1_i32 dim 0 : vector<8x32xf32>, i32 -> vector<8x32xf32>
    %c-1_i32 = arith.constant -1 : i32
    %375 = vector.broadcast %c-1_i32 : i32 to vector<8x1xi32>
    %376 = arith.addi %356, %375 : vector<8x1xi32>
    %c0_i32_69 = arith.constant 0 : i32
    %377 = vector.broadcast %c0_i32_69 : i32 to vector<8x1xi32>
    %378 = arith.cmpi sge, %376, %377 : vector<8x1xi32>
    %c8_i32_70 = arith.constant 8 : i32
    %379 = vector.broadcast %c8_i32_70 : i32 to vector<8x1xi32>
    %380 = arith.cmpi slt, %376, %379 : vector<8x1xi32>
    %381 = arith.andi %378, %380 : vector<8x1xi1>
    %cst_71 = arith.constant 0.000000e+00 : f32
    %382 = vector.shape_cast %381 : vector<8x1xi1> to vector<8x1xi1>
    %383 = vector.broadcast %382 : vector<8x1xi1> to vector<8x32xi1>
    %384 = vector.broadcast %cst_71 : f32 to vector<8x32xf32>
    %385 = arith.select %383, %374, %384 : vector<8x32xi1>, vector<8x32xf32>
    %c480 = arith.constant 480 : index
    %c0_72 = arith.constant 0 : index
    %386 = vector.load %arg7[%c480, %c0_72] : memref<1120x128xbf16, #tpu.memory_space<vmem>>, vector<32x32xbf16>
    %387 = arith.truncf %385 : vector<8x32xf32> to vector<8x32xbf16>
    %cst_73 = arith.constant dense<0.000000e+00> : vector<8x32xf32>
    %388 = tpu.matmul %387, %386, %cst_73 {dimension_numbers = #tpu.dot_dimension_numbers<[1], [0], [0], [1], [0, 0, 1, 1], [], []>} : vector<8x32xbf16>, vector<32x32xbf16>, vector<8x32xf32> -> vector<8x32xf32>
    %389 = arith.addf %373, %388 : vector<8x32xf32>
    %c0_i32_74 = arith.constant 0 : i32
    %390 = tpu.dynamic_rotate %355 by %c0_i32_74 dim 0 : vector<8x32xf32>, i32 -> vector<8x32xf32>
    %c0_i32_75 = arith.constant 0 : i32
    %391 = vector.broadcast %c0_i32_75 : i32 to vector<8x1xi32>
    %392 = arith.addi %356, %391 : vector<8x1xi32>
    %c0_i32_76 = arith.constant 0 : i32
    %393 = vector.broadcast %c0_i32_76 : i32 to vector<8x1xi32>
    %394 = arith.cmpi sge, %392, %393 : vector<8x1xi32>
    %c8_i32_77 = arith.constant 8 : i32
    %395 = vector.broadcast %c8_i32_77 : i32 to vector<8x1xi32>
    %396 = arith.cmpi slt, %392, %395 : vector<8x1xi32>
    %397 = arith.andi %394, %396 : vector<8x1xi1>
    %cst_78 = arith.constant 0.000000e+00 : f32
    %398 = vector.shape_cast %397 : vector<8x1xi1> to vector<8x1xi1>
    %399 = vector.broadcast %398 : vector<8x1xi1> to vector<8x32xi1>
    %400 = vector.broadcast %cst_78 : f32 to vector<8x32xf32>
    %401 = arith.select %399, %390, %400 : vector<8x32xi1>, vector<8x32xf32>
    %c512 = arith.constant 512 : index
    %c0_79 = arith.constant 0 : index
    %402 = vector.load %arg7[%c512, %c0_79] : memref<1120x128xbf16, #tpu.memory_space<vmem>>, vector<32x32xbf16>
    %403 = arith.truncf %401 : vector<8x32xf32> to vector<8x32xbf16>
    %cst_80 = arith.constant dense<0.000000e+00> : vector<8x32xf32>
    %404 = tpu.matmul %403, %402, %cst_80 {dimension_numbers = #tpu.dot_dimension_numbers<[1], [0], [0], [1], [0, 0, 1, 1], [], []>} : vector<8x32xbf16>, vector<32x32xbf16>, vector<8x32xf32> -> vector<8x32xf32>
    %405 = arith.addf %389, %404 : vector<8x32xf32>
    %c7_i32 = arith.constant 7 : i32
    %406 = tpu.dynamic_rotate %355 by %c7_i32 dim 0 : vector<8x32xf32>, i32 -> vector<8x32xf32>
    %c1_i32_81 = arith.constant 1 : i32
    %407 = vector.broadcast %c1_i32_81 : i32 to vector<8x1xi32>
    %408 = arith.addi %356, %407 : vector<8x1xi32>
    %c0_i32_82 = arith.constant 0 : i32
    %409 = vector.broadcast %c0_i32_82 : i32 to vector<8x1xi32>
    %410 = arith.cmpi sge, %408, %409 : vector<8x1xi32>
    %c8_i32_83 = arith.constant 8 : i32
    %411 = vector.broadcast %c8_i32_83 : i32 to vector<8x1xi32>
    %412 = arith.cmpi slt, %408, %411 : vector<8x1xi32>
    %413 = arith.andi %410, %412 : vector<8x1xi1>
    %cst_84 = arith.constant 0.000000e+00 : f32
    %414 = vector.shape_cast %413 : vector<8x1xi1> to vector<8x1xi1>
    %415 = vector.broadcast %414 : vector<8x1xi1> to vector<8x32xi1>
    %416 = vector.broadcast %cst_84 : f32 to vector<8x32xf32>
    %417 = arith.select %415, %406, %416 : vector<8x32xi1>, vector<8x32xf32>
    %c544 = arith.constant 544 : index
    %c0_85 = arith.constant 0 : index
    %418 = vector.load %arg7[%c544, %c0_85] : memref<1120x128xbf16, #tpu.memory_space<vmem>>, vector<32x32xbf16>
    %419 = arith.truncf %417 : vector<8x32xf32> to vector<8x32xbf16>
    %cst_86 = arith.constant dense<0.000000e+00> : vector<8x32xf32>
    %420 = tpu.matmul %419, %418, %cst_86 {dimension_numbers = #tpu.dot_dimension_numbers<[1], [0], [0], [1], [0, 0, 1, 1], [], []>} : vector<8x32xbf16>, vector<32x32xbf16>, vector<8x32xf32> -> vector<8x32xf32>
    %421 = arith.addf %405, %420 : vector<8x32xf32>
    %c6_i32 = arith.constant 6 : i32
    %422 = tpu.dynamic_rotate %355 by %c6_i32 dim 0 : vector<8x32xf32>, i32 -> vector<8x32xf32>
    %c2_i32_87 = arith.constant 2 : i32
    %423 = vector.broadcast %c2_i32_87 : i32 to vector<8x1xi32>
    %424 = arith.addi %356, %423 : vector<8x1xi32>
    %c0_i32_88 = arith.constant 0 : i32
    %425 = vector.broadcast %c0_i32_88 : i32 to vector<8x1xi32>
    %426 = arith.cmpi sge, %424, %425 : vector<8x1xi32>
    %c8_i32_89 = arith.constant 8 : i32
    %427 = vector.broadcast %c8_i32_89 : i32 to vector<8x1xi32>
    %428 = arith.cmpi slt, %424, %427 : vector<8x1xi32>
    %429 = arith.andi %426, %428 : vector<8x1xi1>
    %cst_90 = arith.constant 0.000000e+00 : f32
    %430 = vector.shape_cast %429 : vector<8x1xi1> to vector<8x1xi1>
    %431 = vector.broadcast %430 : vector<8x1xi1> to vector<8x32xi1>
    %432 = vector.broadcast %cst_90 : f32 to vector<8x32xf32>
    %433 = arith.select %431, %422, %432 : vector<8x32xi1>, vector<8x32xf32>
    %c576 = arith.constant 576 : index
    %c0_91 = arith.constant 0 : index
    %434 = vector.load %arg7[%c576, %c0_91] : memref<1120x128xbf16, #tpu.memory_space<vmem>>, vector<32x32xbf16>
    %435 = arith.truncf %433 : vector<8x32xf32> to vector<8x32xbf16>
    %cst_92 = arith.constant dense<0.000000e+00> : vector<8x32xf32>
    %436 = tpu.matmul %435, %434, %cst_92 {dimension_numbers = #tpu.dot_dimension_numbers<[1], [0], [0], [1], [0, 0, 1, 1], [], []>} : vector<8x32xbf16>, vector<32x32xbf16>, vector<8x32xf32> -> vector<8x32xf32>
    %437 = arith.addf %421, %436 : vector<8x32xf32>
    %c5 = arith.constant 5 : index
    %c0_93 = arith.constant 0 : index
    %438 = vector.load %arg8[%c5, %c0_93] : memref<16x128xf32, #tpu.memory_space<vmem>>, vector<1x32xf32>
    %439 = vector.broadcast %438 : vector<1x32xf32> to vector<8x32xf32>
    %440 = arith.addf %437, %439 : vector<8x32xf32>
    %cst_94 = arith.constant 0.000000e+00 : f32
    %441 = vector.broadcast %cst_94 : f32 to vector<8x32xf32>
    %442 = arith.cmpf ogt, %440, %441 : vector<8x32xf32>
    %cst_95 = arith.constant 2.000000e-01 : f32
    %443 = vector.broadcast %cst_95 : f32 to vector<8x32xf32>
    %444 = arith.mulf %443, %440 : vector<8x32xf32>
    %445 = arith.select %442, %440, %444 : vector<8x32xi1>, vector<8x32xf32>
    %446 = vector.broadcast %1 : vector<8x1xf32> to vector<8x32xf32>
    %447 = arith.mulf %445, %446 : vector<8x32xf32>
    %448 = tpu.concatenate %37, %447 in 1 : vector<8x32xf32>, vector<8x32xf32> -> vector<8x64xf32>
    %449 = tpu.iota {dimensions = array<i32: 0>} : vector<64x8xi32>
    %450 = arith.sitofp %449 : vector<64x8xi32> to vector<64x8xf32>
    %451 = vector.broadcast %351 : vector<1x8xf32> to vector<64x8xf32>
    %452 = arith.cmpf ogt, %451, %450 : vector<64x8xf32>
    %453 = vector.broadcast %352 : vector<1x8xf32> to vector<64x8xf32>
    %454 = arith.cmpf oge, %450, %453 : vector<64x8xf32>
    %455 = arith.andi %452, %454 : vector<64x8xi1>
    %cst_96 = arith.constant 1.000000e+00 : f32
    %cst_97 = arith.constant 0.000000e+00 : f32
    %456 = vector.broadcast %cst_96 : f32 to vector<64x8xf32>
    %457 = vector.broadcast %cst_97 : f32 to vector<64x8xf32>
    %458 = arith.select %455, %456, %457 : vector<64x8xi1>, vector<64x8xf32>
    %cst_98 = arith.constant dense<0.000000e+00> : vector<64x64xf32>
    %459 = tpu.matmul %458, %448, %cst_98 {dimension_numbers = #tpu.dot_dimension_numbers<[1], [0], [0], [1], [0, 0, 1, 1], [], []>} : vector<64x8xf32>, vector<8x64xf32>, vector<64x64xf32> -> vector<64x64xf32>
    %460 = vector.extract_strided_slice %459 {offsets = [0, 0], sizes = [64, 32], strides = [1, 1]} : vector<64x64xf32> to vector<64x32xf32>
    %461 = vector.extract_strided_slice %459 {offsets = [0, 32], sizes = [64, 32], strides = [1, 1]} : vector<64x64xf32> to vector<64x32xf32>
    %462 = tpu.iota {dimensions = array<i32: 0>} : vector<64x1xi32>
    %463 = arith.sitofp %462 : vector<64x1xi32> to vector<64x1xf32>
    %464 = vector.broadcast %340 : vector<1x1xf32> to vector<64x1xf32>
    %465 = arith.cmpf olt, %463, %464 : vector<64x1xf32>
    %cst_99 = arith.constant 1.000000e+00 : f32
    %cst_100 = arith.constant 0.000000e+00 : f32
    %466 = vector.broadcast %cst_99 : f32 to vector<64x1xf32>
    %467 = vector.broadcast %cst_100 : f32 to vector<64x1xf32>
    %468 = arith.select %465, %466, %467 : vector<64x1xi1>, vector<64x1xf32>
    %469 = vector.broadcast %353 : vector<1x1xf32> to vector<64x1xf32>
    %470 = arith.cmpf olt, %463, %469 : vector<64x1xf32>
    %cst_101 = arith.constant 1.000000e+00 : f32
    %cst_102 = arith.constant 0.000000e+00 : f32
    %471 = vector.broadcast %cst_101 : f32 to vector<64x1xf32>
    %472 = vector.broadcast %cst_102 : f32 to vector<64x1xf32>
    %473 = arith.select %470, %471, %472 : vector<64x1xi1>, vector<64x1xf32>
    %c640 = arith.constant 640 : index
    %c0_103 = arith.constant 0 : index
    %474 = vector.load %arg7[%c640, %c0_103] : memref<1120x128xbf16, #tpu.memory_space<vmem>>, vector<128x32xbf16>
    %cst_104 = arith.constant dense<0.000000e+00> : vector<1x32xf32>
    %475 = tpu.matmul %4, %474, %cst_104 {dimension_numbers = #tpu.dot_dimension_numbers<[1], [0], [0], [1], [0, 0, 1, 1], [], []>} : vector<1x128xbf16>, vector<128x32xbf16>, vector<1x32xf32> -> vector<1x32xf32>
    %c768 = arith.constant 768 : index
    %c0_105 = arith.constant 0 : index
    %476 = vector.load %arg7[%c768, %c0_105] : memref<1120x128xbf16, #tpu.memory_space<vmem>>, vector<128x32xbf16>
    %cst_106 = arith.constant dense<0.000000e+00> : vector<1x32xf32>
    %477 = tpu.matmul %4, %476, %cst_106 {dimension_numbers = #tpu.dot_dimension_numbers<[1], [0], [0], [1], [0, 0, 1, 1], [], []>} : vector<1x128xbf16>, vector<128x32xbf16>, vector<1x32xf32> -> vector<1x32xf32>
    %478 = arith.truncf %460 : vector<64x32xf32> to vector<64x32xbf16>
    %c608 = arith.constant 608 : index
    %c0_107 = arith.constant 0 : index
    %479 = vector.load %arg7[%c608, %c0_107] : memref<1120x128xbf16, #tpu.memory_space<vmem>>, vector<32x32xbf16>
    %cst_108 = arith.constant dense<0.000000e+00> : vector<64x32xf32>
    %480 = tpu.matmul %478, %479, %cst_108 {dimension_numbers = #tpu.dot_dimension_numbers<[1], [0], [0], [1], [0, 0, 1, 1], [], []>} : vector<64x32xbf16>, vector<32x32xbf16>, vector<64x32xf32> -> vector<64x32xf32>
    %481 = vector.broadcast %473 : vector<64x1xf32> to vector<64x32xf32>
    %482 = vector.broadcast %475 : vector<1x32xf32> to vector<64x32xf32>
    %483 = arith.mulf %481, %482 : vector<64x32xf32>
    %484 = arith.addf %480, %483 : vector<64x32xf32>
    %485 = vector.broadcast %477 : vector<1x32xf32> to vector<64x32xf32>
    %486 = arith.addf %484, %485 : vector<64x32xf32>
    %c6 = arith.constant 6 : index
    %c0_109 = arith.constant 0 : index
    %487 = vector.load %arg8[%c6, %c0_109] : memref<16x128xf32, #tpu.memory_space<vmem>>, vector<1x32xf32>
    %488 = vector.broadcast %487 : vector<1x32xf32> to vector<64x32xf32>
    %489 = arith.addf %486, %488 : vector<64x32xf32>
    %490 = math.tanh %489 : vector<64x32xf32>
    %491 = arith.truncf %490 : vector<64x32xf32> to vector<64x32xbf16>
    %c896 = arith.constant 896 : index
    %c0_110 = arith.constant 0 : index
    %492 = vector.load %arg7[%c896, %c0_110] : memref<1120x128xbf16, #tpu.memory_space<vmem>>, vector<32x2xbf16>
    %cst_111 = arith.constant dense<0.000000e+00> : vector<64x2xf32>
    %493 = tpu.matmul %491, %492, %cst_111 {dimension_numbers = #tpu.dot_dimension_numbers<[1], [0], [0], [1], [0, 0, 1, 1], [], []>} : vector<64x32xbf16>, vector<32x2xbf16>, vector<64x2xf32> -> vector<64x2xf32>
    %c7 = arith.constant 7 : index
    %c0_112 = arith.constant 0 : index
    %494 = vector.load %arg8[%c7, %c0_112] : memref<16x128xf32, #tpu.memory_space<vmem>>, vector<1x2xf32>
    %495 = vector.broadcast %494 : vector<1x2xf32> to vector<64x2xf32>
    %496 = arith.addf %493, %495 : vector<64x2xf32>
    %497 = vector.extract_strided_slice %496 {offsets = [0, 0], sizes = [64, 1], strides = [1, 1]} : vector<64x2xf32> to vector<64x1xf32>
    %498 = arith.mulf %497, %468 : vector<64x1xf32>
    %499 = vector.extract_strided_slice %496 {offsets = [0, 1], sizes = [64, 1], strides = [1, 1]} : vector<64x2xf32> to vector<64x1xf32>
    %500 = arith.mulf %499, %468 : vector<64x1xf32>
    %c960 = arith.constant 960 : index
    %c0_113 = arith.constant 0 : index
    %501 = vector.load %arg7[%c960, %c0_113] : memref<1120x128xbf16, #tpu.memory_space<vmem>>, vector<128x32xbf16>
    %cst_114 = arith.constant dense<0.000000e+00> : vector<1x32xf32>
    %502 = tpu.matmul %7, %501, %cst_114 {dimension_numbers = #tpu.dot_dimension_numbers<[1], [0], [0], [1], [0, 0, 1, 1], [], []>} : vector<1x128xbf16>, vector<128x32xbf16>, vector<1x32xf32> -> vector<1x32xf32>
    %503 = vector.broadcast %468 : vector<64x1xf32> to vector<64x32xf32>
    %504 = arith.mulf %461, %503 : vector<64x32xf32>
    %505 = arith.truncf %504 : vector<64x32xf32> to vector<64x32xbf16>
    %c928 = arith.constant 928 : index
    %c0_115 = arith.constant 0 : index
    %506 = vector.load %arg7[%c928, %c0_115] : memref<1120x128xbf16, #tpu.memory_space<vmem>>, vector<32x32xbf16>
    %cst_116 = arith.constant dense<0.000000e+00> : vector<64x32xf32>
    %507 = tpu.matmul %505, %506, %cst_116 {dimension_numbers = #tpu.dot_dimension_numbers<[1], [0], [0], [1], [0, 0, 1, 1], [], []>} : vector<64x32xbf16>, vector<32x32xbf16>, vector<64x32xf32> -> vector<64x32xf32>
    %c10 = arith.constant 10 : index
    %c0_117 = arith.constant 0 : index
    %508 = vector.load %arg8[%c10, %c0_117] : memref<16x128xf32, #tpu.memory_space<vmem>>, vector<1x32xf32>
    %509 = vector.broadcast %498 : vector<64x1xf32> to vector<64x32xf32>
    %510 = vector.broadcast %508 : vector<1x32xf32> to vector<64x32xf32>
    %511 = arith.mulf %509, %510 : vector<64x32xf32>
    %512 = arith.addf %507, %511 : vector<64x32xf32>
    %c11 = arith.constant 11 : index
    %c0_118 = arith.constant 0 : index
    %513 = vector.load %arg8[%c11, %c0_118] : memref<16x128xf32, #tpu.memory_space<vmem>>, vector<1x32xf32>
    %514 = vector.broadcast %500 : vector<64x1xf32> to vector<64x32xf32>
    %515 = vector.broadcast %513 : vector<1x32xf32> to vector<64x32xf32>
    %516 = arith.mulf %514, %515 : vector<64x32xf32>
    %517 = arith.addf %512, %516 : vector<64x32xf32>
    %518 = vector.broadcast %502 : vector<1x32xf32> to vector<64x32xf32>
    %519 = arith.addf %517, %518 : vector<64x32xf32>
    %c8 = arith.constant 8 : index
    %c0_119 = arith.constant 0 : index
    %520 = vector.load %arg8[%c8, %c0_119] : memref<16x128xf32, #tpu.memory_space<vmem>>, vector<1x32xf32>
    %521 = vector.broadcast %520 : vector<1x32xf32> to vector<64x32xf32>
    %522 = arith.addf %519, %521 : vector<64x32xf32>
    %cst_120 = arith.constant 0.000000e+00 : f32
    %523 = vector.broadcast %cst_120 : f32 to vector<64x32xf32>
    %524 = arith.cmpf ogt, %522, %523 : vector<64x32xf32>
    %cst_121 = arith.constant 2.000000e-01 : f32
    %525 = vector.broadcast %cst_121 : f32 to vector<64x32xf32>
    %526 = arith.mulf %525, %522 : vector<64x32xf32>
    %527 = arith.select %524, %522, %526 : vector<64x32xi1>, vector<64x32xf32>
    %528 = arith.truncf %527 : vector<64x32xf32> to vector<64x32xbf16>
    %c1088 = arith.constant 1088 : index
    %c0_122 = arith.constant 0 : index
    %529 = vector.load %arg7[%c1088, %c0_122] : memref<1120x128xbf16, #tpu.memory_space<vmem>>, vector<32x4xbf16>
    %cst_123 = arith.constant dense<0.000000e+00> : vector<64x4xf32>
    %530 = tpu.matmul %528, %529, %cst_123 {dimension_numbers = #tpu.dot_dimension_numbers<[1], [0], [0], [1], [0, 0, 1, 1], [], []>} : vector<64x32xbf16>, vector<32x4xbf16>, vector<64x4xf32> -> vector<64x4xf32>
    %c9 = arith.constant 9 : index
    %c0_124 = arith.constant 0 : index
    %531 = vector.load %arg8[%c9, %c0_124] : memref<16x128xf32, #tpu.memory_space<vmem>>, vector<1x4xf32>
    %532 = vector.broadcast %531 : vector<1x4xf32> to vector<64x4xf32>
    %533 = arith.addf %530, %532 : vector<64x4xf32>
    %534 = vector.broadcast %468 : vector<64x1xf32> to vector<64x4xf32>
    %535 = arith.mulf %533, %534 : vector<64x4xf32>
    %c0_125 = arith.constant 0 : index
    %c0_126 = arith.constant 0 : index
    %c0_127 = arith.constant 0 : index
    %536 = vector.load %arg9[%c0_125, %c0_126, %c0_127] : memref<1x64x4xf32, #tpu.memory_space<vmem>>, vector<1x64x4xf32>
    %537 = vector.shape_cast %536 : vector<1x64x4xf32> to vector<64x4xf32>
    %538 = vector.shape_cast %535 : vector<64x4xf32> to vector<1x64x4xf32>
    tpu.vector_store %arg9[%c0_125, %c0_126, %c0_127], %538 {strides = array<i32>} : memref<1x64x4xf32, #tpu.memory_space<vmem>>, vector<1x64x4xf32>,
    return
  }
  func.func @transform_0(%arg0: i32) -> (i32, i32, i32) {
    %c0_i32 = arith.constant 0 : i32
    %c0_i32_0 = arith.constant 0 : i32
    %c0_i32_1 = arith.constant 0 : i32
    return %arg0, %c0_i32, %c0_i32_0 : i32, i32, i32
  }
  func.func @transform_1(%arg0: i32) -> (i32, i32, i32) {
    %c0_i32 = arith.constant 0 : i32
    %c0_i32_0 = arith.constant 0 : i32
    %c0_i32_1 = arith.constant 0 : i32
    return %arg0, %c0_i32, %c0_i32_0 : i32, i32, i32
  }
  func.func @transform_2(%arg0: i32) -> (i32, i32, i32) {
    %c0_i32 = arith.constant 0 : i32
    %c0_i32_0 = arith.constant 0 : i32
    %c0_i32_1 = arith.constant 0 : i32
    return %arg0, %c0_i32, %c0_i32_0 : i32, i32, i32
  }
  func.func @transform_3(%arg0: i32) -> (i32, i32, i32) {
    %c0_i32 = arith.constant 0 : i32
    %c0_i32_0 = arith.constant 0 : i32
    %c0_i32_1 = arith.constant 0 : i32
    return %arg0, %c0_i32, %c0_i32_0 : i32, i32, i32
  }
  func.func @transform_4(%arg0: i32) -> (i32, i32, i32) {
    %c0_i32 = arith.constant 0 : i32
    %c0_i32_0 = arith.constant 0 : i32
    %c0_i32_1 = arith.constant 0 : i32
    return %arg0, %c0_i32, %c0_i32_0 : i32, i32, i32
  }
  func.func @transform_5(%arg0: i32) -> (i32, i32) {
    %c0_i32 = arith.constant 0 : i32
    %c0_i32_0 = arith.constant 0 : i32
    %c0_i32_1 = arith.constant 0 : i32
    return %c0_i32, %c0_i32_0 : i32, i32
  }
  func.func @transform_6(%arg0: i32) -> (i32, i32) {
    %c0_i32 = arith.constant 0 : i32
    %c0_i32_0 = arith.constant 0 : i32
    %c0_i32_1 = arith.constant 0 : i32
    return %c0_i32, %c0_i32_0 : i32, i32
  }
  func.func @transform_7(%arg0: i32) -> (i32, i32) {
    %c0_i32 = arith.constant 0 : i32
    %c0_i32_0 = arith.constant 0 : i32
    %c0_i32_1 = arith.constant 0 : i32
    return %c0_i32, %c0_i32_0 : i32, i32
  }
  func.func @transform_8(%arg0: i32) -> (i32, i32, i32) {
    %c0_i32 = arith.constant 0 : i32
    %c0_i32_0 = arith.constant 0 : i32
    %c0_i32_1 = arith.constant 0 : i32
    return %arg0, %c0_i32, %c0_i32_0 : i32, i32, i32
  }
  func.func @transform_9(%arg0: i32) -> (i32, i32, i32) {
    %c0_i32 = arith.constant 0 : i32
    %c0_i32_0 = arith.constant 0 : i32
    %c0_i32_1 = arith.constant 0 : i32
    return %arg0, %c0_i32, %c0_i32_0 : i32, i32, i32
  }
}

</mosaic_0001>

<llo_original>
// kernel: kmodel_for_onnx_forward.1
$region0: #{kmodel_for_onnx_forward.1}
  #allocation0 [shape = 'u32[]', space=smem, size = 0x4, offset = 0x4, fixed_abs, tag = 'smem constant byte address 0x4 - core index']
  #allocation1 [shape = 'u32[72,128]{1,0:T(1,128)}', space=vmem, size = 0x9000, scoped, tag = 'internal scratch']
  #allocation2 [shape = 'f32[1,1]{1,0:T(1,128)S(6)}', space=smem, size = 0x200, scoped, tag = 'scoped memory for kmodel_for_onnx_forward.1']
  %s0 = inlined_call_operand.vmem [shape: f32[2,8,32], index: 0, kind: input, shape index: {}]
  %s1 = inlined_call_operand.vmem [shape: f32[2,8,32], index: 1, kind: input, shape index: {}]
  %s2 = inlined_call_operand.vmem [shape: f32[2,8,1], index: 2, kind: input, shape index: {}]
  %s3 = inlined_call_operand.vmem [shape: f32[2,1,128], index: 3, kind: input, shape index: {}]
  %s4 = inlined_call_operand.vmem [shape: f32[2,1,128], index: 4, kind: input, shape index: {}]
  %s5 = inlined_call_operand.<no memory space> [shape: f32[1,1], index: 5, kind: input, shape index: {}]
  %s6 = inlined_call_operand.hbm [shape: bf16[1120,128], index: 6, kind: input, shape index: {}]
  %s7 = inlined_call_operand.vmem [shape: f32[16,128], index: 7, kind: input, shape index: {}]
  %s8 = inlined_call_operand.vmem [shape: f32[2,64,4], index: 8, kind: output, shape index: {0}]
  %s9 = inlined_call_operand.vmem [shape: f32[2,1,1], index: 9, kind: output, shape index: {1}]
  %10 = xla_tuple %s8, %s9
  %s11 = sld [smem:[#allocation0]]
  $region77: #{kmodel_for_onnx_forward.1} parent=0
    _
  %s13 = ssub.s32 1, %s11
  %s14 = scalar_select 0, %s13, %s11
  %15 = sst [smem:[#allocation2]] %s5
  $region1: #{kmodel_for_onnx_forward.1} parent=0
    #allocation3 [shape = 'u8[286720]{0}', space=vmem, size = 0x46000, scoped, tag = 'input window, operand 6, single buffered']
    #allocation4 [shape = 's32[2]{0}', space=sflag, size = 0x8, scoped, tag = 'scoped memory for kmodel_for_onnx_forward.1']
    %16 = vsyncpa [#allocation4], 0
    loop: start=0, step=1, limit=4
    $region2: #{kmodel_for_onnx_forward.1} parent=1 // loop_pre_header
      _
    $region3: #{kmodel_for_onnx_forward.1} parent=1 // loop_header
      %s18 = sphi 0, %s22
      %p19 = scmp.ge.s32.totalorder %s18, 4
      %s28 = sphi 0, %s30
      %s31 = sphi 0, %s28
      %s32 = sphi 0, %s31
      %s48 = sphi 0, %s32
      %s54 = sphi 0, %s56
      %s57 = sphi 0, %s54
      %s58 = sphi 0, %s57
      %s74 = sphi 0, %s58
      %s80 = sphi 0, %s82
      %s83 = sphi 0, %s80
      %s84 = sphi 0, %s83
      %s100 = sphi 0, %s84
      %s106 = sphi 0, %s108
      %s109 = sphi 0, %s106
      %s110 = sphi 0, %s109
      %s126 = sphi 0, %s110
      %s132 = sphi 0, %s134
      %s135 = sphi 0, %s132
      %s136 = sphi 0, %s135
      %s152 = sphi 0, %s136
      %s156 = sphi 0, %s156
      %s158 = sphi 0, %s156
      %s159 = sphi 0, %s158
      %s173 = sphi 0, %s159
      %s177 = sphi 0, %s177
      %s179 = sphi 0, %s177
      %s180 = sphi 0, %s179
      %s194 = sphi 0, %s180
      %s198 = sphi 0, %s198
      %s200 = sphi 0, %s198
      %s201 = sphi 0, %s200
      %s215 = sphi 0, %s201
      %s221 = sphi 0, %s223
      %s224 = sphi 0, %s221
      %s225 = sphi 0, %s224
      %s241 = sphi 0, %s225
      %s247 = sphi 0, %s249
      %s250 = sphi 0, %s247
      %s251 = sphi 0, %s250
      %s267 = sphi 0, %s251
    $region4: #{kmodel_for_onnx_forward.1} parent=1 // loop_header_branch
      %21 = sbr.rel (%p19) target = $region8
    $region5: #{kmodel_for_onnx_forward.1} parent=1 // loop_body
      %s23 = ssub.s32 %s18, 1
      %s24 = ssub.s32 %s18, 2
      %s25 = sadd.s32 %s18, 1
      %s26 = ssub.s32 %s18, %s25
      %p27 = scmp.eq.s32.totalorder %s26, 0
      %s29 = sadd.s32 %s28, 1
      %s30 = scalar_select %p27, %s28, %s29
      %p33 = pneg %p27
      %p34 = scmp.eq.s32.totalorder %s18, 1
      %p35 = por %p33, %p34
      %p36 = scmp.ne.s32.totalorder %s28, %s31
      %p37 = scmp.eq.s32.totalorder %s18, 0
      %p38 = por %p36, %p37
      %p39 = scmp.ne.s32.totalorder %s28, %s31
      %p40 = scmp.eq.s32.totalorder %s23, 1
      %p41 = por %p39, %p40
      %p42 = scmp.ne.s32.totalorder %s31, %s32
      %p43 = scmp.eq.s32.totalorder %s23, 0
      %p44 = por %p42, %p43
      %p45 = scmp.ne.s32.totalorder %s31, %s32
      %p46 = scmp.eq.s32.totalorder %s24, 1
      %p47 = por %p45, %p46
      %p49 = scmp.ne.s32.totalorder %s32, %s48
      %p50 = scmp.eq.s32.totalorder %s24, 0
      %p51 = por %p49, %p50
      %s52 = ssub.s32 %s18, %s25
      %p53 = scmp.eq.s32.totalorder %s52, 0
      %s55 = sadd.s32 %s54, 1
      %s56 = scalar_select %p53, %s54, %s55
      %p59 = pneg %p53
      %p60 = scmp.eq.s32.totalorder %s18, 1
      %p61 = por %p59, %p60
      %p62 = scmp.ne.s32.totalorder %s54, %s57
      %p63 = scmp.eq.s32.totalorder %s18, 0
      %p64 = por %p62, %p63
      %p65 = scmp.ne.s32.totalorder %s54, %s57
      %p66 = scmp.eq.s32.totalorder %s23, 1
      %p67 = por %p65, %p66
      %p68 = scmp.ne.s32.totalorder %s57, %s58
      %p69 = scmp.eq.s32.totalorder %s23, 0
      %p70 = por %p68, %p69
      %p71 = scmp.ne.s32.totalorder %s57, %s58
      %p72 = scmp.eq.s32.totalorder %s24, 1
      %p73 = por %p71, %p72
      %p75 = scmp.ne.s32.totalorder %s58, %s74
      %p76 = scmp.eq.s32.totalorder %s24, 0
      %p77 = por %p75, %p76
      %s78 = ssub.s32 %s18, %s25
      %p79 = scmp.eq.s32.totalorder %s78, 0
      %s81 = sadd.s32 %s80, 1
      %s82 = scalar_select %p79, %s80, %s81
      %p85 = pneg %p79
      %p86 = scmp.eq.s32.totalorder %s18, 1
      %p87 = por %p85, %p86
      %p88 = scmp.ne.s32.totalorder %s80, %s83
      %p89 = scmp.eq.s32.totalorder %s18, 0
      %p90 = por %p88, %p89
      %p91 = scmp.ne.s32.totalorder %s80, %s83
      %p92 = scmp.eq.s32.totalorder %s23, 1
      %p93 = por %p91, %p92
      %p94 = scmp.ne.s32.totalorder %s83, %s84
      %p95 = scmp.eq.s32.totalorder %s23, 0
      %p96 = por %p94, %p95
      %p97 = scmp.ne.s32.totalorder %s83, %s84
      %p98 = scmp.eq.s32.totalorder %s24, 1
      %p99 = por %p97, %p98
      %p101 = scmp.ne.s32.totalorder %s84, %s100
      %p102 = scmp.eq.s32.totalorder %s24, 0
      %p103 = por %p101, %p102
      %s104 = ssub.s32 %s18, %s25
      %p105 = scmp.eq.s32.totalorder %s104, 0
      %s107 = sadd.s32 %s106, 1
      %s108 = scalar_select %p105, %s106, %s107
      %p111 = pneg %p105
      %p112 = scmp.eq.s32.totalorder %s18, 1
      %p113 = por %p111, %p112
      %p114 = scmp.ne.s32.totalorder %s106, %s109
      %p115 = scmp.eq.s32.totalorder %s18, 0
      %p116 = por %p114, %p115
      %p117 = scmp.ne.s32.totalorder %s106, %s109
      %p118 = scmp.eq.s32.totalorder %s23, 1
      %p119 = por %p117, %p118
      %p120 = scmp.ne.s32.totalorder %s109, %s110
      %p121 = scmp.eq.s32.totalorder %s23, 0
      %p122 = por %p120, %p121
      %p123 = scmp.ne.s32.totalorder %s109, %s110
      %p124 = scmp.eq.s32.totalorder %s24, 1
      %p125 = por %p123, %p124
      %p127 = scmp.ne.s32.totalorder %s110, %s126
      %p128 = scmp.eq.s32.totalorder %s24, 0
      %p129 = por %p127, %p128
      %s130 = ssub.s32 %s18, %s25
      %p131 = scmp.eq.s32.totalorder %s130, 0
      %s133 = sadd.s32 %s132, 1
      %s134 = scalar_select %p131, %s132, %s133
      %p137 = pneg %p131
      %p138 = scmp.eq.s32.totalorder %s18, 1
      %p139 = por %p137, %p138
      %p140 = scmp.ne.s32.totalorder %s132, %s135
      %p141 = scmp.eq.s32.totalorder %s18, 0
      %p142 = por %p140, %p141
      %p143 = scmp.ne.s32.totalorder %s132, %s135
      %p144 = scmp.eq.s32.totalorder %s23, 1
      %p145 = por %p143, %p144
      %p146 = scmp.ne.s32.totalorder %s135, %s136
      %p147 = scmp.eq.s32.totalorder %s23, 0
      %p148 = por %p146, %p147
      %p149 = scmp.ne.s32.totalorder %s135, %s136
      %p150 = scmp.eq.s32.totalorder %s24, 1
      %p151 = por %p149, %p150
      %p153 = scmp.ne.s32.totalorder %s136, %s152
      %p154 = scmp.eq.s32.totalorder %s24, 0
      %p155 = por %p153, %p154
      %s157 = sadd.s32 %s156, 1
      %p160 = scmp.eq.s32.totalorder %s18, 1
      %p161 = scmp.ne.s32.totalorder %s156, %s158
      %p162 = scmp.eq.s32.totalorder %s18, 0
      %p163 = por %p161, %p162
      %p164 = scmp.ne.s32.totalorder %s156, %s158
      %p165 = scmp.eq.s32.totalorder %s23, 1
      %p166 = por %p164, %p165
      %p167 = scmp.ne.s32.totalorder %s158, %s159
      %p168 = scmp.eq.s32.totalorder %s23, 0
      %p169 = por %p167, %p168
      %p170 = scmp.ne.s32.totalorder %s158, %s159
      %p171 = scmp.eq.s32.totalorder %s24, 1
      %p172 = por %p170, %p171
      %p174 = scmp.ne.s32.totalorder %s159, %s173
      %p175 = scmp.eq.s32.totalorder %s24, 0
      %p176 = por %p174, %p175
      %s178 = sadd.s32 %s177, 1
      %p181 = scmp.eq.s32.totalorder %s18, 1
      %p182 = scmp.ne.s32.totalorder %s177, %s179
      %p183 = scmp.eq.s32.totalorder %s18, 0
      %p184 = por %p182, %p183
      %p185 = scmp.ne.s32.totalorder %s177, %s179
      %p186 = scmp.eq.s32.totalorder %s23, 1
      %p187 = por %p185, %p186
      %p188 = scmp.ne.s32.totalorder %s179, %s180
      %p189 = scmp.eq.s32.totalorder %s23, 0
      %p190 = por %p188, %p189
      %p191 = scmp.ne.s32.totalorder %s179, %s180
      %p192 = scmp.eq.s32.totalorder %s24, 1
      %p193 = por %p191, %p192
      %p195 = scmp.ne.s32.totalorder %s180, %s194
      %p196 = scmp.eq.s32.totalorder %s24, 0
      %p197 = por %p195, %p196
      %s199 = sadd.s32 %s198, 1
      %p202 = scmp.eq.s32.totalorder %s18, 1
      %p203 = scmp.ne.s32.totalorder %s198, %s200
      %p204 = scmp.eq.s32.totalorder %s18, 0
      %p205 = por %p203, %p204
      %p206 = scmp.ne.s32.totalorder %s198, %s200
      %p207 = scmp.eq.s32.totalorder %s23, 1
      %p208 = por %p206, %p207
      %p209 = scmp.ne.s32.totalorder %s200, %s201
      %p210 = scmp.eq.s32.totalorder %s23, 0
      %p211 = por %p209, %p210
      %p212 = scmp.ne.s32.totalorder %s200, %s201
      %p213 = scmp.eq.s32.totalorder %s24, 1
      %p214 = por %p212, %p213
      %p216 = scmp.ne.s32.totalorder %s201, %s215
      %p217 = scmp.eq.s32.totalorder %s24, 0
      %p218 = por %p216, %p217
      %s219 = ssub.s32 %s18, %s25
      %p220 = scmp.eq.s32.totalorder %s219, 0
      %s222 = sadd.s32 %s221, 1
      %s223 = scalar_select %p220, %s221, %s222
      %p226 = pneg %p220
      %p227 = scmp.eq.s32.totalorder %s18, 1
      %p228 = por %p226, %p227
      %p229 = scmp.ne.s32.totalorder %s221, %s224
      %p230 = scmp.eq.s32.totalorder %s18, 0
      %p231 = por %p229, %p230
      %p232 = scmp.ne.s32.totalorder %s221, %s224
      %p233 = scmp.eq.s32.totalorder %s23, 1
      %p234 = por %p232, %p233
      %p235 = scmp.ne.s32.totalorder %s224, %s225
      %p236 = scmp.eq.s32.totalorder %s23, 0
      %p237 = por %p235, %p236
      %p238 = scmp.ne.s32.totalorder %s224, %s225
      %p239 = scmp.eq.s32.totalorder %s24, 1
      %p240 = por %p238, %p239
      %p242 = scmp.ne.s32.totalorder %s225, %s241
      %p243 = scmp.eq.s32.totalorder %s24, 0
      %p244 = por %p242, %p243
      %s245 = ssub.s32 %s18, %s25
      %p246 = scmp.eq.s32.totalorder %s245, 0
      %s248 = sadd.s32 %s247, 1
      %s249 = scalar_select %p246, %s247, %s248
      %p252 = pneg %p246
      %p253 = scmp.eq.s32.totalorder %s18, 1
      %p254 = por %p252, %p253
      %p255 = scmp.ne.s32.totalorder %s247, %s250
      %p256 = scmp.eq.s32.totalorder %s18, 0
      %p257 = por %p255, %p256
      %p258 = scmp.ne.s32.totalorder %s247, %s250
      %p259 = scmp.eq.s32.totalorder %s23, 1
      %p260 = por %p258, %p259
      %p261 = scmp.ne.s32.totalorder %s250, %s251
      %p262 = scmp.eq.s32.totalorder %s23, 0
      %p263 = por %p261, %p262
      %p264 = scmp.ne.s32.totalorder %s250, %s251
      %p265 = scmp.eq.s32.totalorder %s24, 1
      %p266 = por %p264, %p265
      %p268 = scmp.ne.s32.totalorder %s251, %s267
      %p269 = scmp.eq.s32.totalorder %s24, 0
      %p270 = por %p268, %p269
      %p271 = scmp.le.s32.totalorder 1, %s18
      %p272 = scmp.lt.s32.totalorder %s18, 3
      %p273 = pnand %p271, %p272
      %p274 = pneg %p273
      // Predicated region
      $region9: #{kmodel_for_onnx_forward.1} parent=5 // pred_check
        _
      $region10: #{kmodel_for_onnx_forward.1} parent=5 // pred_check_branch
        %276 = sbr.rel (%p273) target = $region12
      $region11: #{kmodel_for_onnx_forward.1} parent=5 // pred_region
        %s277 = ssub.s32 %s18, 1
        // Predicated region
        $region13: #{kmodel_for_onnx_forward.1} parent=11 // pred_check
          %p278 = pneg %p169
        $region14: #{kmodel_for_onnx_forward.1} parent=11 // pred_check_branch
          %280 = sbr.rel (%p278) target = $region16
        $region15: #{kmodel_for_onnx_forward.1} parent=11 // pred_region
          _
        $region16: #{kmodel_for_onnx_forward.1} parent=11 // pred_fallthru
          _
        // Predicated region
        $region17: #{kmodel_for_onnx_forward.1} parent=11 // pred_check
          %p281 = pneg %p190
        $region18: #{kmodel_for_onnx_forward.1} parent=11 // pred_check_branch
          %283 = sbr.rel (%p281) target = $region20
        $region19: #{kmodel_for_onnx_forward.1} parent=11 // pred_region
          %285 = vsyncadd [#allocation4], 0
          %s286 = sshll.u32 %s6, 4
          %s287 = int_to_ptr.hbm [resolvable:$true] %s286
          %s288 = sshll.u32 [#allocation3], 4
          %s289 = int_to_ptr.vmem [resolvable:$true] %s288
          %294 = dma.hbm_to_vmem [thread:$0]  %s287, 8960, %s289, [#allocation4], 64, 64, 4
        $region20: #{kmodel_for_onnx_forward.1} parent=11 // pred_fallthru
          _
        // Predicated region
        $region21: #{kmodel_for_onnx_forward.1} parent=11 // pred_check
          %p295 = pneg %p211
        $region22: #{kmodel_for_onnx_forward.1} parent=11 // pred_check_branch
          %297 = sbr.rel (%p295) target = $region24
        $region23: #{kmodel_for_onnx_forward.1} parent=11 // pred_region
          _
        $region24: #{kmodel_for_onnx_forward.1} parent=11 // pred_fallthru
          _
      $region12: #{kmodel_for_onnx_forward.1} parent=5 // pred_fallthru
        _
      %p298 = scmp.lt.s32.totalorder %s18, 2
      // Predicated region
      $region25: #{kmodel_for_onnx_forward.1} parent=5 // pred_check
        %p299 = pneg %p298
      $region26: #{kmodel_for_onnx_forward.1} parent=5 // pred_check_branch
        %301 = sbr.rel (%p299) target = $region28
      $region27: #{kmodel_for_onnx_forward.1} parent=5 // pred_region
        // Predicated region
        $region29: #{kmodel_for_onnx_forward.1} parent=27 // pred_check
          %p302 = pneg %p38
        $region30: #{kmodel_for_onnx_forward.1} parent=27 // pred_check_branch
          %304 = sbr.rel (%p302) target = $region32
        $region31: #{kmodel_for_onnx_forward.1} parent=27 // pred_region
          %p305 = scmp.lt.s32.totalorder %s18, 1
          %s306 = scalar_select %p305, %s18, 1
          %s307 = smul.addr %s306, 8
          %s308 = scalar_lea.vmem %s0, %s307
        $region32: #{kmodel_for_onnx_forward.1} parent=27 // pred_fallthru
          _
        // Predicated region
        $region33: #{kmodel_for_onnx_forward.1} parent=27 // pred_check
          %p309 = pneg %p64
        $region34: #{kmodel_for_onnx_forward.1} parent=27 // pred_check_branch
          %311 = sbr.rel (%p309) target = $region36
        $region35: #{kmodel_for_onnx_forward.1} parent=27 // pred_region
          %p312 = scmp.lt.s32.totalorder %s18, 1
          %s313 = scalar_select %p312, %s18, 1
          %s314 = smul.addr %s313, 8
          %s315 = scalar_lea.vmem %s1, %s314
        $region36: #{kmodel_for_onnx_forward.1} parent=27 // pred_fallthru
          _
        // Predicated region
        $region37: #{kmodel_for_onnx_forward.1} parent=27 // pred_check
          %p316 = pneg %p90
        $region38: #{kmodel_for_onnx_forward.1} parent=27 // pred_check_branch
          %318 = sbr.rel (%p316) target = $region40
        $region39: #{kmodel_for_onnx_forward.1} parent=27 // pred_region
          %p319 = scmp.lt.s32.totalorder %s18, 1
          %s320 = scalar_select %p319, %s18, 1
          %s321 = smul.addr %s320, 8
          %s322 = scalar_lea.vmem %s2, %s321
        $region40: #{kmodel_for_onnx_forward.1} parent=27 // pred_fallthru
          _
        // Predicated region
        $region41: #{kmodel_for_onnx_forward.1} parent=27 // pred_check
          %p323 = pneg %p116
        $region42: #{kmodel_for_onnx_forward.1} parent=27 // pred_check_branch
          %325 = sbr.rel (%p323) target = $region44
        $region43: #{kmodel_for_onnx_forward.1} parent=27 // pred_region
          %p326 = scmp.lt.s32.totalorder %s18, 1
          %s327 = scalar_select %p326, %s18, 1
          %s328 = scalar_lea.vmem %s3, %s327
        $region44: #{kmodel_for_onnx_forward.1} parent=27 // pred_fallthru
          _
        // Predicated region
        $region45: #{kmodel_for_onnx_forward.1} parent=27 // pred_check
          %p329 = pneg %p142
        $region46: #{kmodel_for_onnx_forward.1} parent=27 // pred_check_branch
          %331 = sbr.rel (%p329) target = $region48
        $region47: #{kmodel_for_onnx_forward.1} parent=27 // pred_region
          %p332 = scmp.lt.s32.totalorder %s18, 1
          %s333 = scalar_select %p332, %s18, 1
          %s334 = scalar_lea.vmem %s4, %s333
        $region48: #{kmodel_for_onnx_forward.1} parent=27 // pred_fallthru
          _
      $region28: #{kmodel_for_onnx_forward.1} parent=5 // pred_fallthru
        _
      %p335 = scmp.le.s32.totalorder 1, %s18
      %p336 = scmp.lt.s32.totalorder %s18, 3
      %p337 = pnand %p335, %p336
      %p338 = pneg %p337
      // Predicated region
      $region49: #{kmodel_for_onnx_forward.1} parent=5 // pred_check
        _
      $region50: #{kmodel_for_onnx_forward.1} parent=5 // pred_check_branch
        %340 = sbr.rel (%p337) target = $region52
      $region51: #{kmodel_for_onnx_forward.1} parent=5 // pred_region
        %s341 = ssub.s32 %s18, 1
        // Predicated region
        $region53: #{kmodel_for_onnx_forward.1} parent=51 // pred_check
          %p342 = pneg %p190
        $region54: #{kmodel_for_onnx_forward.1} parent=51 // pred_check_branch
          %344 = sbr.rel (%p342) target = $region56
        $region55: #{kmodel_for_onnx_forward.1} parent=51 // pred_region
          %346 = dma.done [#allocation4], 8960
        $region56: #{kmodel_for_onnx_forward.1} parent=51 // pred_fallthru
          _
        %p347 = scmp.lt.s32.totalorder %s23, 1
        %s348 = scalar_select %p347, %s23, 1
        %s349 = smul.addr %s348, 8
        %s350 = scalar_lea.vmem %s0, %s349
        %p351 = pneg %p44
        %p352 = pneg %p41
        %p353 = scmp.lt.s32.totalorder %s23, 1
        %s354 = scalar_select %p353, %s23, 1
        %s355 = smul.addr %s354, 8
        %s356 = scalar_lea.vmem %s1, %s355
        %p357 = pneg %p70
        %p358 = pneg %p67
        %p359 = scmp.lt.s32.totalorder %s23, 1
        %s360 = scalar_select %p359, %s23, 1
        %s361 = smul.addr %s360, 8
        %s362 = scalar_lea.vmem %s2, %s361
        %p363 = pneg %p96
        %p364 = pneg %p93
        %p365 = scmp.lt.s32.totalorder %s23, 1
        %s366 = scalar_select %p365, %s23, 1
        %s367 = scalar_lea.vmem %s3, %s366
        %p368 = pneg %p122
        %p369 = pneg %p119
        %p370 = scmp.lt.s32.totalorder %s23, 1
        %s371 = scalar_select %p370, %s23, 1
        %s372 = scalar_lea.vmem %s4, %s371
        %p373 = pneg %p148
        %p374 = pneg %p145
        %p375 = pneg %p169
        %p376 = pneg %p166
        %p377 = pneg %p190
        %p378 = pneg %p187
        %p379 = pneg %p211
        %p380 = pneg %p208
        %p381 = pneg %p237
        %p382 = pneg %p234
        %p383 = scmp.lt.s32.totalorder %s23, 1
        %s384 = scalar_select %p383, %s23, 1
        %s385 = smul.addr %s384, 8
        %s386 = smul.addr %s385, 8
        %s387 = scalar_lea.vmem %s8, %s386
        %p388 = pneg %p263
        %p389 = pneg %p260
        %p390 = scmp.lt.s32.totalorder %s23, 1
        %s391 = scalar_select %p390, %s23, 1
        %s392 = scalar_lea.vmem %s9, %s391
        %p393 = scmp.lt.s32.totalorder %s23, 1
        %s394 = scalar_select %p393, %s23, 1
        %s395 = smul.addr %s394, 8
        %s396 = scalar_lea.vmem %s0, %s395
        %p397 = scmp.lt.s32.totalorder %s23, 1
        %s398 = scalar_select %p397, %s23, 1
        %s399 = smul.addr %s398, 8
        %s400 = scalar_lea.vmem %s1, %s399
        %p401 = scmp.lt.s32.totalorder %s23, 1
        %s402 = scalar_select %p401, %s23, 1
        %s403 = smul.addr %s402, 8
        %s404 = scalar_lea.vmem %s2, %s403
        %p405 = scmp.lt.s32.totalorder %s23, 1
        %s406 = scalar_select %p405, %s23, 1
        %s407 = scalar_lea.vmem %s3, %s406
        %p408 = scmp.lt.s32.totalorder %s23, 1
        %s409 = scalar_select %p408, %s23, 1
        %s410 = scalar_lea.vmem %s4, %s409
        %p411 = scmp.lt.s32.totalorder %s23, 1
        %s412 = scalar_select %p411, %s23, 1
        %s413 = smul.addr %s412, 8
        %s414 = smul.addr %s413, 8
        %s415 = scalar_lea.vmem %s8, %s414
        %p416 = scmp.lt.s32.totalorder %s23, 1
        %s417 = scalar_select %p416, %s23, 1
        %s418 = scalar_lea.vmem %s9, %s417
        %v420 = vld [vmem:[%s404] sm:$0xff]
        %v421 = vld [vmem:[%s407] sm:$0x1]
        %v422 = vpack.c.bf16 %v421, %v421
        %v423 = vld [vmem:[%s410] sm:$0x1]
        %v424 = vpack.c.bf16 %v423, %v423
        %v425 = vld [vmem:[%s396] sm:$0xff]
        %v426 = vpack.c.bf16 %v425, %v425
        %v427 = vld [vmem:[#allocation3] sm:$0xf]
        %v428 = vld [vmem:[#allocation3 + $0x4] sm:$0xf]
        %v429 = vld [vmem:[#allocation3 + $0x8] sm:$0xf]
        %v430 = vld [vmem:[#allocation3 + $0xc] sm:$0xf]
        %v431 = vld [vmem:[%s7] sm:$0x1]
        %v432 = vperm.slane %v431, 0
        %v437 = vunpack.c.l.b16 %v427
        %v438 = vunpack.c.l.b16 %v428
        %v439 = vunpack.c.l.b16 %v429
        %v440 = vunpack.c.l.b16 %v430
        %v441 = vpack.c.b16 %v438, %v437
        %v442 = vpack.c.b16 %v440, %v439
        %vm445 = vcmask 261120
        %v447 = vsel %vm445, %v426, 0
        %449 = vmatpush.bf16.msra.mxu0 0
        %450 = vmatpush.bf16.msra.mxu0 0
        %451 = vmatpush.bf16.msra.mxu0 0
        %452 = vmatpush.bf16.msra.mxu0 0
        %453 = vmatpush.bf16.msra.mxu0 0
        %454 = vmatpush.bf16.msra.mxu0 0
        %455 = vmatpush.bf16.msra.mxu0 %v442
        %456 = vmatpush.bf16.msra.mxu0 %v441
        %457 = vmatmul.bf16.gmra.mxu0 %v447
        %v458 = vpop.f32.mrf.mxu0
        %v459 = vadd.f32 %v432, %v458
        %v460 = vpop.f32.mrf.mxu0
        %461 = vdwg.mxu0
        %v462 = vtanh.pop %v459
        %464 = vset.pattern.permute.xlu0 0
        %465 = vperm.xlu0 %464, %v420
        %v466 = vpop.permute.xlu0 %465
        %v468 = vmul.f32 %v462, %v466
        %v469 = vpack.c.bf16 %v468, %v468
        %v470 = vld [vmem:[#allocation3 + $0x10] sm:$0xf]
        %v471 = vld [vmem:[#allocation3 + $0x14] sm:$0xf]
        %v472 = vld [vmem:[#allocation3 + $0x18] sm:$0xf]
        %v473 = vld [vmem:[#allocation3 + $0x1c] sm:$0xf]
        %v474 = vld [vmem:[%s7 + $0x1] sm:$0x1]
        %v475 = vperm.slane %v474, 0
        %v480 = vunpack.c.l.b16 %v470
        %v481 = vunpack.c.l.b16 %v471
        %v482 = vunpack.c.l.b16 %v472
        %v483 = vunpack.c.l.b16 %v473
        %v484 = vpack.c.b16 %v481, %v480
        %v485 = vpack.c.b16 %v483, %v482
        %v489 = vsel %vm445, %v469, 0
        %491 = vmatpush.bf16.msra.mxu0 0
        %492 = vmatpush.bf16.msra.mxu0 0
        %493 = vmatpush.bf16.msra.mxu0 0
        %494 = vmatpush.bf16.msra.mxu0 0
        %495 = vmatpush.bf16.msra.mxu0 0
        %496 = vmatpush.bf16.msra.mxu0 0
        %497 = vmatpush.bf16.msra.mxu0 %v485
        %498 = vmatpush.bf16.msra.mxu0 %v484
        %499 = vmatmul.bf16.gmra.mxu0 %v489
        %v500 = vpop.f32.mrf.mxu0
        %v501 = vadd.f32 %v475, %v500
        %v502 = vpop.f32.mrf.mxu0
        %503 = vdwg.mxu0
        %v504 = vld [vmem:[#allocation3 + $0x30] sm:$0xf]
        %v505 = vld [vmem:[#allocation3 + $0x34] sm:$0xf]
        %v506 = vld [vmem:[#allocation3 + $0x38] sm:$0xf]
        %v507 = vld [vmem:[#allocation3 + $0x3c] sm:$0xf]
        %v508 = vld [vmem:[#allocation3 + $0x40] sm:$0xf]
        %v509 = vld [vmem:[#allocation3 + $0x44] sm:$0xf]
        %v510 = vld [vmem:[#allocation3 + $0x48] sm:$0xf]
        %v511 = vld [vmem:[#allocation3 + $0x4c] sm:$0xf]
        %v512 = vld [vmem:[#allocation3 + $0x50] sm:$0xf]
        %v513 = vld [vmem:[#allocation3 + $0x54] sm:$0xf]
        %v514 = vld [vmem:[#allocation3 + $0x58] sm:$0xf]
        %v515 = vld [vmem:[#allocation3 + $0x5c] sm:$0xf]
        %v516 = vld [vmem:[#allocation3 + $0x60] sm:$0xf]
        %v517 = vld [vmem:[#allocation3 + $0x64] sm:$0xf]
        %v518 = vld [vmem:[#allocation3 + $0x68] sm:$0xf]
        %v519 = vld [vmem:[#allocation3 + $0x6c] sm:$0xf]
        %v536 = vunpack.c.l.b16 %v504
        %v537 = vunpack.c.l.b16 %v505
        %v538 = vunpack.c.l.b16 %v506
        %v539 = vunpack.c.l.b16 %v507
        %v540 = vunpack.c.l.b16 %v508
        %v541 = vunpack.c.l.b16 %v509
        %v542 = vunpack.c.l.b16 %v510
        %v543 = vunpack.c.l.b16 %v511
        %v544 = vunpack.c.l.b16 %v512
        %v545 = vunpack.c.l.b16 %v513
        %v546 = vunpack.c.l.b16 %v514
        %v547 = vunpack.c.l.b16 %v515
        %v548 = vunpack.c.l.b16 %v516
        %v549 = vunpack.c.l.b16 %v517
        %v550 = vunpack.c.l.b16 %v518
        %v551 = vunpack.c.l.b16 %v519
        %v552 = vpack.c.b16 %v537, %v536
        %v553 = vpack.c.b16 %v539, %v538
        %v554 = vpack.c.b16 %v541, %v540
        %v555 = vpack.c.b16 %v543, %v542
        %v556 = vpack.c.b16 %v545, %v544
        %v557 = vpack.c.b16 %v547, %v546
        %v558 = vpack.c.b16 %v549, %v548
        %v559 = vpack.c.b16 %v551, %v550
        %568 = vmatpush.bf16.msra.mxu0 %v559
        %569 = vmatpush.bf16.msra.mxu0 %v558
        %570 = vmatpush.bf16.msra.mxu0 %v557
        %571 = vmatpush.bf16.msra.mxu0 %v556
        %572 = vmatpush.bf16.msra.mxu0 %v555
        %573 = vmatpush.bf16.msra.mxu0 %v554
        %574 = vmatpush.bf16.msra.mxu0 %v553
        %575 = vmatpush.bf16.msra.mxu0 %v552
        %576 = vmatmul.bf16.gmra.mxu0 %v422
        %v577 = vpop.f32.mrf.mxu0
        %v578 = vadd.f32 0.0, %v577
        %v579 = vpop.f32.mrf.mxu0
        %580 = vdwg.mxu0
        %v581 = vpack.c.bf16 %v501, %v501
        %v582 = vld [vmem:[#allocation3 + $0x20] sm:$0xf]
        %v583 = vld [vmem:[#allocation3 + $0x24] sm:$0xf]
        %v584 = vld [vmem:[#allocation3 + $0x28] sm:$0xf]
        %v585 = vld [vmem:[#allocation3 + $0x2c] sm:$0xf]
        %v586 = vperm.slane %v578, 0
        %v591 = vunpack.c.l.b16 %v582
        %v592 = vunpack.c.l.b16 %v583
        %v593 = vunpack.c.l.b16 %v584
        %v594 = vunpack.c.l.b16 %v585
        %v595 = vpack.c.b16 %v592, %v591
        %v596 = vpack.c.b16 %v594, %v593
        %v600 = vsel %vm445, %v581, 0
        %602 = vmatpush.bf16.msra.mxu0 0
        %603 = vmatpush.bf16.msra.mxu0 0
        %604 = vmatpush.bf16.msra.mxu0 0
        %605 = vmatpush.bf16.msra.mxu0 0
        %606 = vmatpush.bf16.msra.mxu0 0
        %607 = vmatpush.bf16.msra.mxu0 0
        %608 = vmatpush.bf16.msra.mxu0 %v596
        %609 = vmatpush.bf16.msra.mxu0 %v595
        %610 = vmatmul.bf16.gmra.mxu0 %v600
        %v611 = vpop.f32.mrf.mxu0
        %v612 = vadd.f32 %v586, %v611
        %v613 = vpop.f32.mrf.mxu0
        %614 = vdwg.mxu0
        %v615 = vld [vmem:[%s7 + $0x2] sm:$0x1]
        %v616 = vperm.slane %v615, 0
        %v617 = vadd.f32 %v612, %v616
        %v618 = vtanh.pop %v617
        %v619 = vmul.f32 %v618, %v466
        %v620 = vld [vmem:[#allocation3 + $0x80] sm:$0xf]
        %v621 = vld [vmem:[#allocation3 + $0x84] sm:$0xf]
        %v622 = vld [vmem:[#allocation3 + $0x88] sm:$0xf]
        %v623 = vld [vmem:[#allocation3 + $0x8c] sm:$0xf]
        %v624 = vld [vmem:[#allocation3 + $0x90] sm:$0xf]
        %v625 = vld [vmem:[#allocation3 + $0x94] sm:$0xf]
        %v626 = vld [vmem:[#allocation3 + $0x98] sm:$0xf]
        %v627 = vld [vmem:[#allocation3 + $0x9c] sm:$0xf]
        %v628 = vld [vmem:[#allocation3 + $0xa0] sm:$0xf]
        %v629 = vld [vmem:[#allocation3 + $0xa4] sm:$0xf]
        %v630 = vld [vmem:[#allocation3 + $0xa8] sm:$0xf]
        %v631 = vld [vmem:[#allocation3 + $0xac] sm:$0xf]
        %v632 = vld [vmem:[#allocation3 + $0xb0] sm:$0xf]
        %v633 = vld [vmem:[#allocation3 + $0xb4] sm:$0xf]
        %v634 = vld [vmem:[#allocation3 + $0xb8] sm:$0xf]
        %v635 = vld [vmem:[#allocation3 + $0xbc] sm:$0xf]
        %v652 = vunpack.c.l.b16 %v620
        %v653 = vunpack.c.l.b16 %v621
        %v654 = vunpack.c.l.b16 %v622
        %v655 = vunpack.c.l.b16 %v623
        %v656 = vunpack.c.l.b16 %v624
        %v657 = vunpack.c.l.b16 %v625
        %v658 = vunpack.c.l.b16 %v626
        %v659 = vunpack.c.l.b16 %v627
        %v660 = vunpack.c.l.b16 %v628
        %v661 = vunpack.c.l.b16 %v629
        %v662 = vunpack.c.l.b16 %v630
        %v663 = vunpack.c.l.b16 %v631
        %v664 = vunpack.c.l.b16 %v632
        %v665 = vunpack.c.l.b16 %v633
        %v666 = vunpack.c.l.b16 %v634
        %v667 = vunpack.c.l.b16 %v635
        %v668 = vpack.c.b16 %v653, %v652
        %v669 = vpack.c.b16 %v655, %v654
        %v670 = vpack.c.b16 %v657, %v656
        %v671 = vpack.c.b16 %v659, %v658
        %v672 = vpack.c.b16 %v661, %v660
        %v673 = vpack.c.b16 %v663, %v662
        %v674 = vpack.c.b16 %v665, %v664
        %v675 = vpack.c.b16 %v667, %v666
        %684 = vmatpush.bf16.msra.mxu0 %v675
        %685 = vmatpush.bf16.msra.mxu0 %v674
        %686 = vmatpush.bf16.msra.mxu0 %v673
        %687 = vmatpush.bf16.msra.mxu0 %v672
        %688 = vmatpush.bf16.msra.mxu0 %v671
        %689 = vmatpush.bf16.msra.mxu0 %v670
        %690 = vmatpush.bf16.msra.mxu0 %v669
        %691 = vmatpush.bf16.msra.mxu0 %v668
        %692 = vmatmul.bf16.gmra.mxu0 %v422
        %v693 = vpop.f32.mrf.mxu0
        %v694 = vadd.f32 0.0, %v693
        %v695 = vpop.f32.mrf.mxu0
        %696 = vdwg.mxu0
        %v697 = vpack.c.bf16 %v619, %v619
        %v698 = vld [vmem:[#allocation3 + $0x70] sm:$0xf]
        %v699 = vld [vmem:[#allocation3 + $0x74] sm:$0xf]
        %v700 = vld [vmem:[#allocation3 + $0x78] sm:$0xf]
        %v701 = vld [vmem:[#allocation3 + $0x7c] sm:$0xf]
        %v702 = vperm.slane %v694, 0
        %v707 = vunpack.c.l.b16 %v698
        %v708 = vunpack.c.l.b16 %v699
        %v709 = vunpack.c.l.b16 %v700
        %v710 = vunpack.c.l.b16 %v701
        %v711 = vpack.c.b16 %v708, %v707
        %v712 = vpack.c.b16 %v710, %v709
        %v716 = vsel %vm445, %v697, 0
        %718 = vmatpush.bf16.msra.mxu0 0
        %719 = vmatpush.bf16.msra.mxu0 0
        %720 = vmatpush.bf16.msra.mxu0 0
        %721 = vmatpush.bf16.msra.mxu0 0
        %722 = vmatpush.bf16.msra.mxu0 0
        %723 = vmatpush.bf16.msra.mxu0 0
        %724 = vmatpush.bf16.msra.mxu0 %v712
        %725 = vmatpush.bf16.msra.mxu0 %v711
        %726 = vmatmul.bf16.gmra.mxu0 %v716
        %v727 = vpop.f32.mrf.mxu0
        %v728 = vadd.f32 %v702, %v727
        %v729 = vpop.f32.mrf.mxu0
        %730 = vdwg.mxu0
        %v731 = vld [vmem:[%s7 + $0x3] sm:$0x1]
        %v732 = vperm.slane %v731, 0
        %v733 = vadd.f32 %v728, %v732
        %v734 = vld [vmem:[#allocation3 + $0xc0] sm:$0xf]
        %v735 = vld [vmem:[#allocation3 + $0xc4] sm:$0xf]
        %v736 = vld [vmem:[#allocation3 + $0xc8] sm:$0xf]
        %v737 = vld [vmem:[#allocation3 + $0xcc] sm:$0xf]
        %v739 = vrot.slane %v733, 7
        %vm741 = vcmask 523264
        %v742 = vsel %vm741, %v733, %v739
        %v743 = vpack.c.bf16 0.0, 0.0
        %v748 = vunpack.c.l.b16 %v734
        %v749 = vunpack.c.l.b16 %v735
        %v750 = vunpack.c.l.b16 %v736
        %v751 = vunpack.c.l.b16 %v737
        %v752 = vpack.c.b16 %v749, %v748
        %v753 = vpack.c.b16 %v751, %v750
        %v757 = vsel %vm445, %v743, 0
        %759 = vmatpush.bf16.msra.mxu0 0
        %760 = vmatpush.bf16.msra.mxu0 0
        %761 = vmatpush.bf16.msra.mxu0 0
        %762 = vmatpush.bf16.msra.mxu0 0
        %763 = vmatpush.bf16.msra.mxu0 0
        %764 = vmatpush.bf16.msra.mxu0 0
        %765 = vmatpush.bf16.msra.mxu0 %v753
        %766 = vmatpush.bf16.msra.mxu0 %v752
        %767 = vmatmul.bf16.gmra.mxu0 %v757
        %v768 = vpop.f32.mrf.mxu0
        %v769 = vadd.f32 0.0, %v768
        %v770 = vpop.f32.mrf.mxu0
        %771 = vdwg.mxu0
        %v772 = vadd.f32 %v742, %v769
        %v773 = vxor.u32 %v772, 2147483648
        %v774 = vmul.f32 %v773, 1.442695
        %v775 = vpow.pop %v774
        %v776 = vadd.f32 %v775, 1.0
        %v777 = vrcp.pop %v776
        %v778 = vmul.f32 %v776, %v777
        %v779 = vsub.f32 1.0, %v778
        %v780 = vmul.f32 %v777, %v779
        %v781 = vadd.f32 %v777, %v780
        %vm782 = vweird.f32 %v776
        %vm783 = vweird.f32 %v777
        %vm784 = vmor %vm782, %vm783
        %v785 = vsel %vm784, %v777, %v781
        %v786 = vand.u32 2147483647, %v776
        %vm787 = vcmp.eq.f32.partialorder %v786, 8.507059e+37
        %v788 = vand.u32 %v776, 2147483648
        %v789 = vor.u32 1.1754944e-38, %v788
        %v790 = vsel %vm787, %v789, %v785
        %v791 = vmul.f32 1.0, %v790
        %v792 = vtanh.pop %v772
        %v793 = vmul.f32 %v791, 0.0
        %795 = vrot.lane.b32.xlu0 %v792, 96
        %v796 = vpop.permute.xlu0 %795
        %v798 = vmul.f32 %v791, %v796
        %800 = vrot.lane.b32.xlu0 %v798, 16
        %v801 = vpop.permute.xlu0 %800
        %v803 = vadd.f32 %v793, %v801
        %v804 = vtanh.pop %v803
        %806 = vrot.lane.b32.xlu0 %v804, 32
        %v807 = vpop.permute.xlu0 %806
        %v809 = vmul.f32 %v791, %v807
        %v810 = vrot.slane %v733, 5
        %v812 = vsel %vm741, %v733, %v810
        %814 = vrot.lane.b32.xlu0 %v809, 80
        %v815 = vpop.permute.xlu0 %814
        %817 = vrot.lane.b32.xlu0 %v809, 32
        %v818 = vpop.permute.xlu0 %817
        %vm820 = vcmask 130048
        %v821 = vsel %vm820, %v815, %v818
        %v822 = vpack.c.bf16 %v821, %v821
        %v824 = vsel %vm445, %v822, 0
        %826 = vmatpush.bf16.msra.mxu0 0
        %827 = vmatpush.bf16.msra.mxu0 0
        %828 = vmatpush.bf16.msra.mxu0 0
        %829 = vmatpush.bf16.msra.mxu0 0
        %830 = vmatpush.bf16.msra.mxu0 0
        %831 = vmatpush.bf16.msra.mxu0 0
        %832 = vmatpush.bf16.msra.mxu0 %v753
        %833 = vmatpush.bf16.msra.mxu0 %v752
        %834 = vmatmul.bf16.gmra.mxu0 %v824
        %v835 = vpop.f32.mrf.mxu0
        %v836 = vadd.f32 0.0, %v835
        %v837 = vpop.f32.mrf.mxu0
        %838 = vdwg.mxu0
        %v840 = vrot.slane %v836, 7
        %v842 = vadd.f32 %v812, %v840
        %v843 = vxor.u32 %v842, 2147483648
        %v844 = vmul.f32 %v843, 1.442695
        %v845 = vpow.pop %v844
        %v846 = vadd.f32 %v845, 1.0
        %v847 = vrcp.pop %v846
        %v848 = vmul.f32 %v846, %v847
        %v849 = vsub.f32 1.0, %v848
        %v850 = vmul.f32 %v847, %v849
        %v851 = vadd.f32 %v847, %v850
        %vm852 = vweird.f32 %v846
        %vm853 = vweird.f32 %v847
        %vm854 = vmor %vm852, %vm853
        %v855 = vsel %vm854, %v847, %v851
        %v856 = vand.u32 2147483647, %v846
        %vm857 = vcmp.eq.f32.partialorder %v856, 8.507059e+37
        %v858 = vand.u32 %v846, 2147483648
        %v859 = vor.u32 1.1754944e-38, %v858
        %v860 = vsel %vm857, %v859, %v855
        %v861 = vmul.f32 1.0, %v860
        %v862 = vtanh.pop %v842
        %v864 = vrot.slane %v803, 7
        %v866 = vmul.f32 %v861, %v864
        %868 = vrot.lane.b32.xlu0 %v862, 96
        %v869 = vpop.permute.xlu0 %868
        %v871 = vmul.f32 %v861, %v869
        %873 = vrot.lane.b32.xlu0 %v871, 16
        %v874 = vpop.permute.xlu0 %873
        %v876 = vadd.f32 %v866, %v874
        %v877 = vtanh.pop %v876
        %879 = vrot.lane.b32.xlu0 %v877, 32
        %v880 = vpop.permute.xlu0 %879
        %v882 = vmul.f32 %v861, %v880
        %v883 = vrot.slane %v733, 3
        %v885 = vsel %vm741, %v733, %v883
        %887 = vrot.lane.b32.xlu0 %v882, 80
        %v888 = vpop.permute.xlu0 %887
        %890 = vrot.lane.b32.xlu0 %v882, 32
        %v891 = vpop.permute.xlu0 %890
        %v893 = vsel %vm820, %v888, %v891
        %v894 = vpack.c.bf16 %v893, %v893
        %v896 = vshrl.u32 %v894, 16
        %v899 = vsel %vm445, %v896, 0
        %901 = vmatpush.bf16.msra.mxu0 0
        %902 = vmatpush.bf16.msra.mxu0 0
        %903 = vmatpush.bf16.msra.mxu0 0
        %904 = vmatpush.bf16.msra.mxu0 0
        %905 = vmatpush.bf16.msra.mxu0 0
        %906 = vmatpush.bf16.msra.mxu0 0
        %907 = vmatpush.bf16.msra.mxu0 %v753
        %908 = vmatpush.bf16.msra.mxu0 %v752
        %909 = vmatmul.bf16.gmra.mxu0 %v899
        %v910 = vpop.f32.mrf.mxu0
        %v911 = vadd.f32 0.0, %v910
        %v912 = vpop.f32.mrf.mxu0
        %913 = vdwg.mxu0
        %v915 = vrot.slane %v911, 6
        %v917 = vadd.f32 %v885, %v915
        %v918 = vxor.u32 %v917, 2147483648
        %v919 = vmul.f32 %v918, 1.442695
        %v920 = vpow.pop %v919
        %v921 = vadd.f32 %v920, 1.0
        %v922 = vrcp.pop %v921
        %v923 = vmul.f32 %v921, %v922
        %v924 = vsub.f32 1.0, %v923
        %v925 = vmul.f32 %v922, %v924
        %v926 = vadd.f32 %v922, %v925
        %vm927 = vweird.f32 %v921
        %vm928 = vweird.f32 %v922
        %vm929 = vmor %vm927, %vm928
        %v930 = vsel %vm929, %v922, %v926
        %v931 = vand.u32 2147483647, %v921
        %vm932 = vcmp.eq.f32.partialorder %v931, 8.507059e+37
        %v933 = vand.u32 %v921, 2147483648
        %v934 = vor.u32 1.1754944e-38, %v933
        %v935 = vsel %vm932, %v934, %v930
        %v936 = vmul.f32 1.0, %v935
        %v937 = vtanh.pop %v917
        %v939 = vrot.slane %v876, 7
        %v941 = vmul.f32 %v936, %v939
        %943 = vrot.lane.b32.xlu0 %v937, 96
        %v944 = vpop.permute.xlu0 %943
        %v946 = vmul.f32 %v936, %v944
        %948 = vrot.lane.b32.xlu0 %v946, 16
        %v949 = vpop.permute.xlu0 %948
        %v951 = vadd.f32 %v941, %v949
        %v952 = vtanh.pop %v951
        %954 = vrot.lane.b32.xlu0 %v952, 32
        %v955 = vpop.permute.xlu0 %954
        %v957 = vmul.f32 %v936, %v955
        %v958 = vrot.slane %v733, 1
        %v960 = vsel %vm741, %v733, %v958
        %962 = vrot.lane.b32.xlu0 %v957, 80
        %v963 = vpop.permute.xlu0 %962
        %965 = vrot.lane.b32.xlu0 %v957, 32
        %v966 = vpop.permute.xlu0 %965
        %v968 = vsel %vm820, %v963, %v966
        %v969 = vpack.c.bf16 %v968, %v968
        %v971 = vrot.slane %v969, 1
        %v973 = vsel %vm445, %v971, 0
        %975 = vmatpush.bf16.msra.mxu0 0
        %976 = vmatpush.bf16.msra.mxu0 0
        %977 = vmatpush.bf16.msra.mxu0 0
        %978 = vmatpush.bf16.msra.mxu0 0
        %979 = vmatpush.bf16.msra.mxu0 0
        %980 = vmatpush.bf16.msra.mxu0 0
        %981 = vmatpush.bf16.msra.mxu0 %v753
        %982 = vmatpush.bf16.msra.mxu0 %v752
        %983 = vmatmul.bf16.gmra.mxu0 %v973
        %v984 = vpop.f32.mrf.mxu0
        %v985 = vadd.f32 0.0, %v984
        %v986 = vpop.f32.mrf.mxu0
        %987 = vdwg.mxu0
        %v989 = vrot.slane %v985, 5
        %v991 = vadd.f32 %v960, %v989
        %v992 = vxor.u32 %v991, 2147483648
        %v993 = vmul.f32 %v992, 1.442695
        %v994 = vpow.pop %v993
        %v995 = vadd.f32 %v994, 1.0
        %v996 = vrcp.pop %v995
        %v997 = vmul.f32 %v995, %v996
        %v998 = vsub.f32 1.0, %v997
        %v999 = vmul.f32 %v996, %v998
        %v1000 = vadd.f32 %v996, %v999
        %vm1001 = vweird.f32 %v995
        %vm1002 = vweird.f32 %v996
        %vm1003 = vmor %vm1001, %vm1002
        %v1004 = vsel %vm1003, %v996, %v1000
        %v1005 = vand.u32 2147483647, %v995
        %vm1006 = vcmp.eq.f32.partialorder %v1005, 8.507059e+37
        %v1007 = vand.u32 %v995, 2147483648
        %v1008 = vor.u32 1.1754944e-38, %v1007
        %v1009 = vsel %vm1006, %v1008, %v1004
        %v1010 = vmul.f32 1.0, %v1009
        %v1011 = vtanh.pop %v991
        %v1013 = vrot.slane %v951, 7
        %v1015 = vmul.f32 %v1010, %v1013
        %1017 = vrot.lane.b32.xlu0 %v1011, 96
        %v1018 = vpop.permute.xlu0 %1017
        %v1020 = vmul.f32 %v1010, %v1018
        %1022 = vrot.lane.b32.xlu0 %v1020, 16
        %v1023 = vpop.permute.xlu0 %1022
        %v1025 = vadd.f32 %v1015, %v1023
        %v1026 = vtanh.pop %v1025
        %1028 = vrot.lane.b32.xlu0 %v1026, 32
        %v1029 = vpop.permute.xlu0 %1028
        %v1031 = vmul.f32 %v1010, %v1029
        %1033 = vrot.lane.b32.xlu0 %v1031, 80
        %v1034 = vpop.permute.xlu0 %1033
        %1036 = vrot.lane.b32.xlu0 %v1031, 32
        %v1037 = vpop.permute.xlu0 %1036
        %v1039 = vsel %vm820, %v1034, %v1037
        %v1040 = vpack.c.bf16 %v1039, %v1039
        %v1042 = vshrl.u32 %v1040, 16
        %v1044 = vrot.slane %v1042, 1
        %v1046 = vsel %vm445, %v1044, 0
        %1048 = vmatpush.bf16.msra.mxu0 0
        %1049 = vmatpush.bf16.msra.mxu0 0
        %1050 = vmatpush.bf16.msra.mxu0 0
        %1051 = vmatpush.bf16.msra.mxu0 0
        %1052 = vmatpush.bf16.msra.mxu0 0
        %1053 = vmatpush.bf16.msra.mxu0 0
        %1054 = vmatpush.bf16.msra.mxu0 %v753
        %1055 = vmatpush.bf16.msra.mxu0 %v752
        %1056 = vmatmul.bf16.gmra.mxu0 %v1046
        %v1057 = vpop.f32.mrf.mxu0
        %v1058 = vadd.f32 0.0, %v1057
        %v1059 = vpop.f32.mrf.mxu0
        %1060 = vdwg.mxu0
        %v1062 = vrot.slane %v1058, 4
        %v1064 = vadd.f32 %v742, %v1062
        %v1065 = vxor.u32 %v1064, 2147483648
        %v1066 = vmul.f32 %v1065, 1.442695
        %v1067 = vpow.pop %v1066
        %v1068 = vadd.f32 %v1067, 1.0
        %v1069 = vrcp.pop %v1068
        %v1070 = vmul.f32 %v1068, %v1069
        %v1071 = vsub.f32 1.0, %v1070
        %v1072 = vmul.f32 %v1069, %v1071
        %v1073 = vadd.f32 %v1069, %v1072
        %vm1074 = vweird.f32 %v1068
        %vm1075 = vweird.f32 %v1069
        %vm1076 = vmor %vm1074, %vm1075
        %v1077 = vsel %vm1076, %v1069, %v1073
        %v1078 = vand.u32 2147483647, %v1068
        %vm1079 = vcmp.eq.f32.partialorder %v1078, 8.507059e+37
        %v1080 = vand.u32 %v1068, 2147483648
        %v1081 = vor.u32 1.1754944e-38, %v1080
        %v1082 = vsel %vm1079, %v1081, %v1077
        %v1083 = vmul.f32 1.0, %v1082
        %v1084 = vtanh.pop %v1064
        %v1086 = vrot.slane %v1025, 7
        %v1088 = vmul.f32 %v1083, %v1086
        %1090 = vrot.lane.b32.xlu0 %v1084, 96
        %v1091 = vpop.permute.xlu0 %1090
        %v1093 = vmul.f32 %v1083, %v1091
        %1095 = vrot.lane.b32.xlu0 %v1093, 16
        %v1096 = vpop.permute.xlu0 %1095
        %v1098 = vadd.f32 %v1088, %v1096
        %v1099 = vtanh.pop %v1098
        %1101 = vrot.lane.b32.xlu0 %v1099, 32
        %v1102 = vpop.permute.xlu0 %1101
        %v1104 = vmul.f32 %v1083, %v1102
        %1106 = vrot.lane.b32.xlu0 %v1104, 80
        %v1107 = vpop.permute.xlu0 %1106
        %1109 = vrot.lane.b32.xlu0 %v1104, 32
        %v1110 = vpop.permute.xlu0 %1109
        %v1112 = vsel %vm820, %v1107, %v1110
        %v1113 = vpack.c.bf16 %v1112, %v1112
        %v1115 = vrot.slane %v1113, 2
        %v1117 = vsel %vm445, %v1115, 0
        %1119 = vmatpush.bf16.msra.mxu0 0
        %1120 = vmatpush.bf16.msra.mxu0 0
        %1121 = vmatpush.bf16.msra.mxu0 0
        %1122 = vmatpush.bf16.msra.mxu0 0
        %1123 = vmatpush.bf16.msra.mxu0 0
        %1124 = vmatpush.bf16.msra.mxu0 0
        %1125 = vmatpush.bf16.msra.mxu0 %v753
        %1126 = vmatpush.bf16.msra.mxu0 %v752
        %1127 = vmatmul.bf16.gmra.mxu0 %v1117
        %v1128 = vpop.f32.mrf.mxu0
        %v1129 = vadd.f32 0.0, %v1128
        %v1130 = vpop.f32.mrf.mxu0
        %1131 = vdwg.mxu0
        %v1133 = vrot.slane %v1129, 3
        %v1135 = vadd.f32 %v812, %v1133
        %v1136 = vxor.u32 %v1135, 2147483648
        %v1137 = vmul.f32 %v1136, 1.442695
        %v1138 = vpow.pop %v1137
        %v1139 = vadd.f32 %v1138, 1.0
        %v1140 = vrcp.pop %v1139
        %v1141 = vmul.f32 %v1139, %v1140
        %v1142 = vsub.f32 1.0, %v1141
        %v1143 = vmul.f32 %v1140, %v1142
        %v1144 = vadd.f32 %v1140, %v1143
        %vm1145 = vweird.f32 %v1139
        %vm1146 = vweird.f32 %v1140
        %vm1147 = vmor %vm1145, %vm1146
        %v1148 = vsel %vm1147, %v1140, %v1144
        %v1149 = vand.u32 2147483647, %v1139
        %vm1150 = vcmp.eq.f32.partialorder %v1149, 8.507059e+37
        %v1151 = vand.u32 %v1139, 2147483648
        %v1152 = vor.u32 1.1754944e-38, %v1151
        %v1153 = vsel %vm1150, %v1152, %v1148
        %v1154 = vmul.f32 1.0, %v1153
        %v1155 = vtanh.pop %v1135
        %v1157 = vrot.slane %v1098, 7
        %v1159 = vmul.f32 %v1154, %v1157
        %1161 = vrot.lane.b32.xlu0 %v1155, 96
        %v1162 = vpop.permute.xlu0 %1161
        %v1164 = vmul.f32 %v1154, %v1162
        %1166 = vrot.lane.b32.xlu0 %v1164, 16
        %v1167 = vpop.permute.xlu0 %1166
        %v1169 = vadd.f32 %v1159, %v1167
        %v1170 = vtanh.pop %v1169
        %1172 = vrot.lane.b32.xlu0 %v1170, 32
        %v1173 = vpop.permute.xlu0 %1172
        %v1175 = vmul.f32 %v1154, %v1173
        %1177 = vrot.lane.b32.xlu0 %v1175, 80
        %v1178 = vpop.permute.xlu0 %1177
        %1180 = vrot.lane.b32.xlu0 %v1175, 32
        %v1181 = vpop.permute.xlu0 %1180
        %v1183 = vsel %vm820, %v1178, %v1181
        %v1184 = vpack.c.bf16 %v1183, %v1183
        %v1186 = vshrl.u32 %v1184, 16
        %v1188 = vrot.slane %v1186, 2
        %v1190 = vsel %vm445, %v1188, 0
        %1192 = vmatpush.bf16.msra.mxu0 0
        %1193 = vmatpush.bf16.msra.mxu0 0
        %1194 = vmatpush.bf16.msra.mxu0 0
        %1195 = vmatpush.bf16.msra.mxu0 0
        %1196 = vmatpush.bf16.msra.mxu0 0
        %1197 = vmatpush.bf16.msra.mxu0 0
        %1198 = vmatpush.bf16.msra.mxu0 %v753
        %1199 = vmatpush.bf16.msra.mxu0 %v752
        %1200 = vmatmul.bf16.gmra.mxu0 %v1190
        %v1201 = vpop.f32.mrf.mxu0
        %v1202 = vadd.f32 0.0, %v1201
        %v1203 = vpop.f32.mrf.mxu0
        %1204 = vdwg.mxu0
        %v1206 = vrot.slane %v1202, 2
        %v1208 = vadd.f32 %v885, %v1206
        %v1209 = vxor.u32 %v1208, 2147483648
        %v1210 = vmul.f32 %v1209, 1.442695
        %v1211 = vpow.pop %v1210
        %v1212 = vadd.f32 %v1211, 1.0
        %v1213 = vrcp.pop %v1212
        %v1214 = vmul.f32 %v1212, %v1213
        %v1215 = vsub.f32 1.0, %v1214
        %v1216 = vmul.f32 %v1213, %v1215
        %v1217 = vadd.f32 %v1213, %v1216
        %vm1218 = vweird.f32 %v1212
        %vm1219 = vweird.f32 %v1213
        %vm1220 = vmor %vm1218, %vm1219
        %v1221 = vsel %vm1220, %v1213, %v1217
        %v1222 = vand.u32 2147483647, %v1212
        %vm1223 = vcmp.eq.f32.partialorder %v1222, 8.507059e+37
        %v1224 = vand.u32 %v1212, 2147483648
        %v1225 = vor.u32 1.1754944e-38, %v1224
        %v1226 = vsel %vm1223, %v1225, %v1221
        %v1227 = vmul.f32 1.0, %v1226
        %v1228 = vtanh.pop %v1208
        %v1230 = vrot.slane %v1169, 7
        %v1232 = vmul.f32 %v1227, %v1230
        %1234 = vrot.lane.b32.xlu0 %v1228, 96
        %v1235 = vpop.permute.xlu0 %1234
        %v1237 = vmul.f32 %v1227, %v1235
        %1239 = vrot.lane.b32.xlu0 %v1237, 16
        %v1240 = vpop.permute.xlu0 %1239
        %v1242 = vadd.f32 %v1232, %v1240
        %v1243 = vtanh.pop %v1242
        %1245 = vrot.lane.b32.xlu0 %v1243, 32
        %v1246 = vpop.permute.xlu0 %1245
        %v1248 = vmul.f32 %v1227, %v1246
        %1250 = vrot.lane.b32.xlu0 %v1248, 80
        %v1251 = vpop.permute.xlu0 %1250
        %1253 = vrot.lane.b32.xlu0 %v1248, 32
        %v1254 = vpop.permute.xlu0 %1253
        %v1256 = vsel %vm820, %v1251, %v1254
        %v1257 = vpack.c.bf16 %v1256, %v1256
        %v1259 = vrot.slane %v1257, 3
        %v1261 = vsel %vm445, %v1259, 0
        %1263 = vmatpush.bf16.msra.mxu0 0
        %1264 = vmatpush.bf16.msra.mxu0 0
        %1265 = vmatpush.bf16.msra.mxu0 0
        %1266 = vmatpush.bf16.msra.mxu0 0
        %1267 = vmatpush.bf16.msra.mxu0 0
        %1268 = vmatpush.bf16.msra.mxu0 0
        %1269 = vmatpush.bf16.msra.mxu0 %v753
        %1270 = vmatpush.bf16.msra.mxu0 %v752
        %1271 = vmatmul.bf16.gmra.mxu0 %v1261
        %v1272 = vpop.f32.mrf.mxu0
        %v1273 = vadd.f32 0.0, %v1272
        %v1274 = vpop.f32.mrf.mxu0
        %1275 = vdwg.mxu0
        %v1277 = vrot.slane %v1273, 1
        %v1279 = vadd.f32 %v960, %v1277
        %v1280 = vxor.u32 %v1279, 2147483648
        %v1281 = vmul.f32 %v1280, 1.442695
        %v1282 = vpow.pop %v1281
        %v1283 = vadd.f32 %v1282, 1.0
        %v1284 = vrcp.pop %v1283
        %v1285 = vmul.f32 %v1283, %v1284
        %v1286 = vsub.f32 1.0, %v1285
        %v1287 = vmul.f32 %v1284, %v1286
        %v1288 = vadd.f32 %v1284, %v1287
        %vm1289 = vweird.f32 %v1283
        %vm1290 = vweird.f32 %v1284
        %vm1291 = vmor %vm1289, %vm1290
        %v1292 = vsel %vm1291, %v1284, %v1288
        %v1293 = vand.u32 2147483647, %v1283
        %vm1294 = vcmp.eq.f32.partialorder %v1293, 8.507059e+37
        %v1295 = vand.u32 %v1283, 2147483648
        %v1296 = vor.u32 1.1754944e-38, %v1295
        %v1297 = vsel %vm1294, %v1296, %v1292
        %v1298 = vmul.f32 1.0, %v1297
        %v1299 = vtanh.pop %v1279
        %v1301 = vrot.slane %v1242, 7
        %v1303 = vmul.f32 %v1298, %v1301
        %1305 = vrot.lane.b32.xlu0 %v1299, 96
        %v1306 = vpop.permute.xlu0 %1305
        %v1308 = vmul.f32 %v1298, %v1306
        %1310 = vrot.lane.b32.xlu0 %v1308, 16
        %v1311 = vpop.permute.xlu0 %1310
        %v1313 = vadd.f32 %v1303, %v1311
        %v1314 = vtanh.pop %v1313
        %1316 = vrot.lane.b32.xlu0 %v1314, 32
        %v1317 = vpop.permute.xlu0 %1316
        %v1319 = vmul.f32 %v1298, %v1317
        %vm1320 = vcmask 1040384
        %v1321 = vsel %vm1320, %v809, %v882
        %vm1322 = vcmask 1041408
        %v1323 = vsel %vm1322, %v1321, %v957
        %vm1324 = vcmask 1042432
        %v1325 = vsel %vm1324, %v1323, %v1031
        %vm1326 = vcmask 1043456
        %v1327 = vsel %vm1326, %v1325, %v1104
        %vm1328 = vcmask 1044480
        %v1329 = vsel %vm1328, %v1327, %v1175
        %vm1330 = vcmask 1045504
        %v1331 = vsel %vm1330, %v1329, %v1248
        %vm1332 = vcmask 1046528
        %v1333 = vsel %vm1332, %v1331, %v1319
        %v1335 = vrot.slane %v1319, 7
        %v1337 = vrot.slane %v1248, 5
        %v1339 = vrot.slane %v1175, 3
        %v1341 = vrot.slane %v1104, 1
        %v1343 = vrot.slane %v1031, 7
        %v1345 = vrot.slane %v957, 5
        %v1347 = vrot.slane %v882, 3
        %v1349 = vrot.slane %v809, 1
        %v1351 = vsel %vm1320, %v1335, %v1337
        %v1352 = vsel %vm1322, %v1351, %v1339
        %v1353 = vsel %vm1324, %v1352, %v1341
        %v1354 = vsel %vm1326, %v1353, %v1343
        %v1355 = vsel %vm1328, %v1354, %v1345
        %v1356 = vsel %vm1330, %v1355, %v1347
        %v1357 = vsel %vm1332, %v1356, %v1349
        %1359 = vrot.lane.b32.xlu0 %v1333, 80
        %v1360 = vpop.permute.xlu0 %1359
        %1363 = vrot.lane.b32.xlu0 %v1357, 32
        %v1364 = vpop.permute.xlu0 %1363
        %v1366 = vsel %vm820, %v1360, %v1364
        %v1367 = vpack.c.bf16 %v1366, %v1366
        %v1368 = vld [vmem:[#allocation3 + $0xd0] sm:$0xf]
        %v1369 = vld [vmem:[#allocation3 + $0xd4] sm:$0xf]
        %v1370 = vld [vmem:[#allocation3 + $0xd8] sm:$0xf]
        %v1371 = vld [vmem:[#allocation3 + $0xdc] sm:$0xf]
        %v1372 = vld [vmem:[%s7 + $0x4] sm:$0x1]
        %v1373 = vperm.slane %v1372, 0
        %v1378 = vunpack.c.l.b16 %v1368
        %v1379 = vunpack.c.l.b16 %v1369
        %v1380 = vunpack.c.l.b16 %v1370
        %v1381 = vunpack.c.l.b16 %v1371
        %v1382 = vpack.c.b16 %v1379, %v1378
        %v1383 = vpack.c.b16 %v1381, %v1380
        %v1387 = vsel %vm445, %v1367, 0
        %1389 = vmatpush.bf16.msra.mxu0 0
        %1390 = vmatpush.bf16.msra.mxu0 0
        %1391 = vmatpush.bf16.msra.mxu0 0
        %1392 = vmatpush.bf16.msra.mxu0 0
        %1393 = vmatpush.bf16.msra.mxu0 0
        %1394 = vmatpush.bf16.msra.mxu0 0
        %1395 = vmatpush.bf16.msra.mxu0 %v1383
        %1396 = vmatpush.bf16.msra.mxu0 %v1382
        %1397 = vmatmul.bf16.gmra.mxu0 %v1387
        %v1398 = vpop.f32.mrf.mxu0
        %v1399 = vadd.f32 %v1373, %v1398
        %v1400 = vpop.f32.mrf.mxu0
        %1401 = vdwg.mxu0
        %v1402 = vxor.u32 %v1399, 2147483648
        %v1403 = vmul.f32 %v1402, 1.442695
        %v1404 = vpow.pop %v1403
        %v1405 = vadd.f32 %v1404, 1.0
        %v1406 = vrcp.pop %v1405
        %v1407 = vmul.f32 %v1405, %v1406
        %v1408 = vsub.f32 1.0, %v1407
        %v1409 = vmul.f32 %v1406, %v1408
        %v1410 = vadd.f32 %v1406, %v1409
        %vm1411 = vweird.f32 %v1405
        %vm1412 = vweird.f32 %v1406
        %vm1413 = vmor %vm1411, %vm1412
        %v1414 = vsel %vm1413, %v1406, %v1410
        %v1415 = vand.u32 2147483647, %v1405
        %vm1416 = vcmp.eq.f32.partialorder %v1415, 8.507059e+37
        %v1417 = vand.u32 %v1405, 2147483648
        %v1418 = vor.u32 1.1754944e-38, %v1417
        %v1419 = vsel %vm1416, %v1418, %v1414
        %v1420 = vmul.f32 1.0, %v1419
        %vm1421 = vcmask 64512
        %v1422 = vsel %vm1421, %v1420, 0.0
        %1423 = vadd.xlane.f32.xlu0 %v1422
        %v1424 = vpop.xlane.xlu0 %1423
        %v1425 = vmul.f32 %v1424, %v420
        %s1426 = sld [smem:[#allocation2]]
        %v1427 = vstv %s1426
        %v1428 = vrcp.pop %v1427
        %v1429 = vmul.f32 %v1427, %v1428
        %v1430 = vsub.f32 1.0, %v1429
        %v1431 = vmul.f32 %v1428, %v1430
        %v1432 = vadd.f32 %v1428, %v1431
        %vm1433 = vweird.f32 %v1427
        %vm1434 = vweird.f32 %v1428
        %vm1435 = vmor %vm1433, %vm1434
        %v1436 = vsel %vm1435, %v1428, %v1432
        %v1437 = vand.u32 2147483647, %v1427
        %vm1438 = vcmp.eq.f32.partialorder %v1437, 8.507059e+37
        %v1439 = vand.u32 %v1427, 2147483648
        %v1440 = vor.u32 1.1754944e-38, %v1439
        %v1441 = vsel %vm1438, %v1440, %v1436
        %v1442 = vmul.f32 %v1425, %v1441
        %v1443 = vround.ne.pseudo %v1442
        %v1445 = vrot.slane %v1443, 1
        %1446 = vrot.lane.b32.xlu0 %v1445, 1
        %v1447 = vpop.permute.xlu0 %1446
        %v1449 = vrot.slane %v1443, 2
        %1450 = vrot.lane.b32.xlu0 %v1449, 2
        %v1451 = vpop.permute.xlu0 %1450
        %v1453 = vrot.slane %v1443, 3
        %1454 = vrot.lane.b32.xlu0 %v1453, 3
        %v1455 = vpop.permute.xlu0 %1454
        %v1457 = vrot.slane %v1443, 4
        %1458 = vrot.lane.b32.xlu0 %v1457, 4
        %v1459 = vpop.permute.xlu0 %1458
        %v1461 = vrot.slane %v1443, 5
        %1462 = vrot.lane.b32.xlu0 %v1461, 5
        %v1463 = vpop.permute.xlu0 %1462
        %v1465 = vrot.slane %v1443, 6
        %1466 = vrot.lane.b32.xlu0 %v1465, 6
        %v1467 = vpop.permute.xlu0 %1466
        %v1469 = vrot.slane %v1443, 7
        %1470 = vrot.lane.b32.xlu0 %v1469, 7
        %v1471 = vpop.permute.xlu0 %1470
        %vm1473 = vcmask 7168
        %v1474 = vsel %vm1473, %v1443, %v1447
        %vm1475 = vcmask 15360
        %v1476 = vsel %vm1475, %v1474, %v1451
        %vm1477 = vcmask 23552
        %v1478 = vsel %vm1477, %v1476, %v1455
        %vm1479 = vcmask 31744
        %v1480 = vsel %vm1479, %v1478, %v1459
        %vm1481 = vcmask 39936
        %v1482 = vsel %vm1481, %v1480, %v1463
        %vm1483 = vcmask 48128
        %v1484 = vsel %vm1483, %v1482, %v1467
        %vm1485 = vcmask 56320
        %v1486 = vsel %vm1485, %v1484, %v1471
        %vm1487 = vcmask 57344
        %v1488 = vsel %vm1487, %v1486, 0.0
        %1489 = vadd.xlane.f32.xlu0 %v1488
        %v1490 = vpop.xlane.xlu0 %1489
        %vm1491 = vcmask 0
        %1492 = vst.msk [vmem:[%s418] sm:$0x1] %vm1491, %v1490
        %v1493 = vmax.f32 %v1486, 1.0
        %v1494 = vlaneseq
        %v1495 = vshrl.u32 %v1494, 7
        %v1496 = vlaneseq
        %v1497 = vand.u32 %v1496, 127
        %vm1498 = vcmp.le.s32.totalorder %v1495, %v1497
        %v1499 = vsel %vm1498, 1, 0
        %v1500 = vcvt.s32.f32 %v1499
        %v1502 = vsel %vm1421, %v1493, 0
        %1504 = vmatpush.msra.mxu0 0.0
        %1505 = vmatpush.msra.mxu0 0.0
        %1506 = vmatpush.msra.mxu0 0.0
        %1507 = vmatpush.msra.mxu0 0.0
        %1508 = vmatpush.msra.mxu0 0.0
        %1509 = vmatpush.msra.mxu0 0.0
        %1510 = vmatpush.msra.mxu0 0.0
        %1511 = vmatpush.msra.mxu0 0.0
        %1512 = vmatpush.msra.mxu0 0.0
        %1513 = vmatpush.msra.mxu0 0.0
        %1514 = vmatpush.msra.mxu0 0.0
        %1515 = vmatpush.msra.mxu0 0.0
        %1516 = vmatpush.msra.mxu0 0.0
        %1517 = vmatpush.msra.mxu0 0.0
        %1518 = vmatpush.msra.mxu0 0.0
        %1519 = vmatpush.msra.mxu0 %v1500
        %1520 = vmatmul.f32.gmra.mxu0 %v1502
        %v1521 = vpop.f32.mrf.mxu0
        %v1522 = vadd.f32 0.0, %v1521
        %1523 = vdwg.mxu0
        %v1524 = vsub.f32 %v1522, %v1493
        %v1525 = vld [vmem:[%s400] sm:$0xff]
        %v1526 = vrot.slane %v1525, 6
        %v1527 = vadd.s32 %v1495, 4294967294
        %vm1528 = vcmp.ge.s32.totalorder %v1527, 0
        %vm1529 = vcmp.lt.s32.totalorder %v1527, 8
        %vm1530 = vmand %vm1528, %vm1529
        %v1531 = vsel %vm1530, 1, 0
        %vm1532 = vcmp.eq.s32.totalorder %v1531, 1
        %v1533 = vsel %vm1532, %v1526, 0.0
        %v1534 = vld [vmem:[#allocation3 + $0xe0] sm:$0xf]
        %v1535 = vld [vmem:[#allocation3 + $0xe4] sm:$0xf]
        %v1536 = vld [vmem:[#allocation3 + $0xe8] sm:$0xf]
        %v1537 = vld [vmem:[#allocation3 + $0xec] sm:$0xf]
        %v1538 = vpack.c.bf16 %v1533, %v1533
        %v1539 = vrot.slane %v1525, 7
        %v1540 = vadd.s32 %v1495, 4294967295
        %vm1541 = vcmp.ge.s32.totalorder %v1540, 0
        %vm1542 = vcmp.lt.s32.totalorder %v1540, 8
        %vm1543 = vmand %vm1541, %vm1542
        %v1544 = vsel %vm1543, 1, 0
        %vm1545 = vcmp.eq.s32.totalorder %v1544, 1
        %v1546 = vsel %vm1545, %v1539, 0.0
        %v1547 = vld [vmem:[#allocation3 + $0xf0] sm:$0xf]
        %v1548 = vld [vmem:[#allocation3 + $0xf4] sm:$0xf]
        %v1549 = vld [vmem:[#allocation3 + $0xf8] sm:$0xf]
        %v1550 = vld [vmem:[#allocation3 + $0xfc] sm:$0xf]
        %v1551 = vpack.c.bf16 %v1546, %v1546
        %v1556 = vunpack.c.l.b16 %v1547
        %v1557 = vunpack.c.l.b16 %v1548
        %v1558 = vunpack.c.l.b16 %v1549
        %v1559 = vunpack.c.l.b16 %v1550
        %v1560 = vpack.c.b16 %v1557, %v1556
        %v1561 = vpack.c.b16 %v1559, %v1558
        %v1565 = vsel %vm445, %v1551, 0
        %1567 = vmatpush.bf16.msra.mxu0 0
        %1568 = vmatpush.bf16.msra.mxu0 0
        %1569 = vmatpush.bf16.msra.mxu0 0
        %1570 = vmatpush.bf16.msra.mxu0 0
        %1571 = vmatpush.bf16.msra.mxu0 0
        %1572 = vmatpush.bf16.msra.mxu0 0
        %1573 = vmatpush.bf16.msra.mxu0 %v1561
        %1574 = vmatpush.bf16.msra.mxu0 %v1560
        %1575 = vmatmul.bf16.gmra.mxu0 %v1565
        %v1576 = vpop.f32.mrf.mxu0
        %v1577 = vadd.f32 0.0, %v1576
        %v1578 = vpop.f32.mrf.mxu0
        %1579 = vdwg.mxu0
        %v1584 = vunpack.c.l.b16 %v1534
        %v1585 = vunpack.c.l.b16 %v1535
        %v1586 = vunpack.c.l.b16 %v1536
        %v1587 = vunpack.c.l.b16 %v1537
        %v1588 = vpack.c.b16 %v1585, %v1584
        %v1589 = vpack.c.b16 %v1587, %v1586
        %v1593 = vsel %vm445, %v1538, 0
        %1595 = vmatpush.bf16.msra.mxu0 0
        %1596 = vmatpush.bf16.msra.mxu0 0
        %1597 = vmatpush.bf16.msra.mxu0 0
        %1598 = vmatpush.bf16.msra.mxu0 0
        %1599 = vmatpush.bf16.msra.mxu0 0
        %1600 = vmatpush.bf16.msra.mxu0 0
        %1601 = vmatpush.bf16.msra.mxu0 %v1589
        %1602 = vmatpush.bf16.msra.mxu0 %v1588
        %1603 = vmatmul.bf16.gmra.mxu0 %v1593
        %v1604 = vpop.f32.mrf.mxu0
        %v1605 = vadd.f32 %v1577, %v1604
        %v1606 = vpop.f32.mrf.mxu0
        %1607 = vdwg.mxu0
        %vm1608 = vcmp.ge.s32.totalorder %v1495, 0
        %vm1609 = vcmp.lt.s32.totalorder %v1495, 8
        %vm1610 = vmand %vm1608, %vm1609
        %v1611 = vsel %vm1610, 1, 0
        %vm1612 = vcmp.eq.s32.totalorder %v1611, 1
        %v1613 = vsel %vm1612, %v1525, 0.0
        %v1614 = vld [vmem:[#allocation3 + $0x100] sm:$0xf]
        %v1615 = vld [vmem:[#allocation3 + $0x104] sm:$0xf]
        %v1616 = vld [vmem:[#allocation3 + $0x108] sm:$0xf]
        %v1617 = vld [vmem:[#allocation3 + $0x10c] sm:$0xf]
        %v1618 = vpack.c.bf16 %v1613, %v1613
        %v1623 = vunpack.c.l.b16 %v1614
        %v1624 = vunpack.c.l.b16 %v1615
        %v1625 = vunpack.c.l.b16 %v1616
        %v1626 = vunpack.c.l.b16 %v1617
        %v1627 = vpack.c.b16 %v1624, %v1623
        %v1628 = vpack.c.b16 %v1626, %v1625
        %v1632 = vsel %vm445, %v1618, 0
        %1634 = vmatpush.bf16.msra.mxu0 0
        %1635 = vmatpush.bf16.msra.mxu0 0
        %1636 = vmatpush.bf16.msra.mxu0 0
        %1637 = vmatpush.bf16.msra.mxu0 0
        %1638 = vmatpush.bf16.msra.mxu0 0
        %1639 = vmatpush.bf16.msra.mxu0 0
        %1640 = vmatpush.bf16.msra.mxu0 %v1628
        %1641 = vmatpush.bf16.msra.mxu0 %v1627
        %1642 = vmatmul.bf16.gmra.mxu0 %v1632
        %v1643 = vpop.f32.mrf.mxu0
        %v1644 = vadd.f32 0.0, %v1643
        %v1645 = vpop.f32.mrf.mxu0
        %1646 = vdwg.mxu0
        %v1647 = vadd.f32 %v1605, %v1644
        %v1648 = vrot.slane %v1525, 1
        %v1649 = vadd.s32 %v1495, 1
        %vm1650 = vcmp.ge.s32.totalorder %v1649, 0
        %vm1651 = vcmp.lt.s32.totalorder %v1649, 8
        %vm1652 = vmand %vm1650, %vm1651
        %v1653 = vsel %vm1652, 1, 0
        %vm1654 = vcmp.eq.s32.totalorder %v1653, 1
        %v1655 = vsel %vm1654, %v1648, 0.0
        %v1656 = vld [vmem:[#allocation3 + $0x110] sm:$0xf]
        %v1657 = vld [vmem:[#allocation3 + $0x114] sm:$0xf]
        %v1658 = vld [vmem:[#allocation3 + $0x118] sm:$0xf]
        %v1659 = vld [vmem:[#allocation3 + $0x11c] sm:$0xf]
        %v1660 = vpack.c.bf16 %v1655, %v1655
        %v1665 = vunpack.c.l.b16 %v1656
        %v1666 = vunpack.c.l.b16 %v1657
        %v1667 = vunpack.c.l.b16 %v1658
        %v1668 = vunpack.c.l.b16 %v1659
        %v1669 = vpack.c.b16 %v1666, %v1665
        %v1670 = vpack.c.b16 %v1668, %v1667
        %v1674 = vsel %vm445, %v1660, 0
        %1676 = vmatpush.bf16.msra.mxu0 0
        %1677 = vmatpush.bf16.msra.mxu0 0
        %1678 = vmatpush.bf16.msra.mxu0 0
        %1679 = vmatpush.bf16.msra.mxu0 0
        %1680 = vmatpush.bf16.msra.mxu0 0
        %1681 = vmatpush.bf16.msra.mxu0 0
        %1682 = vmatpush.bf16.msra.mxu0 %v1670
        %1683 = vmatpush.bf16.msra.mxu0 %v1669
        %1684 = vmatmul.bf16.gmra.mxu0 %v1674
        %v1685 = vpop.f32.mrf.mxu0
        %v1686 = vadd.f32 0.0, %v1685
        %v1687 = vpop.f32.mrf.mxu0
        %1688 = vdwg.mxu0
        %v1689 = vadd.f32 %v1647, %v1686
        %v1690 = vrot.slane %v1525, 2
        %v1691 = vadd.s32 %v1495, 2
        %vm1692 = vcmp.ge.s32.totalorder %v1691, 0
        %vm1693 = vcmp.lt.s32.totalorder %v1691, 8
        %vm1694 = vmand %vm1692, %vm1693
        %v1695 = vsel %vm1694, 1, 0
        %vm1696 = vcmp.eq.s32.totalorder %v1695, 1
        %v1697 = vsel %vm1696, %v1690, 0.0
        %v1698 = vld [vmem:[#allocation3 + $0x120] sm:$0xf]
        %v1699 = vld [vmem:[#allocation3 + $0x124] sm:$0xf]
        %v1700 = vld [vmem:[#allocation3 + $0x128] sm:$0xf]
        %v1701 = vld [vmem:[#allocation3 + $0x12c] sm:$0xf]
        %v1702 = vpack.c.bf16 %v1697, %v1697
        %v1707 = vunpack.c.l.b16 %v1698
        %v1708 = vunpack.c.l.b16 %v1699
        %v1709 = vunpack.c.l.b16 %v1700
        %v1710 = vunpack.c.l.b16 %v1701
        %v1711 = vpack.c.b16 %v1708, %v1707
        %v1712 = vpack.c.b16 %v1710, %v1709
        %v1716 = vsel %vm445, %v1702, 0
        %1718 = vmatpush.bf16.msra.mxu0 0
        %1719 = vmatpush.bf16.msra.mxu0 0
        %1720 = vmatpush.bf16.msra.mxu0 0
        %1721 = vmatpush.bf16.msra.mxu0 0
        %1722 = vmatpush.bf16.msra.mxu0 0
        %1723 = vmatpush.bf16.msra.mxu0 0
        %1724 = vmatpush.bf16.msra.mxu0 %v1712
        %1725 = vmatpush.bf16.msra.mxu0 %v1711
        %1726 = vmatmul.bf16.gmra.mxu0 %v1716
        %v1727 = vpop.f32.mrf.mxu0
        %v1728 = vadd.f32 0.0, %v1727
        %v1729 = vpop.f32.mrf.mxu0
        %1730 = vdwg.mxu0
        %v1731 = vadd.f32 %v1689, %v1728
        %v1732 = vld [vmem:[%s7 + $0x5] sm:$0x1]
        %v1733 = vperm.slane %v1732, 0
        %v1734 = vadd.f32 %v1731, %v1733
        %vm1735 = vcmp.gt.f32.partialorder %v1734, 0.0
        %v1736 = vmul.f32 %v1734, 0.2
        %v1737 = vsel %vm1735, %v1734, %v1736
        %v1738 = vmul.f32 %v1737, %v466
        %1740 = vrot.lane.b32.xlu0 %v1738, 32
        %v1741 = vpop.permute.xlu0 %1740
        %v1743 = vsel %vm445, %v619, %v1741
        %v1744 = vadd.s32 %v1495, 8
        %v1745 = vadd.s32 %v1495, 16
        %v1746 = vadd.s32 %v1495, 24
        %v1747 = vadd.s32 %v1495, 32
        %v1748 = vadd.s32 %v1495, 40
        %v1749 = vadd.s32 %v1495, 48
        %v1750 = vadd.s32 %v1495, 56
        %v1751 = vcvt.s32.f32 %v1495
        %v1752 = vcvt.s32.f32 %v1744
        %v1753 = vcvt.s32.f32 %v1745
        %v1754 = vcvt.s32.f32 %v1746
        %v1755 = vcvt.s32.f32 %v1747
        %v1756 = vcvt.s32.f32 %v1748
        %v1757 = vcvt.s32.f32 %v1749
        %v1758 = vcvt.s32.f32 %v1750
        %v1759 = vperm.slane %v1522, 0
        %vm1760 = vcmp.gt.f32.partialorder %v1759, %v1751
        %vm1761 = vcmp.gt.f32.partialorder %v1759, %v1752
        %vm1762 = vcmp.gt.f32.partialorder %v1759, %v1753
        %vm1763 = vcmp.gt.f32.partialorder %v1759, %v1754
        %vm1764 = vcmp.gt.f32.partialorder %v1759, %v1755
        %vm1765 = vcmp.gt.f32.partialorder %v1759, %v1756
        %vm1766 = vcmp.gt.f32.partialorder %v1759, %v1757
        %vm1767 = vcmp.gt.f32.partialorder %v1759, %v1758
        %v1768 = vperm.slane %v1524, 0
        %vm1769 = vcmp.ge.f32.partialorder %v1751, %v1768
        %vm1770 = vcmp.ge.f32.partialorder %v1752, %v1768
        %vm1771 = vcmp.ge.f32.partialorder %v1753, %v1768
        %vm1772 = vcmp.ge.f32.partialorder %v1754, %v1768
        %vm1773 = vcmp.ge.f32.partialorder %v1755, %v1768
        %vm1774 = vcmp.ge.f32.partialorder %v1756, %v1768
        %vm1775 = vcmp.ge.f32.partialorder %v1757, %v1768
        %vm1776 = vcmp.ge.f32.partialorder %v1758, %v1768
        %vm1777 = vmand %vm1760, %vm1769
        %vm1778 = vmand %vm1761, %vm1770
        %vm1779 = vmand %vm1762, %vm1771
        %vm1780 = vmand %vm1763, %vm1772
        %vm1781 = vmand %vm1764, %vm1773
        %vm1782 = vmand %vm1765, %vm1774
        %vm1783 = vmand %vm1766, %vm1775
        %vm1784 = vmand %vm1767, %vm1776
        %v1785 = vsel %vm1777, 1.0, 0.0
        %v1786 = vsel %vm1778, 1.0, 0.0
        %v1787 = vsel %vm1779, 1.0, 0.0
        %v1788 = vsel %vm1780, 1.0, 0.0
        %v1789 = vsel %vm1781, 1.0, 0.0
        %v1790 = vsel %vm1782, 1.0, 0.0
        %v1791 = vsel %vm1783, 1.0, 0.0
        %v1792 = vsel %vm1784, 1.0, 0.0
        %v1794 = vsel %vm1421, %v1785, 0
        %v1797 = vsel %vm1421, %v1786, 0
        %v1800 = vsel %vm1421, %v1787, 0
        %v1803 = vsel %vm1421, %v1788, 0
        %v1806 = vsel %vm1421, %v1789, 0
        %v1809 = vsel %vm1421, %v1790, 0
        %v1812 = vsel %vm1421, %v1791, 0
        %v1815 = vsel %vm1421, %v1792, 0
        %1817 = vmatpush.msra.mxu0 0.0
        %1818 = vmatpush.msra.mxu0 0.0
        %1819 = vmatpush.msra.mxu0 0.0
        %1820 = vmatpush.msra.mxu0 0.0
        %1821 = vmatpush.msra.mxu0 0.0
        %1822 = vmatpush.msra.mxu0 0.0
        %1823 = vmatpush.msra.mxu0 0.0
        %1824 = vmatpush.msra.mxu0 0.0
        %1825 = vmatpush.msra.mxu0 0.0
        %1826 = vmatpush.msra.mxu0 0.0
        %1827 = vmatpush.msra.mxu0 0.0
        %1828 = vmatpush.msra.mxu0 0.0
        %1829 = vmatpush.msra.mxu0 0.0
        %1830 = vmatpush.msra.mxu0 0.0
        %1831 = vmatpush.msra.mxu0 0.0
        %1832 = vmatpush.msra.mxu0 %v1743
        %1833 = vmatmul.f32.gmra.mxu0 %v1794
        %v1834 = vpop.f32.mrf.mxu0
        %v1835 = vadd.f32 0.0, %v1834
        %1836 = vmatmul.f32.gmra.mxu0 %v1797
        %v1837 = vpop.f32.mrf.mxu0
        %v1838 = vadd.f32 0.0, %v1837
        %1839 = vmatmul.f32.gmra.mxu0 %v1800
        %v1840 = vpop.f32.mrf.mxu0
        %v1841 = vadd.f32 0.0, %v1840
        %1842 = vmatmul.f32.gmra.mxu0 %v1803
        %v1843 = vpop.f32.mrf.mxu0
        %v1844 = vadd.f32 0.0, %v1843
        %1845 = vmatmul.f32.gmra.mxu0 %v1806
        %v1846 = vpop.f32.mrf.mxu0
        %v1847 = vadd.f32 0.0, %v1846
        %1848 = vmatmul.f32.gmra.mxu0 %v1809
        %v1849 = vpop.f32.mrf.mxu0
        %v1850 = vadd.f32 0.0, %v1849
        %1851 = vmatmul.f32.gmra.mxu0 %v1812
        %v1852 = vpop.f32.mrf.mxu0
        %v1853 = vadd.f32 0.0, %v1852
        %1854 = vmatmul.f32.gmra.mxu0 %v1815
        %v1855 = vpop.f32.mrf.mxu0
        %v1856 = vadd.f32 0.0, %v1855
        %1857 = vdwg.mxu0
        %v1858 = vperm.slane %v1490, 0
        %vm1859 = vcmp.lt.f32.partialorder %v1751, %v1858
        %vm1860 = vcmp.lt.f32.partialorder %v1752, %v1858
        %vm1861 = vcmp.lt.f32.partialorder %v1753, %v1858
        %vm1862 = vcmp.lt.f32.partialorder %v1754, %v1858
        %vm1863 = vcmp.lt.f32.partialorder %v1755, %v1858
        %vm1864 = vcmp.lt.f32.partialorder %v1756, %v1858
        %vm1865 = vcmp.lt.f32.partialorder %v1757, %v1858
        %vm1866 = vcmp.lt.f32.partialorder %v1758, %v1858
        %v1867 = vsel %vm1859, 1.0, 0.0
        %v1868 = vsel %vm1860, 1.0, 0.0
        %v1869 = vsel %vm1861, 1.0, 0.0
        %v1870 = vsel %vm1862, 1.0, 0.0
        %v1871 = vsel %vm1863, 1.0, 0.0
        %v1872 = vsel %vm1864, 1.0, 0.0
        %v1873 = vsel %vm1865, 1.0, 0.0
        %v1874 = vsel %vm1866, 1.0, 0.0
        %vm1875 = vcmp.lt.f32.partialorder %v1751, %v1759
        %vm1876 = vcmp.lt.f32.partialorder %v1752, %v1759
        %vm1877 = vcmp.lt.f32.partialorder %v1753, %v1759
        %vm1878 = vcmp.lt.f32.partialorder %v1754, %v1759
        %vm1879 = vcmp.lt.f32.partialorder %v1755, %v1759
        %vm1880 = vcmp.lt.f32.partialorder %v1756, %v1759
        %vm1881 = vcmp.lt.f32.partialorder %v1757, %v1759
        %vm1882 = vcmp.lt.f32.partialorder %v1758, %v1759
        %v1883 = vsel %vm1875, 1.0, 0.0
        %v1884 = vsel %vm1876, 1.0, 0.0
        %v1885 = vsel %vm1877, 1.0, 0.0
        %v1886 = vsel %vm1878, 1.0, 0.0
        %v1887 = vsel %vm1879, 1.0, 0.0
        %v1888 = vsel %vm1880, 1.0, 0.0
        %v1889 = vsel %vm1881, 1.0, 0.0
        %v1890 = vsel %vm1882, 1.0, 0.0
        %v1891 = vld [vmem:[#allocation3 + $0x140] sm:$0xf]
        %v1892 = vld [vmem:[#allocation3 + $0x144] sm:$0xf]
        %v1893 = vld [vmem:[#allocation3 + $0x148] sm:$0xf]
        %v1894 = vld [vmem:[#allocation3 + $0x14c] sm:$0xf]
        %v1895 = vld [vmem:[#allocation3 + $0x150] sm:$0xf]
        %v1896 = vld [vmem:[#allocation3 + $0x154] sm:$0xf]
        %v1897 = vld [vmem:[#allocation3 + $0x158] sm:$0xf]
        %v1898 = vld [vmem:[#allocation3 + $0x15c] sm:$0xf]
        %v1899 = vld [vmem:[#allocation3 + $0x160] sm:$0xf]
        %v1900 = vld [vmem:[#allocation3 + $0x164] sm:$0xf]
        %v1901 = vld [vmem:[#allocation3 + $0x168] sm:$0xf]
        %v1902 = vld [vmem:[#allocation3 + $0x16c] sm:$0xf]
        %v1903 = vld [vmem:[#allocation3 + $0x170] sm:$0xf]
        %v1904 = vld [vmem:[#allocation3 + $0x174] sm:$0xf]
        %v1905 = vld [vmem:[#allocation3 + $0x178] sm:$0xf]
        %v1906 = vld [vmem:[#allocation3 + $0x17c] sm:$0xf]
        %v1923 = vunpack.c.l.b16 %v1891
        %v1924 = vunpack.c.l.b16 %v1892
        %v1925 = vunpack.c.l.b16 %v1893
        %v1926 = vunpack.c.l.b16 %v1894
        %v1927 = vunpack.c.l.b16 %v1895
        %v1928 = vunpack.c.l.b16 %v1896
        %v1929 = vunpack.c.l.b16 %v1897
        %v1930 = vunpack.c.l.b16 %v1898
        %v1931 = vunpack.c.l.b16 %v1899
        %v1932 = vunpack.c.l.b16 %v1900
        %v1933 = vunpack.c.l.b16 %v1901
        %v1934 = vunpack.c.l.b16 %v1902
        %v1935 = vunpack.c.l.b16 %v1903
        %v1936 = vunpack.c.l.b16 %v1904
        %v1937 = vunpack.c.l.b16 %v1905
        %v1938 = vunpack.c.l.b16 %v1906
        %v1939 = vpack.c.b16 %v1924, %v1923
        %v1940 = vpack.c.b16 %v1926, %v1925
        %v1941 = vpack.c.b16 %v1928, %v1927
        %v1942 = vpack.c.b16 %v1930, %v1929
        %v1943 = vpack.c.b16 %v1932, %v1931
        %v1944 = vpack.c.b16 %v1934, %v1933
        %v1945 = vpack.c.b16 %v1936, %v1935
        %v1946 = vpack.c.b16 %v1938, %v1937
        %1955 = vmatpush.bf16.msra.mxu0 %v1946
        %1956 = vmatpush.bf16.msra.mxu0 %v1945
        %1957 = vmatpush.bf16.msra.mxu0 %v1944
        %1958 = vmatpush.bf16.msra.mxu0 %v1943
        %1959 = vmatpush.bf16.msra.mxu0 %v1942
        %1960 = vmatpush.bf16.msra.mxu0 %v1941
        %1961 = vmatpush.bf16.msra.mxu0 %v1940
        %1962 = vmatpush.bf16.msra.mxu0 %v1939
        %1963 = vmatmul.bf16.gmra.mxu0 %v422
        %v1964 = vpop.f32.mrf.mxu0
        %v1965 = vadd.f32 0.0, %v1964
        %v1966 = vpop.f32.mrf.mxu0
        %1967 = vdwg.mxu0
        %v1968 = vld [vmem:[#allocation3 + $0x180] sm:$0xf]
        %v1969 = vld [vmem:[#allocation3 + $0x184] sm:$0xf]
        %v1970 = vld [vmem:[#allocation3 + $0x188] sm:$0xf]
        %v1971 = vld [vmem:[#allocation3 + $0x18c] sm:$0xf]
        %v1972 = vld [vmem:[#allocation3 + $0x190] sm:$0xf]
        %v1973 = vld [vmem:[#allocation3 + $0x194] sm:$0xf]
        %v1974 = vld [vmem:[#allocation3 + $0x198] sm:$0xf]
        %v1975 = vld [vmem:[#allocation3 + $0x19c] sm:$0xf]
        %v1976 = vld [vmem:[#allocation3 + $0x1a0] sm:$0xf]
        %v1977 = vld [vmem:[#allocation3 + $0x1a4] sm:$0xf]
        %v1978 = vld [vmem:[#allocation3 + $0x1a8] sm:$0xf]
        %v1979 = vld [vmem:[#allocation3 + $0x1ac] sm:$0xf]
        %v1980 = vld [vmem:[#allocation3 + $0x1b0] sm:$0xf]
        %v1981 = vld [vmem:[#allocation3 + $0x1b4] sm:$0xf]
        %v1982 = vld [vmem:[#allocation3 + $0x1b8] sm:$0xf]
        %v1983 = vld [vmem:[#allocation3 + $0x1bc] sm:$0xf]
        %v2000 = vunpack.c.l.b16 %v1968
        %v2001 = vunpack.c.l.b16 %v1969
        %v2002 = vunpack.c.l.b16 %v1970
        %v2003 = vunpack.c.l.b16 %v1971
        %v2004 = vunpack.c.l.b16 %v1972
        %v2005 = vunpack.c.l.b16 %v1973
        %v2006 = vunpack.c.l.b16 %v1974
        %v2007 = vunpack.c.l.b16 %v1975
        %v2008 = vunpack.c.l.b16 %v1976
        %v2009 = vunpack.c.l.b16 %v1977
        %v2010 = vunpack.c.l.b16 %v1978
        %v2011 = vunpack.c.l.b16 %v1979
        %v2012 = vunpack.c.l.b16 %v1980
        %v2013 = vunpack.c.l.b16 %v1981
        %v2014 = vunpack.c.l.b16 %v1982
        %v2015 = vunpack.c.l.b16 %v1983
        %v2016 = vpack.c.b16 %v2001, %v2000
        %v2017 = vpack.c.b16 %v2003, %v2002
        %v2018 = vpack.c.b16 %v2005, %v2004
        %v2019 = vpack.c.b16 %v2007, %v2006
        %v2020 = vpack.c.b16 %v2009, %v2008
        %v2021 = vpack.c.b16 %v2011, %v2010
        %v2022 = vpack.c.b16 %v2013, %v2012
        %v2023 = vpack.c.b16 %v2015, %v2014
        %2032 = vmatpush.bf16.msra.mxu0 %v2023
        %2033 = vmatpush.bf16.msra.mxu0 %v2022
        %2034 = vmatpush.bf16.msra.mxu0 %v2021
        %2035 = vmatpush.bf16.msra.mxu0 %v2020
        %2036 = vmatpush.bf16.msra.mxu0 %v2019
        %2037 = vmatpush.bf16.msra.mxu0 %v2018
        %2038 = vmatpush.bf16.msra.mxu0 %v2017
        %2039 = vmatpush.bf16.msra.mxu0 %v2016
        %2040 = vmatmul.bf16.gmra.mxu0 %v422
        %v2041 = vpop.f32.mrf.mxu0
        %v2042 = vadd.f32 0.0, %v2041
        %v2043 = vpop.f32.mrf.mxu0
        %2044 = vdwg.mxu0
        %v2045 = vpack.c.bf16 %v1838, %v1835
        %v2046 = vpack.c.bf16 %v1844, %v1841
        %v2047 = vpack.c.bf16 %v1850, %v1847
        %v2048 = vpack.c.bf16 %v1856, %v1853
        %v2049 = vld [vmem:[#allocation3 + $0x130] sm:$0xf]
        %v2050 = vld [vmem:[#allocation3 + $0x134] sm:$0xf]
        %v2051 = vld [vmem:[#allocation3 + $0x138] sm:$0xf]
        %v2052 = vld [vmem:[#allocation3 + $0x13c] sm:$0xf]
        %2054 = vset.pattern.permute.xlu0 7
        %2055 = vperm.xlu0 %2054, %v1883
        %v2056 = vpop.permute.xlu0 %2055
        %2059 = vset.pattern.permute.xlu0 7
        %2060 = vperm.xlu0 %2059, %v1884
        %v2061 = vpop.permute.xlu0 %2060
        %2064 = vset.pattern.permute.xlu0 7
        %2065 = vperm.xlu0 %2064, %v1885
        %v2066 = vpop.permute.xlu0 %2065
        %2069 = vset.pattern.permute.xlu0 7
        %2070 = vperm.xlu0 %2069, %v1886
        %v2071 = vpop.permute.xlu0 %2070
        %2074 = vset.pattern.permute.xlu0 7
        %2075 = vperm.xlu0 %2074, %v1887
        %v2076 = vpop.permute.xlu0 %2075
        %2079 = vset.pattern.permute.xlu0 7
        %2080 = vperm.xlu0 %2079, %v1888
        %v2081 = vpop.permute.xlu0 %2080
        %2084 = vset.pattern.permute.xlu0 7
        %2085 = vperm.xlu0 %2084, %v1889
        %v2086 = vpop.permute.xlu0 %2085
        %2089 = vset.pattern.permute.xlu0 7
        %2090 = vperm.xlu0 %2089, %v1890
        %v2091 = vpop.permute.xlu0 %2090
        %v2093 = vperm.slane %v1965, 0
        %v2094 = vmul.f32 %v2056, %v2093
        %v2095 = vmul.f32 %v2061, %v2093
        %v2096 = vmul.f32 %v2066, %v2093
        %v2097 = vmul.f32 %v2071, %v2093
        %v2098 = vmul.f32 %v2076, %v2093
        %v2099 = vmul.f32 %v2081, %v2093
        %v2100 = vmul.f32 %v2086, %v2093
        %v2101 = vmul.f32 %v2091, %v2093
        %v2106 = vunpack.c.l.b16 %v2049
        %v2107 = vunpack.c.l.b16 %v2050
        %v2108 = vunpack.c.l.b16 %v2051
        %v2109 = vunpack.c.l.b16 %v2052
        %v2110 = vpack.c.b16 %v2107, %v2106
        %v2111 = vpack.c.b16 %v2109, %v2108
        %v2115 = vsel %vm445, %v2045, 0
        %v2118 = vsel %vm445, %v2046, 0
        %v2121 = vsel %vm445, %v2047, 0
        %v2124 = vsel %vm445, %v2048, 0
        %2126 = vmatpush.bf16.msra.mxu0 0
        %2127 = vmatpush.bf16.msra.mxu0 0
        %2128 = vmatpush.bf16.msra.mxu0 0
        %2129 = vmatpush.bf16.msra.mxu0 0
        %2130 = vmatpush.bf16.msra.mxu0 0
        %2131 = vmatpush.bf16.msra.mxu0 0
        %2132 = vmatpush.bf16.msra.mxu0 %v2111
        %2133 = vmatpush.bf16.msra.mxu0 %v2110
        %2134 = vmatmul.bf16.gmra.mxu0 %v2115
        %v2135 = vpop.f32.mrf.mxu0
        %v2136 = vadd.f32 %v2094, %v2135
        %v2137 = vpop.f32.mrf.mxu0
        %v2138 = vadd.f32 %v2095, %v2137
        %2139 = vmatmul.bf16.gmra.mxu0 %v2118
        %v2140 = vpop.f32.mrf.mxu0
        %v2141 = vadd.f32 %v2096, %v2140
        %v2142 = vpop.f32.mrf.mxu0
        %v2143 = vadd.f32 %v2097, %v2142
        %2144 = vmatmul.bf16.gmra.mxu0 %v2121
        %v2145 = vpop.f32.mrf.mxu0
        %v2146 = vadd.f32 %v2098, %v2145
        %v2147 = vpop.f32.mrf.mxu0
        %v2148 = vadd.f32 %v2099, %v2147
        %2149 = vmatmul.bf16.gmra.mxu0 %v2124
        %v2150 = vpop.f32.mrf.mxu0
        %v2151 = vadd.f32 %v2100, %v2150
        %v2152 = vpop.f32.mrf.mxu0
        %v2153 = vadd.f32 %v2101, %v2152
        %2154 = vdwg.mxu0
        %v2155 = vperm.slane %v2042, 0
        %v2156 = vadd.f32 %v2136, %v2155
        %v2157 = vadd.f32 %v2138, %v2155
        %v2158 = vadd.f32 %v2141, %v2155
        %v2159 = vadd.f32 %v2143, %v2155
        %v2160 = vadd.f32 %v2146, %v2155
        %v2161 = vadd.f32 %v2148, %v2155
        %v2162 = vadd.f32 %v2151, %v2155
        %v2163 = vadd.f32 %v2153, %v2155
        %v2164 = vld [vmem:[%s7 + $0x6] sm:$0x1]
        %v2165 = vperm.slane %v2164, 0
        %v2166 = vadd.f32 %v2156, %v2165
        %v2167 = vadd.f32 %v2157, %v2165
        %v2168 = vadd.f32 %v2158, %v2165
        %v2169 = vadd.f32 %v2159, %v2165
        %v2170 = vadd.f32 %v2160, %v2165
        %v2171 = vadd.f32 %v2161, %v2165
        %v2172 = vadd.f32 %v2162, %v2165
        %v2173 = vadd.f32 %v2163, %v2165
        %v2174 = vtanh.pop %v2166
        %v2175 = vtanh.pop %v2167
        %v2176 = vtanh.pop %v2168
        %v2177 = vtanh.pop %v2169
        %v2178 = vtanh.pop %v2170
        %v2179 = vtanh.pop %v2171
        %v2180 = vtanh.pop %v2172
        %v2181 = vtanh.pop %v2173
        %v2182 = vpack.c.bf16 %v2175, %v2174
        %v2183 = vpack.c.bf16 %v2177, %v2176
        %v2184 = vpack.c.bf16 %v2179, %v2178
        %v2185 = vpack.c.bf16 %v2181, %v2180
        %v2186 = vld [vmem:[#allocation3 + $0x1c0] sm:$0xf]
        %v2187 = vld [vmem:[#allocation3 + $0x1c4] sm:$0xf]
        %v2188 = vld [vmem:[#allocation3 + $0x1c8] sm:$0xf]
        %v2189 = vld [vmem:[#allocation3 + $0x1cc] sm:$0xf]
        %v2190 = vld [vmem:[%s7 + $0x7] sm:$0x1]
        %v2191 = vperm.slane %v2190, 0
        %v2196 = vunpack.c.l.b16 %v2186
        %v2197 = vunpack.c.l.b16 %v2187
        %v2198 = vunpack.c.l.b16 %v2188
        %v2199 = vunpack.c.l.b16 %v2189
        %v2200 = vpack.c.b16 %v2197, %v2196
        %v2201 = vpack.c.b16 %v2199, %v2198
        %v2205 = vsel %vm445, %v2182, 0
        %v2208 = vsel %vm445, %v2183, 0
        %v2211 = vsel %vm445, %v2184, 0
        %v2214 = vsel %vm445, %v2185, 0
        %2216 = vmatpush.bf16.msra.mxu0 0
        %2217 = vmatpush.bf16.msra.mxu0 0
        %2218 = vmatpush.bf16.msra.mxu0 0
        %2219 = vmatpush.bf16.msra.mxu0 0
        %2220 = vmatpush.bf16.msra.mxu0 0
        %2221 = vmatpush.bf16.msra.mxu0 0
        %2222 = vmatpush.bf16.msra.mxu0 %v2201
        %2223 = vmatpush.bf16.msra.mxu0 %v2200
        %2224 = vmatmul.bf16.gmra.mxu0 %v2205
        %v2225 = vpop.f32.mrf.mxu0
        %v2226 = vadd.f32 %v2191, %v2225
        %v2227 = vpop.f32.mrf.mxu0
        %v2228 = vadd.f32 %v2191, %v2227
        %2229 = vmatmul.bf16.gmra.mxu0 %v2208
        %v2230 = vpop.f32.mrf.mxu0
        %v2231 = vadd.f32 %v2191, %v2230
        %v2232 = vpop.f32.mrf.mxu0
        %v2233 = vadd.f32 %v2191, %v2232
        %2234 = vmatmul.bf16.gmra.mxu0 %v2211
        %v2235 = vpop.f32.mrf.mxu0
        %v2236 = vadd.f32 %v2191, %v2235
        %v2237 = vpop.f32.mrf.mxu0
        %v2238 = vadd.f32 %v2191, %v2237
        %2239 = vmatmul.bf16.gmra.mxu0 %v2214
        %v2240 = vpop.f32.mrf.mxu0
        %v2241 = vadd.f32 %v2191, %v2240
        %v2242 = vpop.f32.mrf.mxu0
        %v2243 = vadd.f32 %v2191, %v2242
        %2244 = vdwg.mxu0
        %v2245 = vmul.f32 %v2226, %v1867
        %v2246 = vmul.f32 %v2228, %v1868
        %v2247 = vmul.f32 %v2231, %v1869
        %v2248 = vmul.f32 %v2233, %v1870
        %v2249 = vmul.f32 %v2236, %v1871
        %v2250 = vmul.f32 %v2238, %v1872
        %v2251 = vmul.f32 %v2241, %v1873
        %v2252 = vmul.f32 %v2243, %v1874
        %v2253 = vld [vmem:[#allocation3 + $0x1e0] sm:$0xf]
        %v2254 = vld [vmem:[#allocation3 + $0x1e4] sm:$0xf]
        %v2255 = vld [vmem:[#allocation3 + $0x1e8] sm:$0xf]
        %v2256 = vld [vmem:[#allocation3 + $0x1ec] sm:$0xf]
        %v2257 = vld [vmem:[#allocation3 + $0x1f0] sm:$0xf]
        %v2258 = vld [vmem:[#allocation3 + $0x1f4] sm:$0xf]
        %v2259 = vld [vmem:[#allocation3 + $0x1f8] sm:$0xf]
        %v2260 = vld [vmem:[#allocation3 + $0x1fc] sm:$0xf]
        %v2261 = vld [vmem:[#allocation3 + $0x200] sm:$0xf]
        %v2262 = vld [vmem:[#allocation3 + $0x204] sm:$0xf]
        %v2263 = vld [vmem:[#allocation3 + $0x208] sm:$0xf]
        %v2264 = vld [vmem:[#allocation3 + $0x20c] sm:$0xf]
        %v2265 = vld [vmem:[#allocation3 + $0x210] sm:$0xf]
        %v2266 = vld [vmem:[#allocation3 + $0x214] sm:$0xf]
        %v2267 = vld [vmem:[#allocation3 + $0x218] sm:$0xf]
        %v2268 = vld [vmem:[#allocation3 + $0x21c] sm:$0xf]
        %v2285 = vunpack.c.l.b16 %v2253
        %v2286 = vunpack.c.l.b16 %v2254
        %v2287 = vunpack.c.l.b16 %v2255
        %v2288 = vunpack.c.l.b16 %v2256
        %v2289 = vunpack.c.l.b16 %v2257
        %v2290 = vunpack.c.l.b16 %v2258
        %v2291 = vunpack.c.l.b16 %v2259
        %v2292 = vunpack.c.l.b16 %v2260
        %v2293 = vunpack.c.l.b16 %v2261
        %v2294 = vunpack.c.l.b16 %v2262
        %v2295 = vunpack.c.l.b16 %v2263
        %v2296 = vunpack.c.l.b16 %v2264
        %v2297 = vunpack.c.l.b16 %v2265
        %v2298 = vunpack.c.l.b16 %v2266
        %v2299 = vunpack.c.l.b16 %v2267
        %v2300 = vunpack.c.l.b16 %v2268
        %v2301 = vpack.c.b16 %v2286, %v2285
        %v2302 = vpack.c.b16 %v2288, %v2287
        %v2303 = vpack.c.b16 %v2290, %v2289
        %v2304 = vpack.c.b16 %v2292, %v2291
        %v2305 = vpack.c.b16 %v2294, %v2293
        %v2306 = vpack.c.b16 %v2296, %v2295
        %v2307 = vpack.c.b16 %v2298, %v2297
        %v2308 = vpack.c.b16 %v2300, %v2299
        %2317 = vmatpush.bf16.msra.mxu0 %v2308
        %2318 = vmatpush.bf16.msra.mxu0 %v2307
        %2319 = vmatpush.bf16.msra.mxu0 %v2306
        %2320 = vmatpush.bf16.msra.mxu0 %v2305
        %2321 = vmatpush.bf16.msra.mxu0 %v2304
        %2322 = vmatpush.bf16.msra.mxu0 %v2303
        %2323 = vmatpush.bf16.msra.mxu0 %v2302
        %2324 = vmatpush.bf16.msra.mxu0 %v2301
        %2325 = vmatmul.bf16.gmra.mxu0 %v424
        %v2326 = vpop.f32.mrf.mxu0
        %v2327 = vadd.f32 0.0, %v2326
        %v2328 = vpop.f32.mrf.mxu0
        %2329 = vdwg.mxu0
        %v2330 = vmul.f32 %v1835, %v1867
        %v2331 = vmul.f32 %v1838, %v1868
        %v2332 = vmul.f32 %v1841, %v1869
        %v2333 = vmul.f32 %v1844, %v1870
        %v2334 = vmul.f32 %v1847, %v1871
        %v2335 = vmul.f32 %v1850, %v1872
        %v2336 = vmul.f32 %v1853, %v1873
        %v2337 = vmul.f32 %v1856, %v1874
        %v2338 = vpack.c.bf16 %v2331, %v2330
        %v2339 = vpack.c.bf16 %v2333, %v2332
        %v2340 = vpack.c.bf16 %v2335, %v2334
        %v2341 = vpack.c.bf16 %v2337, %v2336
        %v2342 = vld [vmem:[#allocation3 + $0x1d0] sm:$0xf]
        %v2343 = vld [vmem:[#allocation3 + $0x1d4] sm:$0xf]
        %v2344 = vld [vmem:[#allocation3 + $0x1d8] sm:$0xf]
        %v2345 = vld [vmem:[#allocation3 + $0x1dc] sm:$0xf]
        %v2346 = vld [vmem:[%s7 + $0xa] sm:$0x1]
        %2348 = vset.pattern.permute.xlu0 0
        %2349 = vperm.xlu0 %2348, %v2245
        %v2350 = vpop.permute.xlu0 %2349
        %2353 = vset.pattern.permute.xlu0 0
        %2354 = vperm.xlu0 %2353, %v2246
        %v2355 = vpop.permute.xlu0 %2354
        %2358 = vset.pattern.permute.xlu0 0
        %2359 = vperm.xlu0 %2358, %v2247
        %v2360 = vpop.permute.xlu0 %2359
        %2363 = vset.pattern.permute.xlu0 0
        %2364 = vperm.xlu0 %2363, %v2248
        %v2365 = vpop.permute.xlu0 %2364
        %2368 = vset.pattern.permute.xlu0 0
        %2369 = vperm.xlu0 %2368, %v2249
        %v2370 = vpop.permute.xlu0 %2369
        %2373 = vset.pattern.permute.xlu0 0
        %2374 = vperm.xlu0 %2373, %v2250
        %v2375 = vpop.permute.xlu0 %2374
        %2378 = vset.pattern.permute.xlu0 0
        %2379 = vperm.xlu0 %2378, %v2251
        %v2380 = vpop.permute.xlu0 %2379
        %2383 = vset.pattern.permute.xlu0 0
        %2384 = vperm.xlu0 %2383, %v2252
        %v2385 = vpop.permute.xlu0 %2384
        %v2387 = vperm.slane %v2346, 0
        %v2388 = vmul.f32 %v2350, %v2387
        %v2389 = vmul.f32 %v2355, %v2387
        %v2390 = vmul.f32 %v2360, %v2387
        %v2391 = vmul.f32 %v2365, %v2387
        %v2392 = vmul.f32 %v2370, %v2387
        %v2393 = vmul.f32 %v2375, %v2387
        %v2394 = vmul.f32 %v2380, %v2387
        %v2395 = vmul.f32 %v2385, %v2387
        %2400 = vrot.lane.b32.xlu0 %v2338, 96
        %v2401 = vpop.permute.xlu0 %2400
        %2402 = vrot.lane.b32.xlu0 %v2339, 96
        %v2403 = vpop.permute.xlu0 %2402
        %2404 = vrot.lane.b32.xlu0 %v2340, 96
        %v2405 = vpop.permute.xlu0 %2404
        %2406 = vrot.lane.b32.xlu0 %v2341, 96
        %v2407 = vpop.permute.xlu0 %2406
        %v2412 = vunpack.c.l.b16 %v2342
        %v2413 = vunpack.c.l.b16 %v2343
        %v2414 = vunpack.c.l.b16 %v2344
        %v2415 = vunpack.c.l.b16 %v2345
        %v2416 = vpack.c.b16 %v2413, %v2412
        %v2417 = vpack.c.b16 %v2415, %v2414
        %v2421 = vsel %vm445, %v2401, 0
        %v2424 = vsel %vm445, %v2403, 0
        %v2427 = vsel %vm445, %v2405, 0
        %v2430 = vsel %vm445, %v2407, 0
        %2432 = vmatpush.bf16.msra.mxu0 0
        %2433 = vmatpush.bf16.msra.mxu0 0
        %2434 = vmatpush.bf16.msra.mxu0 0
        %2435 = vmatpush.bf16.msra.mxu0 0
        %2436 = vmatpush.bf16.msra.mxu0 0
        %2437 = vmatpush.bf16.msra.mxu0 0
        %2438 = vmatpush.bf16.msra.mxu0 %v2417
        %2439 = vmatpush.bf16.msra.mxu0 %v2416
        %2440 = vmatmul.bf16.gmra.mxu0 %v2421
        %v2441 = vpop.f32.mrf.mxu0
        %v2442 = vadd.f32 %v2388, %v2441
        %v2443 = vpop.f32.mrf.mxu0
        %v2444 = vadd.f32 %v2389, %v2443
        %2445 = vmatmul.bf16.gmra.mxu0 %v2424
        %v2446 = vpop.f32.mrf.mxu0
        %v2447 = vadd.f32 %v2390, %v2446
        %v2448 = vpop.f32.mrf.mxu0
        %v2449 = vadd.f32 %v2391, %v2448
        %2450 = vmatmul.bf16.gmra.mxu0 %v2427
        %v2451 = vpop.f32.mrf.mxu0
        %v2452 = vadd.f32 %v2392, %v2451
        %v2453 = vpop.f32.mrf.mxu0
        %v2454 = vadd.f32 %v2393, %v2453
        %2455 = vmatmul.bf16.gmra.mxu0 %v2430
        %v2456 = vpop.f32.mrf.mxu0
        %v2457 = vadd.f32 %v2394, %v2456
        %v2458 = vpop.f32.mrf.mxu0
        %v2459 = vadd.f32 %v2395, %v2458
        %2460 = vdwg.mxu0
        %v2461 = vld [vmem:[%s7 + $0xb] sm:$0x1]
        %2462 = vset.pattern.permute.xlu0 1
        %2463 = vperm.xlu0 %2462, %v2245
        %v2464 = vpop.permute.xlu0 %2463
        %2466 = vset.pattern.permute.xlu0 1
        %2467 = vperm.xlu0 %2466, %v2246
        %v2468 = vpop.permute.xlu0 %2467
        %2470 = vset.pattern.permute.xlu0 1
        %2471 = vperm.xlu0 %2470, %v2247
        %v2472 = vpop.permute.xlu0 %2471
        %2474 = vset.pattern.permute.xlu0 1
        %2475 = vperm.xlu0 %2474, %v2248
        %v2476 = vpop.permute.xlu0 %2475
        %2478 = vset.pattern.permute.xlu0 1
        %2479 = vperm.xlu0 %2478, %v2249
        %v2480 = vpop.permute.xlu0 %2479
        %2482 = vset.pattern.permute.xlu0 1
        %2483 = vperm.xlu0 %2482, %v2250
        %v2484 = vpop.permute.xlu0 %2483
        %2486 = vset.pattern.permute.xlu0 1
        %2487 = vperm.xlu0 %2486, %v2251
        %v2488 = vpop.permute.xlu0 %2487
        %2490 = vset.pattern.permute.xlu0 1
        %2491 = vperm.xlu0 %2490, %v2252
        %v2492 = vpop.permute.xlu0 %2491
        %v2494 = vperm.slane %v2461, 0
        %v2495 = vmul.f32 %v2464, %v2494
        %v2496 = vmul.f32 %v2468, %v2494
        %v2497 = vmul.f32 %v2472, %v2494
        %v2498 = vmul.f32 %v2476, %v2494
        %v2499 = vmul.f32 %v2480, %v2494
        %v2500 = vmul.f32 %v2484, %v2494
        %v2501 = vmul.f32 %v2488, %v2494
        %v2502 = vmul.f32 %v2492, %v2494
        %v2503 = vadd.f32 %v2442, %v2495
        %v2504 = vadd.f32 %v2444, %v2496
        %v2505 = vadd.f32 %v2447, %v2497
        %v2506 = vadd.f32 %v2449, %v2498
        %v2507 = vadd.f32 %v2452, %v2499
        %v2508 = vadd.f32 %v2454, %v2500
        %v2509 = vadd.f32 %v2457, %v2501
        %v2510 = vadd.f32 %v2459, %v2502
        %v2511 = vperm.slane %v2327, 0
        %v2512 = vadd.f32 %v2503, %v2511
        %v2513 = vadd.f32 %v2504, %v2511
        %v2514 = vadd.f32 %v2505, %v2511
        %v2515 = vadd.f32 %v2506, %v2511
        %v2516 = vadd.f32 %v2507, %v2511
        %v2517 = vadd.f32 %v2508, %v2511
        %v2518 = vadd.f32 %v2509, %v2511
        %v2519 = vadd.f32 %v2510, %v2511
        %v2520 = vld [vmem:[%s7 + $0x8] sm:$0x1]
        %v2521 = vperm.slane %v2520, 0
        %v2522 = vadd.f32 %v2512, %v2521
        %v2523 = vadd.f32 %v2513, %v2521
        %v2524 = vadd.f32 %v2514, %v2521
        %v2525 = vadd.f32 %v2515, %v2521
        %v2526 = vadd.f32 %v2516, %v2521
        %v2527 = vadd.f32 %v2517, %v2521
        %v2528 = vadd.f32 %v2518, %v2521
        %v2529 = vadd.f32 %v2519, %v2521
        %vm2530 = vcmp.gt.f32.partialorder %v2522, 0.0
        %vm2531 = vcmp.gt.f32.partialorder %v2523, 0.0
        %vm2532 = vcmp.gt.f32.partialorder %v2524, 0.0
        %vm2533 = vcmp.gt.f32.partialorder %v2525, 0.0
        %vm2534 = vcmp.gt.f32.partialorder %v2526, 0.0
        %vm2535 = vcmp.gt.f32.partialorder %v2527, 0.0
        %vm2536 = vcmp.gt.f32.partialorder %v2528, 0.0
        %vm2537 = vcmp.gt.f32.partialorder %v2529, 0.0
        %v2538 = vmul.f32 %v2522, 0.2
        %v2539 = vmul.f32 %v2523, 0.2
        %v2540 = vmul.f32 %v2524, 0.2
        %v2541 = vmul.f32 %v2525, 0.2
        %v2542 = vmul.f32 %v2526, 0.2
        %v2543 = vmul.f32 %v2527, 0.2
        %v2544 = vmul.f32 %v2528, 0.2
        %v2545 = vmul.f32 %v2529, 0.2
        %v2546 = vsel %vm2530, %v2522, %v2538
        %v2547 = vsel %vm2531, %v2523, %v2539
        %v2548 = vsel %vm2532, %v2524, %v2540
        %v2549 = vsel %vm2533, %v2525, %v2541
        %v2550 = vsel %vm2534, %v2526, %v2542
        %v2551 = vsel %vm2535, %v2527, %v2543
        %v2552 = vsel %vm2536, %v2528, %v2544
        %v2553 = vsel %vm2537, %v2529, %v2545
        %v2554 = vpack.c.bf16 %v2547, %v2546
        %v2555 = vpack.c.bf16 %v2549, %v2548
        %v2556 = vpack.c.bf16 %v2551, %v2550
        %v2557 = vpack.c.bf16 %v2553, %v2552
        %v2558 = vld [vmem:[#allocation3 + $0x220] sm:$0xf]
        %v2559 = vld [vmem:[#allocation3 + $0x224] sm:$0xf]
        %v2560 = vld [vmem:[#allocation3 + $0x228] sm:$0xf]
        %v2561 = vld [vmem:[#allocation3 + $0x22c] sm:$0xf]
        %v2562 = vld [vmem:[%s7 + $0x9] sm:$0x1]
        %v2563 = vperm.slane %v2562, 0
        %v2568 = vunpack.c.l.b16 %v2558
        %v2569 = vunpack.c.l.b16 %v2559
        %v2570 = vunpack.c.l.b16 %v2560
        %v2571 = vunpack.c.l.b16 %v2561
        %v2572 = vpack.c.b16 %v2569, %v2568
        %v2573 = vpack.c.b16 %v2571, %v2570
        %v2577 = vsel %vm445, %v2554, 0
        %v2580 = vsel %vm445, %v2555, 0
        %v2583 = vsel %vm445, %v2556, 0
        %v2586 = vsel %vm445, %v2557, 0
        %2588 = vmatpush.bf16.msra.mxu0 0
        %2589 = vmatpush.bf16.msra.mxu0 0
        %2590 = vmatpush.bf16.msra.mxu0 0
        %2591 = vmatpush.bf16.msra.mxu0 0
        %2592 = vmatpush.bf16.msra.mxu0 0
        %2593 = vmatpush.bf16.msra.mxu0 0
        %2594 = vmatpush.bf16.msra.mxu0 %v2573
        %2595 = vmatpush.bf16.msra.mxu0 %v2572
        %2596 = vmatmul.bf16.gmra.mxu0 %v2577
        %v2597 = vpop.f32.mrf.mxu0
        %v2598 = vadd.f32 %v2563, %v2597
        %v2599 = vpop.f32.mrf.mxu0
        %v2600 = vadd.f32 %v2563, %v2599
        %2601 = vmatmul.bf16.gmra.mxu0 %v2580
        %v2602 = vpop.f32.mrf.mxu0
        %v2603 = vadd.f32 %v2563, %v2602
        %v2604 = vpop.f32.mrf.mxu0
        %v2605 = vadd.f32 %v2563, %v2604
        %2606 = vmatmul.bf16.gmra.mxu0 %v2583
        %v2607 = vpop.f32.mrf.mxu0
        %v2608 = vadd.f32 %v2563, %v2607
        %v2609 = vpop.f32.mrf.mxu0
        %v2610 = vadd.f32 %v2563, %v2609
        %2611 = vmatmul.bf16.gmra.mxu0 %v2586
        %v2612 = vpop.f32.mrf.mxu0
        %v2613 = vadd.f32 %v2563, %v2612
        %v2614 = vpop.f32.mrf.mxu0
        %v2615 = vadd.f32 %v2563, %v2614
        %2616 = vdwg.mxu0
        %v2617 = vmul.f32 %v2598, %v1867
        %v2618 = vmul.f32 %v2600, %v1868
        %v2619 = vmul.f32 %v2603, %v1869
        %v2620 = vmul.f32 %v2605, %v1870
        %v2621 = vmul.f32 %v2608, %v1871
        %v2622 = vmul.f32 %v2610, %v1872
        %v2623 = vmul.f32 %v2613, %v1873
        %v2624 = vmul.f32 %v2615, %v1874
        %2625 = vst.msk [vmem:[%s415] sm:$0xff] %vm1479, %v2617
        %2626 = vst.msk [vmem:[%s415 + $0x8] sm:$0xff] %vm1479, %v2618
        %2627 = vst.msk [vmem:[%s415 + $0x10] sm:$0xff] %vm1479, %v2619
        %2628 = vst.msk [vmem:[%s415 + $0x18] sm:$0xff] %vm1479, %v2620
        %2629 = vst.msk [vmem:[%s415 + $0x20] sm:$0xff] %vm1479, %v2621
        %2630 = vst.msk [vmem:[%s415 + $0x28] sm:$0xff] %vm1479, %v2622
        %2631 = vst.msk [vmem:[%s415 + $0x30] sm:$0xff] %vm1479, %v2623
        %2632 = vst.msk [vmem:[%s415 + $0x38] sm:$0xff] %vm1479, %v2624
        %p2633 = scmp.lt.s32.totalorder %s23, 1
        %s2634 = scalar_select %p2633, %s23, 1
        %s2635 = smul.addr %s2634, 8
        %s2636 = smul.addr %s2635, 8
        %s2637 = scalar_lea.vmem %s8, %s2636
        %p2638 = scmp.lt.s32.totalorder %s23, 1
        %s2639 = scalar_select %p2638, %s23, 1
        %s2640 = scalar_lea.vmem %s9, %s2639
        // Predicated region
        $region57: #{kmodel_for_onnx_forward.1} parent=51 // pred_check
          %p2641 = pneg %p234
        $region58: #{kmodel_for_onnx_forward.1} parent=51 // pred_check_branch
          %2643 = sbr.rel (%p2641) target = $region60
        $region59: #{kmodel_for_onnx_forward.1} parent=51 // pred_region
          _
        $region60: #{kmodel_for_onnx_forward.1} parent=51 // pred_fallthru
          _
        // Predicated region
        $region61: #{kmodel_for_onnx_forward.1} parent=51 // pred_check
          %p2644 = pneg %p260
        $region62: #{kmodel_for_onnx_forward.1} parent=51 // pred_check_branch
          %2646 = sbr.rel (%p2644) target = $region64
        $region63: #{kmodel_for_onnx_forward.1} parent=51 // pred_region
          _
        $region64: #{kmodel_for_onnx_forward.1} parent=51 // pred_fallthru
          _
      $region52: #{kmodel_for_onnx_forward.1} parent=5 // pred_fallthru
        _
      %p2647 = scmp.le.s32.totalorder 2, %s18
      // Predicated region
      $region65: #{kmodel_for_onnx_forward.1} parent=5 // pred_check
        %p2648 = pneg %p2647
      $region66: #{kmodel_for_onnx_forward.1} parent=5 // pred_check_branch
        %2650 = sbr.rel (%p2648) target = $region68
      $region67: #{kmodel_for_onnx_forward.1} parent=5 // pred_region
        %s2651 = ssub.s32 %s18, 2
        // Predicated region
        $region69: #{kmodel_for_onnx_forward.1} parent=67 // pred_check
          %p2652 = pneg %p240
        $region70: #{kmodel_for_onnx_forward.1} parent=67 // pred_check_branch
          %2654 = sbr.rel (%p2652) target = $region72
        $region71: #{kmodel_for_onnx_forward.1} parent=67 // pred_region
          %p2655 = scmp.lt.s32.totalorder %s24, 1
          %s2656 = scalar_select %p2655, %s24, 1
          %s2657 = smul.addr %s2656, 8
          %s2658 = smul.addr %s2657, 8
          %s2659 = scalar_lea.vmem %s8, %s2658
        $region72: #{kmodel_for_onnx_forward.1} parent=67 // pred_fallthru
          _
        // Predicated region
        $region73: #{kmodel_for_onnx_forward.1} parent=67 // pred_check
          %p2660 = pneg %p266
        $region74: #{kmodel_for_onnx_forward.1} parent=67 // pred_check_branch
          %2662 = sbr.rel (%p2660) target = $region76
        $region75: #{kmodel_for_onnx_forward.1} parent=67 // pred_region
          %p2663 = scmp.lt.s32.totalorder %s24, 1
          %s2664 = scalar_select %p2663, %s24, 1
          %s2665 = scalar_lea.vmem %s9, %s2664
        $region76: #{kmodel_for_onnx_forward.1} parent=67 // pred_fallthru
          _
      $region68: #{kmodel_for_onnx_forward.1} parent=5 // pred_fallthru
        _
    $region6: #{kmodel_for_onnx_forward.1} parent=1 // loop_footer
      %s22 = sadd.s32 1, %s18
    $region7: #{kmodel_for_onnx_forward.1} parent=1 // loop_footer_branch
      %17 = sbr.rel target = $region3
    $region8: #{kmodel_for_onnx_forward.1} parent=1 // loop_exit
      _
    %2666 = vsyncpa [#allocation4], 1
    %s2667 = scalar_lea.sflag [#allocation4], 1
    %2668 = vsyncpa %s2667, 1

</llo_original>
